<compile_context>
chip_gen: v7x
topology: tpu7x:2x2x1
jax: 0.10.0
libtpu: 0.0.40
codegen_flags: <defaults>
</compile_context>

<pallas_src>
import functools
import string

import jax
import jax.numpy as jnp
from jax.experimental import pallas as pl
from jax.experimental.pallas import tpu as pltpu

VOCABULARY = string.printable            # len == 100
VOCAB_SIZE = len(VOCABULARY)


def word_sampler_kernel(tok_ref,                       # scalar prefetch: (T_pad*B,) int32 in SMEM
                        h0_ref, c0_ref,                # (B, H) initial state
                        w_eih_ref,                     # (Vp, 4H) = padded(emb) @ W_ih^T
                        w_hh_ref,                      # (H, 4H)  = W_hh^T
                        b_g_ref,                       # (1, 4H)  = b_ih + b_hh
                        w_fc_ref,                      # (H, Vp)  = W_fc^T, zero-padded cols
                        b_fc_ref,                      # (1, Vp)  zero-padded
                        out_ref,                       # (chunk, B, Vp) logits block
                        h_out_ref, c_out_ref,          # (B, H) final state
                        h_scr, c_scr,                  # VMEM scratch (B, H): carried state
                        *, chunk, seq_len, mask_tail):
    s = pl.program_id(0)
    B, H = h0_ref.shape
    Vp = w_eih_ref.shape[0]

    # Load the recurrent state into scratch on the first chunk only.
    @pl.when(s == 0)
    def _init():
        h_scr[...] = h0_ref[...]
        c_scr[...] = c0_ref[...]

    # Weights live in VMEM for the whole grid (constant index maps); pull to vregs once.
    w_eih = w_eih_ref[...]
    w_hh = w_hh_ref[...]
    b_g = b_g_ref[...]
    w_fc = w_fc_ref[...]
    b_fc = b_fc_ref[...]

    row_iota = jax.lax.broadcasted_iota(jnp.int32, (B, Vp), 0)
    lane_iota = jax.lax.broadcasted_iota(jnp.int32, (B, Vp), 1)

    def step(j, carry):
        h, c = carry
        t = s * chunk + j

        # Build the (B, Vp) one-hot token matrix from SMEM scalars (B static selects).
        ids = jnp.zeros((B, Vp), jnp.int32)
        for b in range(B):
            ids = jnp.where(row_iota == b, tok_ref[t * B + b], ids)
        onehot = (lane_iota == ids).astype(jnp.float32)

        # Gates: embedding lookup + input projection fused into one MXU pass.
        # PyTorch gate order: i, f, g, o.
        gates = (jnp.dot(onehot, w_eih, preferred_element_type=jnp.float32)
                 + jnp.dot(h, w_hh, preferred_element_type=jnp.float32)
                 + b_g)                                  # (B, 4H) = one (8,128) vreg

        sig = jax.nn.sigmoid(gates)                      # full-width EUP
        tah = jnp.tanh(gates)
        i_g = sig[:, 0 * H:1 * H]
        f_g = sig[:, 1 * H:2 * H]
        g_g = tah[:, 2 * H:3 * H]
        o_g = sig[:, 3 * H:4 * H]

        c_new = f_g * c + i_g * g_g
        h_new = o_g * jnp.tanh(c_new)

        # Lane-dense (B, 128) logits store for this timestep.
        out_ref[j] = (jnp.dot(h_new, w_fc, preferred_element_type=jnp.float32)
                      + b_fc)

        if mask_tail:                                    # only traced when T was padded
            valid = t < seq_len
            h_new = jnp.where(valid, h_new, h)
            c_new = jnp.where(valid, c_new, c)
        return h_new, c_new

    h_fin, c_fin = jax.lax.fori_loop(0, chunk, step,
                                     (h_scr[...], c_scr[...]), unroll=True)
    h_scr[...] = h_fin
    c_scr[...] = c_fin

    # Write the final state once, at the last chunk.
    @pl.when(s == pl.num_programs(0) - 1)
    def _finalize():
        h_out_ref[...] = h_fin
        c_out_ref[...] = c_fin


def word_sampler_forward(tokens, h0, c0, params, *, chunk=8):
    """Run WordSampler over a whole token sequence in one fused kernel.

    tokens: (T, B) int32; h0, c0: (B, H) float32.
    Returns (logits (T, B, V), h_T (B, H), c_T (B, H)).
    """
    T, B = tokens.shape
    H = h0.shape[1]
    V = int(params["vocab_size"])
    Vp = int(params["vocab_padded"])

    chunk = max(1, min(int(chunk), T))
    num_chunks = pl.cdiv(T, chunk)
    T_pad = num_chunks * chunk

    tok = tokens.astype(jnp.int32)
    if T_pad != T:
        tok = jnp.concatenate([tok, jnp.zeros((T_pad - T, B), jnp.int32)], axis=0)
    tok_flat = tok.reshape(-1)

    const = lambda s, tok_ref: (0, 0)                    # weights resident: DMA'd once

    grid_spec = pltpu.PrefetchScalarGridSpec(
        num_scalar_prefetch=1,
        grid=(num_chunks,),
        in_specs=[
            pl.BlockSpec((B, H), const),                 # h0
            pl.BlockSpec((B, H), const),                 # c0
            pl.BlockSpec((Vp, 4 * H), const),            # emb @ W_ih^T (padded rows)
            pl.BlockSpec((H, 4 * H), const),             # W_hh^T
            pl.BlockSpec((1, 4 * H), const),             # b_ih + b_hh
            pl.BlockSpec((H, Vp), const),                # W_fc^T (padded cols)
            pl.BlockSpec((1, Vp), const),                # b_fc (padded)
        ],
        out_specs=(
            pl.BlockSpec((chunk, B, Vp), lambda s, tok_ref: (s, 0, 0)),
            pl.BlockSpec((B, H), const),
            pl.BlockSpec((B, H), const),
        ),
        scratch_shapes=[pltpu.VMEM((B, H), jnp.float32),
                        pltpu.VMEM((B, H), jnp.float32)],
    )

    kernel = functools.partial(word_sampler_kernel, chunk=chunk, seq_len=T,
                               mask_tail=(T_pad != T))

    logits_pad, h_n, c_n = pl.pallas_call(
        kernel,
        grid_spec=grid_spec,
        out_shape=(
            jax.ShapeDtypeStruct((T_pad, B, Vp), jnp.float32),
            jax.ShapeDtypeStruct((B, H), jnp.float32),
            jax.ShapeDtypeStruct((B, H), jnp.float32),
        ),
        compiler_params=pltpu.CompilerParams(
            dimension_semantics=("arbitrary",)),
    )(tok_flat, h0, c0,
      params["w_emb_ih"], params["w_hh_t"], params["b_gates"],
      params["w_fc_t"], params["b_fc_pad"])

    return logits_pad[:T, :, :V], h_n, c_n


def word_sampler_step(inp, h, c, params):
    """Single-step API matching the PyTorch module: forward(inp, h, c) -> (out, h, c)."""
    logits, h_n, c_n = word_sampler_forward(inp[None, :], h, c, params, chunk=1)
    return logits[0], h_n, c_n


def init_params(key, hidden_size, vocab_size=VOCAB_SIZE):
    """Deterministic synthetic parameters mirroring the PyTorch module shapes."""
    H, V = hidden_size, vocab_size
    Vp = ((V + 127) // 128) * 128                        # lane-dense padded vocab
    k_emb, k_wih, k_whh, k_bih, k_bhh, k_wfc, k_bfc = jax.random.split(key, 7)
    bound = 1.0 / (H ** 0.5)

    emb = jax.random.normal(k_emb, (V, H), jnp.float32)                    # Embedding(V, H)
    w_ih = jax.random.uniform(k_wih, (4 * H, H), jnp.float32, -bound, bound)
    w_hh = jax.random.uniform(k_whh, (4 * H, H), jnp.float32, -bound, bound)
    b_ih = jax.random.uniform(k_bih, (4 * H,), jnp.float32, -bound, bound)
    b_hh = jax.random.uniform(k_bhh, (4 * H,), jnp.float32, -bound, bound)
    w_fc = jax.random.uniform(k_wfc, (V, H), jnp.float32, -bound, bound)   # Linear(H, V)
    b_fc = jax.random.uniform(k_bfc, (V,), jnp.float32, -bound, bound)

    emb_pad = jnp.zeros((Vp, H), jnp.float32).at[:V].set(emb)

    return {
        # raw (PyTorch-layout) parameters, used by the pure-JAX reference
        "emb": emb, "w_ih": w_ih, "w_hh": w_hh, "b_ih": b_ih, "b_hh": b_hh,
        "w_fc": w_fc, "b_fc": b_fc,
        # fused / padded / transposed parameters consumed by the Pallas kernel
        "w_emb_ih": emb_pad @ w_ih.T,                                      # (Vp, 4H)
        "w_hh_t": w_hh.T,                                                  # (H, 4H)
        "b_gates": (b_ih + b_hh).reshape(1, 4 * H),                        # (1, 4H)
        "w_fc_t": jnp.zeros((H, Vp), jnp.float32).at[:, :V].set(w_fc.T),   # (H, Vp)
        "b_fc_pad": jnp.zeros((1, Vp), jnp.float32).at[:, :V].set(b_fc.reshape(1, V)),
        "vocab_size": V, "vocab_padded": Vp,
    }


def reference_forward(tokens, h, c, params):
    """Pure-JAX reference replicating PyTorch semantics step by step."""
    H = h.shape[1]
    outs = []
    for t in range(tokens.shape[0]):
        x = params["emb"][tokens[t]]
        gates = (x @ params["w_ih"].T + params["b_ih"]
                 + h @ params["w_hh"].T + params["b_hh"])
        i_g = jax.nn.sigmoid(gates[:, 0 * H:1 * H])
        f_g = jax.nn.sigmoid(gates[:, 1 * H:2 * H])
        g_g = jnp.tanh(gates[:, 2 * H:3 * H])
        o_g = jax.nn.sigmoid(gates[:, 3 * H:4 * H])
        c = f_g * c + i_g * g_g
        h = o_g * jnp.tanh(c)
        outs.append(h @ params["w_fc"].T + params["b_fc"])
    return jnp.stack(outs, axis=0), h, c


if __name__ == "__main__":
    BATCH, HIDDEN, SEQ = 8, 32, 16

    key = jax.random.PRNGKey(0)
    k_params, k_tok, k_h, k_c = jax.random.split(key, 4)

    params = init_params(k_params, HIDDEN)
    tokens = jax.random.randint(k_tok, (SEQ, BATCH), 0, VOCAB_SIZE, dtype=jnp.int32)
    h0 = jax.random.normal(k_h, (BATCH, HIDDEN), jnp.float32)
    c0 = jax.random.normal(k_c, (BATCH, HIDDEN), jnp.float32)

    # Fused multi-step kernel over the whole sequence.
    logits, h_n, c_n = word_sampler_forward(tokens, h0, c0, params, chunk=8)
    jax.block_until_ready((logits, h_n, c_n))

    ref_logits, ref_h, ref_c = reference_forward(tokens, h0, c0, params)
    assert jnp.allclose(logits, ref_logits, atol=1e-4, rtol=1e-4), "logits mismatch"
    assert jnp.allclose(h_n, ref_h, atol=1e-4, rtol=1e-4), "h mismatch"
    assert jnp.allclose(c_n, ref_c, atol=1e-4, rtol=1e-4), "c mismatch"

    # Single-step API identical to the PyTorch module's forward(inp, h, c).
    out1, h1, c1 = word_sampler_step(tokens[0], h0, c0, params)
    jax.block_until_ready((out1, h1, c1))
    ref1_out, ref1_h, ref1_c = reference_forward(tokens[:1], h0, c0, params)
    assert jnp.allclose(out1, ref1_out[0], atol=1e-4, rtol=1e-4), "step logits mismatch"
    assert jnp.allclose(h1, ref1_h, atol=1e-4, rtol=1e-4), "step h mismatch"
    assert jnp.allclose(c1, ref1_c, atol=1e-4, rtol=1e-4), "step c mismatch"

    print("KERNEL_OK")
</pallas_src>

<mosaic_0001>
module attributes {stable_mosaic.version = 11 : i64} {
  func.func @word_sampler_kernel(%arg0: i32, %arg1: memref<128xi32, #tpu.memory_space<smem>>, %arg2: memref<8x32xf32, #tpu.memory_space<vmem>>, %arg3: memref<8x32xf32, #tpu.memory_space<vmem>>, %arg4: memref<128x128xf32, #tpu.memory_space<vmem>>, %arg5: memref<32x128xf32, #tpu.memory_space<vmem>>, %arg6: memref<1x128xf32, #tpu.memory_space<vmem>>, %arg7: memref<32x128xf32, #tpu.memory_space<vmem>>, %arg8: memref<1x128xf32, #tpu.memory_space<vmem>>, %arg9: memref<8x8x128xf32, #tpu.memory_space<vmem>>, %arg10: memref<8x32xf32, #tpu.memory_space<vmem>>, %arg11: memref<8x32xf32, #tpu.memory_space<vmem>>, %arg12: memref<8x32xf32, #tpu.memory_space<vmem>>, %arg13: memref<8x32xf32, #tpu.memory_space<vmem>>) attributes {dimension_semantics = [#tpu.dimension_semantics<arbitrary>], iteration_bounds = array<i64: 2>, scalar_prefetch = 1 : i64, scratch_operands = 2 : i64, tpu.core_type = #tpu.core_type<tc>, window_params = [{pipeline_mode = #tpu.pipeline_mode<synchronous>, transform_indices = @transform_0, window_bounds = array<i64: 8, 32>}, {pipeline_mode = #tpu.pipeline_mode<synchronous>, transform_indices = @transform_1, window_bounds = array<i64: 8, 32>}, {pipeline_mode = #tpu.pipeline_mode<synchronous>, transform_indices = @transform_2, window_bounds = array<i64: 128, 128>}, {pipeline_mode = #tpu.pipeline_mode<synchronous>, transform_indices = @transform_3, window_bounds = array<i64: 32, 128>}, {pipeline_mode = #tpu.pipeline_mode<synchronous>, transform_indices = @transform_4, window_bounds = array<i64: 1, 128>}, {pipeline_mode = #tpu.pipeline_mode<synchronous>, transform_indices = @transform_5, window_bounds = array<i64: 32, 128>}, {pipeline_mode = #tpu.pipeline_mode<synchronous>, transform_indices = @transform_6, window_bounds = array<i64: 1, 128>}, {transform_indices = @transform_7, window_bounds = array<i64: 8, 8, 128>}, {pipeline_mode = #tpu.pipeline_mode<synchronous>, transform_indices = @transform_8, window_bounds = array<i64: 8, 32>}, {pipeline_mode = #tpu.pipeline_mode<synchronous>, transform_indices = @transform_9, window_bounds = array<i64: 8, 32>}]} {
    %c0_i32 = arith.constant 0 : i32
    %0 = arith.cmpi eq, %arg0, %c0_i32 : i32
    %1 = arith.extui %0 : i1 to i32
    %c0_i32_0 = arith.constant 0 : i32
    %2 = arith.cmpi ne, %1, %c0_i32_0 : i32
    scf.if %2 {
      %c0_276 = arith.constant 0 : index
      %c0_277 = arith.constant 0 : index
      %793 = vector.load %arg2[%c0_276, %c0_277] : memref<8x32xf32, #tpu.memory_space<vmem>>, vector<8x32xf32>
      %c0_278 = arith.constant 0 : index
      %c0_279 = arith.constant 0 : index
      %794 = vector.load %arg12[%c0_278, %c0_279] : memref<8x32xf32, #tpu.memory_space<vmem>>, vector<8x32xf32>
      tpu.vector_store %arg12[%c0_278, %c0_279], %793 {strides = array<i32>} : memref<8x32xf32, #tpu.memory_space<vmem>>, vector<8x32xf32>,
      %c0_280 = arith.constant 0 : index
      %c0_281 = arith.constant 0 : index
      %795 = vector.load %arg3[%c0_280, %c0_281] : memref<8x32xf32, #tpu.memory_space<vmem>>, vector<8x32xf32>
      %c0_282 = arith.constant 0 : index
      %c0_283 = arith.constant 0 : index
      %796 = vector.load %arg13[%c0_282, %c0_283] : memref<8x32xf32, #tpu.memory_space<vmem>>, vector<8x32xf32>
      tpu.vector_store %arg13[%c0_282, %c0_283], %795 {strides = array<i32>} : memref<8x32xf32, #tpu.memory_space<vmem>>, vector<8x32xf32>,
    } else {
    }
    %c0 = arith.constant 0 : index
    %c0_1 = arith.constant 0 : index
    %3 = vector.load %arg4[%c0, %c0_1] : memref<128x128xf32, #tpu.memory_space<vmem>>, vector<128x128xf32>
    %c0_2 = arith.constant 0 : index
    %c0_3 = arith.constant 0 : index
    %4 = vector.load %arg5[%c0_2, %c0_3] : memref<32x128xf32, #tpu.memory_space<vmem>>, vector<32x128xf32>
    %c0_4 = arith.constant 0 : index
    %c0_5 = arith.constant 0 : index
    %5 = vector.load %arg6[%c0_4, %c0_5] : memref<1x128xf32, #tpu.memory_space<vmem>>, vector<1x128xf32>
    %c0_6 = arith.constant 0 : index
    %c0_7 = arith.constant 0 : index
    %6 = vector.load %arg7[%c0_6, %c0_7] : memref<32x128xf32, #tpu.memory_space<vmem>>, vector<32x128xf32>
    %c0_8 = arith.constant 0 : index
    %c0_9 = arith.constant 0 : index
    %7 = vector.load %arg8[%c0_8, %c0_9] : memref<1x128xf32, #tpu.memory_space<vmem>>, vector<1x128xf32>
    %8 = tpu.iota {dimensions = array<i32: 0>} : vector<8x128xi32>
    %9 = tpu.iota {dimensions = array<i32: 1>} : vector<8x128xi32>
    %c0_10 = arith.constant 0 : index
    %c0_11 = arith.constant 0 : index
    %10 = vector.load %arg12[%c0_10, %c0_11] : memref<8x32xf32, #tpu.memory_space<vmem>>, vector<8x32xf32>
    %c0_12 = arith.constant 0 : index
    %c0_13 = arith.constant 0 : index
    %11 = vector.load %arg13[%c0_12, %c0_13] : memref<8x32xf32, #tpu.memory_space<vmem>>, vector<8x32xf32>
    %c0_i32_14 = arith.constant 0 : i32
    %c8_i32 = arith.constant 8 : i32
    %12 = arith.muli %arg0, %c8_i32 : i32
    %13 = arith.addi %12, %c0_i32_14 : i32
    %c0_i32_15 = arith.constant 0 : i32
    %14 = vector.broadcast %c0_i32_15 : i32 to vector<8x128xi32>
    %c0_i32_16 = arith.constant 0 : i32
    %15 = vector.broadcast %c0_i32_16 : i32 to vector<8x128xi32>
    %16 = arith.cmpi eq, %8, %15 : vector<8x128xi32>
    %c8_i32_17 = arith.constant 8 : i32
    %17 = arith.muli %13, %c8_i32_17 : i32
    %c0_i32_18 = arith.constant 0 : i32
    %18 = arith.addi %17, %c0_i32_18 : i32
    %19 = arith.index_cast %18 : i32 to index
    %20 = memref.load %arg1[%19] : memref<128xi32, #tpu.memory_space<smem>>
    %21 = vector.broadcast %20 : i32 to vector<8x128xi32>
    %22 = arith.select %16, %21, %14 : vector<8x128xi1>, vector<8x128xi32>
    %c1_i32 = arith.constant 1 : i32
    %23 = vector.broadcast %c1_i32 : i32 to vector<8x128xi32>
    %24 = arith.cmpi eq, %8, %23 : vector<8x128xi32>
    %c8_i32_19 = arith.constant 8 : i32
    %25 = arith.muli %13, %c8_i32_19 : i32
    %c1_i32_20 = arith.constant 1 : i32
    %26 = arith.addi %25, %c1_i32_20 : i32
    %27 = arith.index_cast %26 : i32 to index
    %28 = memref.load %arg1[%27] : memref<128xi32, #tpu.memory_space<smem>>
    %29 = vector.broadcast %28 : i32 to vector<8x128xi32>
    %30 = arith.select %24, %29, %22 : vector<8x128xi1>, vector<8x128xi32>
    %c2_i32 = arith.constant 2 : i32
    %31 = vector.broadcast %c2_i32 : i32 to vector<8x128xi32>
    %32 = arith.cmpi eq, %8, %31 : vector<8x128xi32>
    %c8_i32_21 = arith.constant 8 : i32
    %33 = arith.muli %13, %c8_i32_21 : i32
    %c2_i32_22 = arith.constant 2 : i32
    %34 = arith.addi %33, %c2_i32_22 : i32
    %35 = arith.index_cast %34 : i32 to index
    %36 = memref.load %arg1[%35] : memref<128xi32, #tpu.memory_space<smem>>
    %37 = vector.broadcast %36 : i32 to vector<8x128xi32>
    %38 = arith.select %32, %37, %30 : vector<8x128xi1>, vector<8x128xi32>
    %c3_i32 = arith.constant 3 : i32
    %39 = vector.broadcast %c3_i32 : i32 to vector<8x128xi32>
    %40 = arith.cmpi eq, %8, %39 : vector<8x128xi32>
    %c8_i32_23 = arith.constant 8 : i32
    %41 = arith.muli %13, %c8_i32_23 : i32
    %c3_i32_24 = arith.constant 3 : i32
    %42 = arith.addi %41, %c3_i32_24 : i32
    %43 = arith.index_cast %42 : i32 to index
    %44 = memref.load %arg1[%43] : memref<128xi32, #tpu.memory_space<smem>>
    %45 = vector.broadcast %44 : i32 to vector<8x128xi32>
    %46 = arith.select %40, %45, %38 : vector<8x128xi1>, vector<8x128xi32>
    %c4_i32 = arith.constant 4 : i32
    %47 = vector.broadcast %c4_i32 : i32 to vector<8x128xi32>
    %48 = arith.cmpi eq, %8, %47 : vector<8x128xi32>
    %c8_i32_25 = arith.constant 8 : i32
    %49 = arith.muli %13, %c8_i32_25 : i32
    %c4_i32_26 = arith.constant 4 : i32
    %50 = arith.addi %49, %c4_i32_26 : i32
    %51 = arith.index_cast %50 : i32 to index
    %52 = memref.load %arg1[%51] : memref<128xi32, #tpu.memory_space<smem>>
    %53 = vector.broadcast %52 : i32 to vector<8x128xi32>
    %54 = arith.select %48, %53, %46 : vector<8x128xi1>, vector<8x128xi32>
    %c5_i32 = arith.constant 5 : i32
    %55 = vector.broadcast %c5_i32 : i32 to vector<8x128xi32>
    %56 = arith.cmpi eq, %8, %55 : vector<8x128xi32>
    %c8_i32_27 = arith.constant 8 : i32
    %57 = arith.muli %13, %c8_i32_27 : i32
    %c5_i32_28 = arith.constant 5 : i32
    %58 = arith.addi %57, %c5_i32_28 : i32
    %59 = arith.index_cast %58 : i32 to index
    %60 = memref.load %arg1[%59] : memref<128xi32, #tpu.memory_space<smem>>
    %61 = vector.broadcast %60 : i32 to vector<8x128xi32>
    %62 = arith.select %56, %61, %54 : vector<8x128xi1>, vector<8x128xi32>
    %c6_i32 = arith.constant 6 : i32
    %63 = vector.broadcast %c6_i32 : i32 to vector<8x128xi32>
    %64 = arith.cmpi eq, %8, %63 : vector<8x128xi32>
    %c8_i32_29 = arith.constant 8 : i32
    %65 = arith.muli %13, %c8_i32_29 : i32
    %c6_i32_30 = arith.constant 6 : i32
    %66 = arith.addi %65, %c6_i32_30 : i32
    %67 = arith.index_cast %66 : i32 to index
    %68 = memref.load %arg1[%67] : memref<128xi32, #tpu.memory_space<smem>>
    %69 = vector.broadcast %68 : i32 to vector<8x128xi32>
    %70 = arith.select %64, %69, %62 : vector<8x128xi1>, vector<8x128xi32>
    %c7_i32 = arith.constant 7 : i32
    %71 = vector.broadcast %c7_i32 : i32 to vector<8x128xi32>
    %72 = arith.cmpi eq, %8, %71 : vector<8x128xi32>
    %c8_i32_31 = arith.constant 8 : i32
    %73 = arith.muli %13, %c8_i32_31 : i32
    %c7_i32_32 = arith.constant 7 : i32
    %74 = arith.addi %73, %c7_i32_32 : i32
    %75 = arith.index_cast %74 : i32 to index
    %76 = memref.load %arg1[%75] : memref<128xi32, #tpu.memory_space<smem>>
    %77 = vector.broadcast %76 : i32 to vector<8x128xi32>
    %78 = arith.select %72, %77, %70 : vector<8x128xi1>, vector<8x128xi32>
    %79 = arith.cmpi eq, %9, %78 : vector<8x128xi32>
    %80 = arith.extui %79 : vector<8x128xi1> to vector<8x128xi32>
    %81 = arith.sitofp %80 : vector<8x128xi32> to vector<8x128xf32>
    %cst = arith.constant dense<0.000000e+00> : vector<8x128xf32>
    %82 = tpu.matmul %81, %3, %cst {dimension_numbers = #tpu.dot_dimension_numbers<[1], [0], [0], [1], [0, 0, 1, 1], [], []>} : vector<8x128xf32>, vector<128x128xf32>, vector<8x128xf32> -> vector<8x128xf32>
    %cst_33 = arith.constant dense<0.000000e+00> : vector<8x128xf32>
    %83 = tpu.matmul %10, %4, %cst_33 {dimension_numbers = #tpu.dot_dimension_numbers<[1], [0], [0], [1], [0, 0, 1, 1], [], []>} : vector<8x32xf32>, vector<32x128xf32>, vector<8x128xf32> -> vector<8x128xf32>
    %84 = arith.addf %82, %83 : vector<8x128xf32>
    %85 = vector.broadcast %5 : vector<1x128xf32> to vector<8x128xf32>
    %86 = arith.addf %84, %85 : vector<8x128xf32>
    %87 = arith.negf %86 : vector<8x128xf32>
    %88 = math.exp %87 : vector<8x128xf32>
    %cst_34 = arith.constant 1.000000e+00 : f32
    %89 = vector.broadcast %cst_34 : f32 to vector<8x128xf32>
    %90 = arith.addf %89, %88 : vector<8x128xf32>
    %91 = arith.divf %89, %90 : vector<8x128xf32>
    %92 = math.tanh %86 : vector<8x128xf32>
    %93 = vector.extract_strided_slice %91 {offsets = [0, 0], sizes = [8, 32], strides = [1, 1]} : vector<8x128xf32> to vector<8x32xf32>
    %94 = vector.extract_strided_slice %91 {offsets = [0, 32], sizes = [8, 32], strides = [1, 1]} : vector<8x128xf32> to vector<8x32xf32>
    %95 = vector.extract_strided_slice %92 {offsets = [0, 64], sizes = [8, 32], strides = [1, 1]} : vector<8x128xf32> to vector<8x32xf32>
    %96 = vector.extract_strided_slice %91 {offsets = [0, 96], sizes = [8, 32], strides = [1, 1]} : vector<8x128xf32> to vector<8x32xf32>
    %97 = arith.mulf %94, %11 : vector<8x32xf32>
    %98 = arith.mulf %93, %95 : vector<8x32xf32>
    %99 = arith.addf %97, %98 : vector<8x32xf32>
    %100 = math.tanh %99 : vector<8x32xf32>
    %101 = arith.mulf %96, %100 : vector<8x32xf32>
    %cst_35 = arith.constant dense<0.000000e+00> : vector<8x128xf32>
    %102 = tpu.matmul %101, %6, %cst_35 {dimension_numbers = #tpu.dot_dimension_numbers<[1], [0], [0], [1], [0, 0, 1, 1], [], []>} : vector<8x32xf32>, vector<32x128xf32>, vector<8x128xf32> -> vector<8x128xf32>
    %103 = vector.broadcast %7 : vector<1x128xf32> to vector<8x128xf32>
    %104 = arith.addf %102, %103 : vector<8x128xf32>
    %105 = arith.index_cast %c0_i32_14 : i32 to index
    %c0_36 = arith.constant 0 : index
    %c0_37 = arith.constant 0 : index
    %106 = vector.load %arg9[%105, %c0_36, %c0_37] : memref<8x8x128xf32, #tpu.memory_space<vmem>>, vector<1x8x128xf32>
    %107 = vector.shape_cast %106 : vector<1x8x128xf32> to vector<8x128xf32>
    %108 = vector.shape_cast %104 : vector<8x128xf32> to vector<1x8x128xf32>
    tpu.vector_store %arg9[%105, %c0_36, %c0_37], %108 {strides = array<i32>} : memref<8x8x128xf32, #tpu.memory_space<vmem>>, vector<1x8x128xf32>,
    %c1_i32_38 = arith.constant 1 : i32
    %c8_i32_39 = arith.constant 8 : i32
    %109 = arith.muli %arg0, %c8_i32_39 : i32
    %110 = arith.addi %109, %c1_i32_38 : i32
    %c0_i32_40 = arith.constant 0 : i32
    %111 = vector.broadcast %c0_i32_40 : i32 to vector<8x128xi32>
    %c0_i32_41 = arith.constant 0 : i32
    %112 = vector.broadcast %c0_i32_41 : i32 to vector<8x128xi32>
    %113 = arith.cmpi eq, %8, %112 : vector<8x128xi32>
    %c8_i32_42 = arith.constant 8 : i32
    %114 = arith.muli %110, %c8_i32_42 : i32
    %c0_i32_43 = arith.constant 0 : i32
    %115 = arith.addi %114, %c0_i32_43 : i32
    %116 = arith.index_cast %115 : i32 to index
    %117 = memref.load %arg1[%116] : memref<128xi32, #tpu.memory_space<smem>>
    %118 = vector.broadcast %117 : i32 to vector<8x128xi32>
    %119 = arith.select %113, %118, %111 : vector<8x128xi1>, vector<8x128xi32>
    %c1_i32_44 = arith.constant 1 : i32
    %120 = vector.broadcast %c1_i32_44 : i32 to vector<8x128xi32>
    %121 = arith.cmpi eq, %8, %120 : vector<8x128xi32>
    %c8_i32_45 = arith.constant 8 : i32
    %122 = arith.muli %110, %c8_i32_45 : i32
    %c1_i32_46 = arith.constant 1 : i32
    %123 = arith.addi %122, %c1_i32_46 : i32
    %124 = arith.index_cast %123 : i32 to index
    %125 = memref.load %arg1[%124] : memref<128xi32, #tpu.memory_space<smem>>
    %126 = vector.broadcast %125 : i32 to vector<8x128xi32>
    %127 = arith.select %121, %126, %119 : vector<8x128xi1>, vector<8x128xi32>
    %c2_i32_47 = arith.constant 2 : i32
    %128 = vector.broadcast %c2_i32_47 : i32 to vector<8x128xi32>
    %129 = arith.cmpi eq, %8, %128 : vector<8x128xi32>
    %c8_i32_48 = arith.constant 8 : i32
    %130 = arith.muli %110, %c8_i32_48 : i32
    %c2_i32_49 = arith.constant 2 : i32
    %131 = arith.addi %130, %c2_i32_49 : i32
    %132 = arith.index_cast %131 : i32 to index
    %133 = memref.load %arg1[%132] : memref<128xi32, #tpu.memory_space<smem>>
    %134 = vector.broadcast %133 : i32 to vector<8x128xi32>
    %135 = arith.select %129, %134, %127 : vector<8x128xi1>, vector<8x128xi32>
    %c3_i32_50 = arith.constant 3 : i32
    %136 = vector.broadcast %c3_i32_50 : i32 to vector<8x128xi32>
    %137 = arith.cmpi eq, %8, %136 : vector<8x128xi32>
    %c8_i32_51 = arith.constant 8 : i32
    %138 = arith.muli %110, %c8_i32_51 : i32
    %c3_i32_52 = arith.constant 3 : i32
    %139 = arith.addi %138, %c3_i32_52 : i32
    %140 = arith.index_cast %139 : i32 to index
    %141 = memref.load %arg1[%140] : memref<128xi32, #tpu.memory_space<smem>>
    %142 = vector.broadcast %141 : i32 to vector<8x128xi32>
    %143 = arith.select %137, %142, %135 : vector<8x128xi1>, vector<8x128xi32>
    %c4_i32_53 = arith.constant 4 : i32
    %144 = vector.broadcast %c4_i32_53 : i32 to vector<8x128xi32>
    %145 = arith.cmpi eq, %8, %144 : vector<8x128xi32>
    %c8_i32_54 = arith.constant 8 : i32
    %146 = arith.muli %110, %c8_i32_54 : i32
    %c4_i32_55 = arith.constant 4 : i32
    %147 = arith.addi %146, %c4_i32_55 : i32
    %148 = arith.index_cast %147 : i32 to index
    %149 = memref.load %arg1[%148] : memref<128xi32, #tpu.memory_space<smem>>
    %150 = vector.broadcast %149 : i32 to vector<8x128xi32>
    %151 = arith.select %145, %150, %143 : vector<8x128xi1>, vector<8x128xi32>
    %c5_i32_56 = arith.constant 5 : i32
    %152 = vector.broadcast %c5_i32_56 : i32 to vector<8x128xi32>
    %153 = arith.cmpi eq, %8, %152 : vector<8x128xi32>
    %c8_i32_57 = arith.constant 8 : i32
    %154 = arith.muli %110, %c8_i32_57 : i32
    %c5_i32_58 = arith.constant 5 : i32
    %155 = arith.addi %154, %c5_i32_58 : i32
    %156 = arith.index_cast %155 : i32 to index
    %157 = memref.load %arg1[%156] : memref<128xi32, #tpu.memory_space<smem>>
    %158 = vector.broadcast %157 : i32 to vector<8x128xi32>
    %159 = arith.select %153, %158, %151 : vector<8x128xi1>, vector<8x128xi32>
    %c6_i32_59 = arith.constant 6 : i32
    %160 = vector.broadcast %c6_i32_59 : i32 to vector<8x128xi32>
    %161 = arith.cmpi eq, %8, %160 : vector<8x128xi32>
    %c8_i32_60 = arith.constant 8 : i32
    %162 = arith.muli %110, %c8_i32_60 : i32
    %c6_i32_61 = arith.constant 6 : i32
    %163 = arith.addi %162, %c6_i32_61 : i32
    %164 = arith.index_cast %163 : i32 to index
    %165 = memref.load %arg1[%164] : memref<128xi32, #tpu.memory_space<smem>>
    %166 = vector.broadcast %165 : i32 to vector<8x128xi32>
    %167 = arith.select %161, %166, %159 : vector<8x128xi1>, vector<8x128xi32>
    %c7_i32_62 = arith.constant 7 : i32
    %168 = vector.broadcast %c7_i32_62 : i32 to vector<8x128xi32>
    %169 = arith.cmpi eq, %8, %168 : vector<8x128xi32>
    %c8_i32_63 = arith.constant 8 : i32
    %170 = arith.muli %110, %c8_i32_63 : i32
    %c7_i32_64 = arith.constant 7 : i32
    %171 = arith.addi %170, %c7_i32_64 : i32
    %172 = arith.index_cast %171 : i32 to index
    %173 = memref.load %arg1[%172] : memref<128xi32, #tpu.memory_space<smem>>
    %174 = vector.broadcast %173 : i32 to vector<8x128xi32>
    %175 = arith.select %169, %174, %167 : vector<8x128xi1>, vector<8x128xi32>
    %176 = arith.cmpi eq, %9, %175 : vector<8x128xi32>
    %177 = arith.extui %176 : vector<8x128xi1> to vector<8x128xi32>
    %178 = arith.sitofp %177 : vector<8x128xi32> to vector<8x128xf32>
    %cst_65 = arith.constant dense<0.000000e+00> : vector<8x128xf32>
    %179 = tpu.matmul %178, %3, %cst_65 {dimension_numbers = #tpu.dot_dimension_numbers<[1], [0], [0], [1], [0, 0, 1, 1], [], []>} : vector<8x128xf32>, vector<128x128xf32>, vector<8x128xf32> -> vector<8x128xf32>
    %cst_66 = arith.constant dense<0.000000e+00> : vector<8x128xf32>
    %180 = tpu.matmul %101, %4, %cst_66 {dimension_numbers = #tpu.dot_dimension_numbers<[1], [0], [0], [1], [0, 0, 1, 1], [], []>} : vector<8x32xf32>, vector<32x128xf32>, vector<8x128xf32> -> vector<8x128xf32>
    %181 = arith.addf %179, %180 : vector<8x128xf32>
    %182 = vector.broadcast %5 : vector<1x128xf32> to vector<8x128xf32>
    %183 = arith.addf %181, %182 : vector<8x128xf32>
    %184 = arith.negf %183 : vector<8x128xf32>
    %185 = math.exp %184 : vector<8x128xf32>
    %cst_67 = arith.constant 1.000000e+00 : f32
    %186 = vector.broadcast %cst_67 : f32 to vector<8x128xf32>
    %187 = arith.addf %186, %185 : vector<8x128xf32>
    %188 = arith.divf %186, %187 : vector<8x128xf32>
    %189 = math.tanh %183 : vector<8x128xf32>
    %190 = vector.extract_strided_slice %188 {offsets = [0, 0], sizes = [8, 32], strides = [1, 1]} : vector<8x128xf32> to vector<8x32xf32>
    %191 = vector.extract_strided_slice %188 {offsets = [0, 32], sizes = [8, 32], strides = [1, 1]} : vector<8x128xf32> to vector<8x32xf32>
    %192 = vector.extract_strided_slice %189 {offsets = [0, 64], sizes = [8, 32], strides = [1, 1]} : vector<8x128xf32> to vector<8x32xf32>
    %193 = vector.extract_strided_slice %188 {offsets = [0, 96], sizes = [8, 32], strides = [1, 1]} : vector<8x128xf32> to vector<8x32xf32>
    %194 = arith.mulf %191, %99 : vector<8x32xf32>
    %195 = arith.mulf %190, %192 : vector<8x32xf32>
    %196 = arith.addf %194, %195 : vector<8x32xf32>
    %197 = math.tanh %196 : vector<8x32xf32>
    %198 = arith.mulf %193, %197 : vector<8x32xf32>
    %cst_68 = arith.constant dense<0.000000e+00> : vector<8x128xf32>
    %199 = tpu.matmul %198, %6, %cst_68 {dimension_numbers = #tpu.dot_dimension_numbers<[1], [0], [0], [1], [0, 0, 1, 1], [], []>} : vector<8x32xf32>, vector<32x128xf32>, vector<8x128xf32> -> vector<8x128xf32>
    %200 = vector.broadcast %7 : vector<1x128xf32> to vector<8x128xf32>
    %201 = arith.addf %199, %200 : vector<8x128xf32>
    %202 = arith.index_cast %c1_i32_38 : i32 to index
    %c0_69 = arith.constant 0 : index
    %c0_70 = arith.constant 0 : index
    %203 = vector.load %arg9[%202, %c0_69, %c0_70] : memref<8x8x128xf32, #tpu.memory_space<vmem>>, vector<1x8x128xf32>
    %204 = vector.shape_cast %203 : vector<1x8x128xf32> to vector<8x128xf32>
    %205 = vector.shape_cast %201 : vector<8x128xf32> to vector<1x8x128xf32>
    tpu.vector_store %arg9[%202, %c0_69, %c0_70], %205 {strides = array<i32>} : memref<8x8x128xf32, #tpu.memory_space<vmem>>, vector<1x8x128xf32>,
    %c2_i32_71 = arith.constant 2 : i32
    %c8_i32_72 = arith.constant 8 : i32
    %206 = arith.muli %arg0, %c8_i32_72 : i32
    %207 = arith.addi %206, %c2_i32_71 : i32
    %c0_i32_73 = arith.constant 0 : i32
    %208 = vector.broadcast %c0_i32_73 : i32 to vector<8x128xi32>
    %c0_i32_74 = arith.constant 0 : i32
    %209 = vector.broadcast %c0_i32_74 : i32 to vector<8x128xi32>
    %210 = arith.cmpi eq, %8, %209 : vector<8x128xi32>
    %c8_i32_75 = arith.constant 8 : i32
    %211 = arith.muli %207, %c8_i32_75 : i32
    %c0_i32_76 = arith.constant 0 : i32
    %212 = arith.addi %211, %c0_i32_76 : i32
    %213 = arith.index_cast %212 : i32 to index
    %214 = memref.load %arg1[%213] : memref<128xi32, #tpu.memory_space<smem>>
    %215 = vector.broadcast %214 : i32 to vector<8x128xi32>
    %216 = arith.select %210, %215, %208 : vector<8x128xi1>, vector<8x128xi32>
    %c1_i32_77 = arith.constant 1 : i32
    %217 = vector.broadcast %c1_i32_77 : i32 to vector<8x128xi32>
    %218 = arith.cmpi eq, %8, %217 : vector<8x128xi32>
    %c8_i32_78 = arith.constant 8 : i32
    %219 = arith.muli %207, %c8_i32_78 : i32
    %c1_i32_79 = arith.constant 1 : i32
    %220 = arith.addi %219, %c1_i32_79 : i32
    %221 = arith.index_cast %220 : i32 to index
    %222 = memref.load %arg1[%221] : memref<128xi32, #tpu.memory_space<smem>>
    %223 = vector.broadcast %222 : i32 to vector<8x128xi32>
    %224 = arith.select %218, %223, %216 : vector<8x128xi1>, vector<8x128xi32>
    %c2_i32_80 = arith.constant 2 : i32
    %225 = vector.broadcast %c2_i32_80 : i32 to vector<8x128xi32>
    %226 = arith.cmpi eq, %8, %225 : vector<8x128xi32>
    %c8_i32_81 = arith.constant 8 : i32
    %227 = arith.muli %207, %c8_i32_81 : i32
    %c2_i32_82 = arith.constant 2 : i32
    %228 = arith.addi %227, %c2_i32_82 : i32
    %229 = arith.index_cast %228 : i32 to index
    %230 = memref.load %arg1[%229] : memref<128xi32, #tpu.memory_space<smem>>
    %231 = vector.broadcast %230 : i32 to vector<8x128xi32>
    %232 = arith.select %226, %231, %224 : vector<8x128xi1>, vector<8x128xi32>
    %c3_i32_83 = arith.constant 3 : i32
    %233 = vector.broadcast %c3_i32_83 : i32 to vector<8x128xi32>
    %234 = arith.cmpi eq, %8, %233 : vector<8x128xi32>
    %c8_i32_84 = arith.constant 8 : i32
    %235 = arith.muli %207, %c8_i32_84 : i32
    %c3_i32_85 = arith.constant 3 : i32
    %236 = arith.addi %235, %c3_i32_85 : i32
    %237 = arith.index_cast %236 : i32 to index
    %238 = memref.load %arg1[%237] : memref<128xi32, #tpu.memory_space<smem>>
    %239 = vector.broadcast %238 : i32 to vector<8x128xi32>
    %240 = arith.select %234, %239, %232 : vector<8x128xi1>, vector<8x128xi32>
    %c4_i32_86 = arith.constant 4 : i32
    %241 = vector.broadcast %c4_i32_86 : i32 to vector<8x128xi32>
    %242 = arith.cmpi eq, %8, %241 : vector<8x128xi32>
    %c8_i32_87 = arith.constant 8 : i32
    %243 = arith.muli %207, %c8_i32_87 : i32
    %c4_i32_88 = arith.constant 4 : i32
    %244 = arith.addi %243, %c4_i32_88 : i32
    %245 = arith.index_cast %244 : i32 to index
    %246 = memref.load %arg1[%245] : memref<128xi32, #tpu.memory_space<smem>>
    %247 = vector.broadcast %246 : i32 to vector<8x128xi32>
    %248 = arith.select %242, %247, %240 : vector<8x128xi1>, vector<8x128xi32>
    %c5_i32_89 = arith.constant 5 : i32
    %249 = vector.broadcast %c5_i32_89 : i32 to vector<8x128xi32>
    %250 = arith.cmpi eq, %8, %249 : vector<8x128xi32>
    %c8_i32_90 = arith.constant 8 : i32
    %251 = arith.muli %207, %c8_i32_90 : i32
    %c5_i32_91 = arith.constant 5 : i32
    %252 = arith.addi %251, %c5_i32_91 : i32
    %253 = arith.index_cast %252 : i32 to index
    %254 = memref.load %arg1[%253] : memref<128xi32, #tpu.memory_space<smem>>
    %255 = vector.broadcast %254 : i32 to vector<8x128xi32>
    %256 = arith.select %250, %255, %248 : vector<8x128xi1>, vector<8x128xi32>
    %c6_i32_92 = arith.constant 6 : i32
    %257 = vector.broadcast %c6_i32_92 : i32 to vector<8x128xi32>
    %258 = arith.cmpi eq, %8, %257 : vector<8x128xi32>
    %c8_i32_93 = arith.constant 8 : i32
    %259 = arith.muli %207, %c8_i32_93 : i32
    %c6_i32_94 = arith.constant 6 : i32
    %260 = arith.addi %259, %c6_i32_94 : i32
    %261 = arith.index_cast %260 : i32 to index
    %262 = memref.load %arg1[%261] : memref<128xi32, #tpu.memory_space<smem>>
    %263 = vector.broadcast %262 : i32 to vector<8x128xi32>
    %264 = arith.select %258, %263, %256 : vector<8x128xi1>, vector<8x128xi32>
    %c7_i32_95 = arith.constant 7 : i32
    %265 = vector.broadcast %c7_i32_95 : i32 to vector<8x128xi32>
    %266 = arith.cmpi eq, %8, %265 : vector<8x128xi32>
    %c8_i32_96 = arith.constant 8 : i32
    %267 = arith.muli %207, %c8_i32_96 : i32
    %c7_i32_97 = arith.constant 7 : i32
    %268 = arith.addi %267, %c7_i32_97 : i32
    %269 = arith.index_cast %268 : i32 to index
    %270 = memref.load %arg1[%269] : memref<128xi32, #tpu.memory_space<smem>>
    %271 = vector.broadcast %270 : i32 to vector<8x128xi32>
    %272 = arith.select %266, %271, %264 : vector<8x128xi1>, vector<8x128xi32>
    %273 = arith.cmpi eq, %9, %272 : vector<8x128xi32>
    %274 = arith.extui %273 : vector<8x128xi1> to vector<8x128xi32>
    %275 = arith.sitofp %274 : vector<8x128xi32> to vector<8x128xf32>
    %cst_98 = arith.constant dense<0.000000e+00> : vector<8x128xf32>
    %276 = tpu.matmul %275, %3, %cst_98 {dimension_numbers = #tpu.dot_dimension_numbers<[1], [0], [0], [1], [0, 0, 1, 1], [], []>} : vector<8x128xf32>, vector<128x128xf32>, vector<8x128xf32> -> vector<8x128xf32>
    %cst_99 = arith.constant dense<0.000000e+00> : vector<8x128xf32>
    %277 = tpu.matmul %198, %4, %cst_99 {dimension_numbers = #tpu.dot_dimension_numbers<[1], [0], [0], [1], [0, 0, 1, 1], [], []>} : vector<8x32xf32>, vector<32x128xf32>, vector<8x128xf32> -> vector<8x128xf32>
    %278 = arith.addf %276, %277 : vector<8x128xf32>
    %279 = vector.broadcast %5 : vector<1x128xf32> to vector<8x128xf32>
    %280 = arith.addf %278, %279 : vector<8x128xf32>
    %281 = arith.negf %280 : vector<8x128xf32>
    %282 = math.exp %281 : vector<8x128xf32>
    %cst_100 = arith.constant 1.000000e+00 : f32
    %283 = vector.broadcast %cst_100 : f32 to vector<8x128xf32>
    %284 = arith.addf %283, %282 : vector<8x128xf32>
    %285 = arith.divf %283, %284 : vector<8x128xf32>
    %286 = math.tanh %280 : vector<8x128xf32>
    %287 = vector.extract_strided_slice %285 {offsets = [0, 0], sizes = [8, 32], strides = [1, 1]} : vector<8x128xf32> to vector<8x32xf32>
    %288 = vector.extract_strided_slice %285 {offsets = [0, 32], sizes = [8, 32], strides = [1, 1]} : vector<8x128xf32> to vector<8x32xf32>
    %289 = vector.extract_strided_slice %286 {offsets = [0, 64], sizes = [8, 32], strides = [1, 1]} : vector<8x128xf32> to vector<8x32xf32>
    %290 = vector.extract_strided_slice %285 {offsets = [0, 96], sizes = [8, 32], strides = [1, 1]} : vector<8x128xf32> to vector<8x32xf32>
    %291 = arith.mulf %288, %196 : vector<8x32xf32>
    %292 = arith.mulf %287, %289 : vector<8x32xf32>
    %293 = arith.addf %291, %292 : vector<8x32xf32>
    %294 = math.tanh %293 : vector<8x32xf32>
    %295 = arith.mulf %290, %294 : vector<8x32xf32>
    %cst_101 = arith.constant dense<0.000000e+00> : vector<8x128xf32>
    %296 = tpu.matmul %295, %6, %cst_101 {dimension_numbers = #tpu.dot_dimension_numbers<[1], [0], [0], [1], [0, 0, 1, 1], [], []>} : vector<8x32xf32>, vector<32x128xf32>, vector<8x128xf32> -> vector<8x128xf32>
    %297 = vector.broadcast %7 : vector<1x128xf32> to vector<8x128xf32>
    %298 = arith.addf %296, %297 : vector<8x128xf32>
    %299 = arith.index_cast %c2_i32_71 : i32 to index
    %c0_102 = arith.constant 0 : index
    %c0_103 = arith.constant 0 : index
    %300 = vector.load %arg9[%299, %c0_102, %c0_103] : memref<8x8x128xf32, #tpu.memory_space<vmem>>, vector<1x8x128xf32>
    %301 = vector.shape_cast %300 : vector<1x8x128xf32> to vector<8x128xf32>
    %302 = vector.shape_cast %298 : vector<8x128xf32> to vector<1x8x128xf32>
    tpu.vector_store %arg9[%299, %c0_102, %c0_103], %302 {strides = array<i32>} : memref<8x8x128xf32, #tpu.memory_space<vmem>>, vector<1x8x128xf32>,
    %c3_i32_104 = arith.constant 3 : i32
    %c8_i32_105 = arith.constant 8 : i32
    %303 = arith.muli %arg0, %c8_i32_105 : i32
    %304 = arith.addi %303, %c3_i32_104 : i32
    %c0_i32_106 = arith.constant 0 : i32
    %305 = vector.broadcast %c0_i32_106 : i32 to vector<8x128xi32>
    %c0_i32_107 = arith.constant 0 : i32
    %306 = vector.broadcast %c0_i32_107 : i32 to vector<8x128xi32>
    %307 = arith.cmpi eq, %8, %306 : vector<8x128xi32>
    %c8_i32_108 = arith.constant 8 : i32
    %308 = arith.muli %304, %c8_i32_108 : i32
    %c0_i32_109 = arith.constant 0 : i32
    %309 = arith.addi %308, %c0_i32_109 : i32
    %310 = arith.index_cast %309 : i32 to index
    %311 = memref.load %arg1[%310] : memref<128xi32, #tpu.memory_space<smem>>
    %312 = vector.broadcast %311 : i32 to vector<8x128xi32>
    %313 = arith.select %307, %312, %305 : vector<8x128xi1>, vector<8x128xi32>
    %c1_i32_110 = arith.constant 1 : i32
    %314 = vector.broadcast %c1_i32_110 : i32 to vector<8x128xi32>
    %315 = arith.cmpi eq, %8, %314 : vector<8x128xi32>
    %c8_i32_111 = arith.constant 8 : i32
    %316 = arith.muli %304, %c8_i32_111 : i32
    %c1_i32_112 = arith.constant 1 : i32
    %317 = arith.addi %316, %c1_i32_112 : i32
    %318 = arith.index_cast %317 : i32 to index
    %319 = memref.load %arg1[%318] : memref<128xi32, #tpu.memory_space<smem>>
    %320 = vector.broadcast %319 : i32 to vector<8x128xi32>
    %321 = arith.select %315, %320, %313 : vector<8x128xi1>, vector<8x128xi32>
    %c2_i32_113 = arith.constant 2 : i32
    %322 = vector.broadcast %c2_i32_113 : i32 to vector<8x128xi32>
    %323 = arith.cmpi eq, %8, %322 : vector<8x128xi32>
    %c8_i32_114 = arith.constant 8 : i32
    %324 = arith.muli %304, %c8_i32_114 : i32
    %c2_i32_115 = arith.constant 2 : i32
    %325 = arith.addi %324, %c2_i32_115 : i32
    %326 = arith.index_cast %325 : i32 to index
    %327 = memref.load %arg1[%326] : memref<128xi32, #tpu.memory_space<smem>>
    %328 = vector.broadcast %327 : i32 to vector<8x128xi32>
    %329 = arith.select %323, %328, %321 : vector<8x128xi1>, vector<8x128xi32>
    %c3_i32_116 = arith.constant 3 : i32
    %330 = vector.broadcast %c3_i32_116 : i32 to vector<8x128xi32>
    %331 = arith.cmpi eq, %8, %330 : vector<8x128xi32>
    %c8_i32_117 = arith.constant 8 : i32
    %332 = arith.muli %304, %c8_i32_117 : i32
    %c3_i32_118 = arith.constant 3 : i32
    %333 = arith.addi %332, %c3_i32_118 : i32
    %334 = arith.index_cast %333 : i32 to index
    %335 = memref.load %arg1[%334] : memref<128xi32, #tpu.memory_space<smem>>
    %336 = vector.broadcast %335 : i32 to vector<8x128xi32>
    %337 = arith.select %331, %336, %329 : vector<8x128xi1>, vector<8x128xi32>
    %c4_i32_119 = arith.constant 4 : i32
    %338 = vector.broadcast %c4_i32_119 : i32 to vector<8x128xi32>
    %339 = arith.cmpi eq, %8, %338 : vector<8x128xi32>
    %c8_i32_120 = arith.constant 8 : i32
    %340 = arith.muli %304, %c8_i32_120 : i32
    %c4_i32_121 = arith.constant 4 : i32
    %341 = arith.addi %340, %c4_i32_121 : i32
    %342 = arith.index_cast %341 : i32 to index
    %343 = memref.load %arg1[%342] : memref<128xi32, #tpu.memory_space<smem>>
    %344 = vector.broadcast %343 : i32 to vector<8x128xi32>
    %345 = arith.select %339, %344, %337 : vector<8x128xi1>, vector<8x128xi32>
    %c5_i32_122 = arith.constant 5 : i32
    %346 = vector.broadcast %c5_i32_122 : i32 to vector<8x128xi32>
    %347 = arith.cmpi eq, %8, %346 : vector<8x128xi32>
    %c8_i32_123 = arith.constant 8 : i32
    %348 = arith.muli %304, %c8_i32_123 : i32
    %c5_i32_124 = arith.constant 5 : i32
    %349 = arith.addi %348, %c5_i32_124 : i32
    %350 = arith.index_cast %349 : i32 to index
    %351 = memref.load %arg1[%350] : memref<128xi32, #tpu.memory_space<smem>>
    %352 = vector.broadcast %351 : i32 to vector<8x128xi32>
    %353 = arith.select %347, %352, %345 : vector<8x128xi1>, vector<8x128xi32>
    %c6_i32_125 = arith.constant 6 : i32
    %354 = vector.broadcast %c6_i32_125 : i32 to vector<8x128xi32>
    %355 = arith.cmpi eq, %8, %354 : vector<8x128xi32>
    %c8_i32_126 = arith.constant 8 : i32
    %356 = arith.muli %304, %c8_i32_126 : i32
    %c6_i32_127 = arith.constant 6 : i32
    %357 = arith.addi %356, %c6_i32_127 : i32
    %358 = arith.index_cast %357 : i32 to index
    %359 = memref.load %arg1[%358] : memref<128xi32, #tpu.memory_space<smem>>
    %360 = vector.broadcast %359 : i32 to vector<8x128xi32>
    %361 = arith.select %355, %360, %353 : vector<8x128xi1>, vector<8x128xi32>
    %c7_i32_128 = arith.constant 7 : i32
    %362 = vector.broadcast %c7_i32_128 : i32 to vector<8x128xi32>
    %363 = arith.cmpi eq, %8, %362 : vector<8x128xi32>
    %c8_i32_129 = arith.constant 8 : i32
    %364 = arith.muli %304, %c8_i32_129 : i32
    %c7_i32_130 = arith.constant 7 : i32
    %365 = arith.addi %364, %c7_i32_130 : i32
    %366 = arith.index_cast %365 : i32 to index
    %367 = memref.load %arg1[%366] : memref<128xi32, #tpu.memory_space<smem>>
    %368 = vector.broadcast %367 : i32 to vector<8x128xi32>
    %369 = arith.select %363, %368, %361 : vector<8x128xi1>, vector<8x128xi32>
    %370 = arith.cmpi eq, %9, %369 : vector<8x128xi32>
    %371 = arith.extui %370 : vector<8x128xi1> to vector<8x128xi32>
    %372 = arith.sitofp %371 : vector<8x128xi32> to vector<8x128xf32>
    %cst_131 = arith.constant dense<0.000000e+00> : vector<8x128xf32>
    %373 = tpu.matmul %372, %3, %cst_131 {dimension_numbers = #tpu.dot_dimension_numbers<[1], [0], [0], [1], [0, 0, 1, 1], [], []>} : vector<8x128xf32>, vector<128x128xf32>, vector<8x128xf32> -> vector<8x128xf32>
    %cst_132 = arith.constant dense<0.000000e+00> : vector<8x128xf32>
    %374 = tpu.matmul %295, %4, %cst_132 {dimension_numbers = #tpu.dot_dimension_numbers<[1], [0], [0], [1], [0, 0, 1, 1], [], []>} : vector<8x32xf32>, vector<32x128xf32>, vector<8x128xf32> -> vector<8x128xf32>
    %375 = arith.addf %373, %374 : vector<8x128xf32>
    %376 = vector.broadcast %5 : vector<1x128xf32> to vector<8x128xf32>
    %377 = arith.addf %375, %376 : vector<8x128xf32>
    %378 = arith.negf %377 : vector<8x128xf32>
    %379 = math.exp %378 : vector<8x128xf32>
    %cst_133 = arith.constant 1.000000e+00 : f32
    %380 = vector.broadcast %cst_133 : f32 to vector<8x128xf32>
    %381 = arith.addf %380, %379 : vector<8x128xf32>
    %382 = arith.divf %380, %381 : vector<8x128xf32>
    %383 = math.tanh %377 : vector<8x128xf32>
    %384 = vector.extract_strided_slice %382 {offsets = [0, 0], sizes = [8, 32], strides = [1, 1]} : vector<8x128xf32> to vector<8x32xf32>
    %385 = vector.extract_strided_slice %382 {offsets = [0, 32], sizes = [8, 32], strides = [1, 1]} : vector<8x128xf32> to vector<8x32xf32>
    %386 = vector.extract_strided_slice %383 {offsets = [0, 64], sizes = [8, 32], strides = [1, 1]} : vector<8x128xf32> to vector<8x32xf32>
    %387 = vector.extract_strided_slice %382 {offsets = [0, 96], sizes = [8, 32], strides = [1, 1]} : vector<8x128xf32> to vector<8x32xf32>
    %388 = arith.mulf %385, %293 : vector<8x32xf32>
    %389 = arith.mulf %384, %386 : vector<8x32xf32>
    %390 = arith.addf %388, %389 : vector<8x32xf32>
    %391 = math.tanh %390 : vector<8x32xf32>
    %392 = arith.mulf %387, %391 : vector<8x32xf32>
    %cst_134 = arith.constant dense<0.000000e+00> : vector<8x128xf32>
    %393 = tpu.matmul %392, %6, %cst_134 {dimension_numbers = #tpu.dot_dimension_numbers<[1], [0], [0], [1], [0, 0, 1, 1], [], []>} : vector<8x32xf32>, vector<32x128xf32>, vector<8x128xf32> -> vector<8x128xf32>
    %394 = vector.broadcast %7 : vector<1x128xf32> to vector<8x128xf32>
    %395 = arith.addf %393, %394 : vector<8x128xf32>
    %396 = arith.index_cast %c3_i32_104 : i32 to index
    %c0_135 = arith.constant 0 : index
    %c0_136 = arith.constant 0 : index
    %397 = vector.load %arg9[%396, %c0_135, %c0_136] : memref<8x8x128xf32, #tpu.memory_space<vmem>>, vector<1x8x128xf32>
    %398 = vector.shape_cast %397 : vector<1x8x128xf32> to vector<8x128xf32>
    %399 = vector.shape_cast %395 : vector<8x128xf32> to vector<1x8x128xf32>
    tpu.vector_store %arg9[%396, %c0_135, %c0_136], %399 {strides = array<i32>} : memref<8x8x128xf32, #tpu.memory_space<vmem>>, vector<1x8x128xf32>,
    %c4_i32_137 = arith.constant 4 : i32
    %c8_i32_138 = arith.constant 8 : i32
    %400 = arith.muli %arg0, %c8_i32_138 : i32
    %401 = arith.addi %400, %c4_i32_137 : i32
    %c0_i32_139 = arith.constant 0 : i32
    %402 = vector.broadcast %c0_i32_139 : i32 to vector<8x128xi32>
    %c0_i32_140 = arith.constant 0 : i32
    %403 = vector.broadcast %c0_i32_140 : i32 to vector<8x128xi32>
    %404 = arith.cmpi eq, %8, %403 : vector<8x128xi32>
    %c8_i32_141 = arith.constant 8 : i32
    %405 = arith.muli %401, %c8_i32_141 : i32
    %c0_i32_142 = arith.constant 0 : i32
    %406 = arith.addi %405, %c0_i32_142 : i32
    %407 = arith.index_cast %406 : i32 to index
    %408 = memref.load %arg1[%407] : memref<128xi32, #tpu.memory_space<smem>>
    %409 = vector.broadcast %408 : i32 to vector<8x128xi32>
    %410 = arith.select %404, %409, %402 : vector<8x128xi1>, vector<8x128xi32>
    %c1_i32_143 = arith.constant 1 : i32
    %411 = vector.broadcast %c1_i32_143 : i32 to vector<8x128xi32>
    %412 = arith.cmpi eq, %8, %411 : vector<8x128xi32>
    %c8_i32_144 = arith.constant 8 : i32
    %413 = arith.muli %401, %c8_i32_144 : i32
    %c1_i32_145 = arith.constant 1 : i32
    %414 = arith.addi %413, %c1_i32_145 : i32
    %415 = arith.index_cast %414 : i32 to index
    %416 = memref.load %arg1[%415] : memref<128xi32, #tpu.memory_space<smem>>
    %417 = vector.broadcast %416 : i32 to vector<8x128xi32>
    %418 = arith.select %412, %417, %410 : vector<8x128xi1>, vector<8x128xi32>
    %c2_i32_146 = arith.constant 2 : i32
    %419 = vector.broadcast %c2_i32_146 : i32 to vector<8x128xi32>
    %420 = arith.cmpi eq, %8, %419 : vector<8x128xi32>
    %c8_i32_147 = arith.constant 8 : i32
    %421 = arith.muli %401, %c8_i32_147 : i32
    %c2_i32_148 = arith.constant 2 : i32
    %422 = arith.addi %421, %c2_i32_148 : i32
    %423 = arith.index_cast %422 : i32 to index
    %424 = memref.load %arg1[%423] : memref<128xi32, #tpu.memory_space<smem>>
    %425 = vector.broadcast %424 : i32 to vector<8x128xi32>
    %426 = arith.select %420, %425, %418 : vector<8x128xi1>, vector<8x128xi32>
    %c3_i32_149 = arith.constant 3 : i32
    %427 = vector.broadcast %c3_i32_149 : i32 to vector<8x128xi32>
    %428 = arith.cmpi eq, %8, %427 : vector<8x128xi32>
    %c8_i32_150 = arith.constant 8 : i32
    %429 = arith.muli %401, %c8_i32_150 : i32
    %c3_i32_151 = arith.constant 3 : i32
    %430 = arith.addi %429, %c3_i32_151 : i32
    %431 = arith.index_cast %430 : i32 to index
    %432 = memref.load %arg1[%431] : memref<128xi32, #tpu.memory_space<smem>>
    %433 = vector.broadcast %432 : i32 to vector<8x128xi32>
    %434 = arith.select %428, %433, %426 : vector<8x128xi1>, vector<8x128xi32>
    %c4_i32_152 = arith.constant 4 : i32
    %435 = vector.broadcast %c4_i32_152 : i32 to vector<8x128xi32>
    %436 = arith.cmpi eq, %8, %435 : vector<8x128xi32>
    %c8_i32_153 = arith.constant 8 : i32
    %437 = arith.muli %401, %c8_i32_153 : i32
    %c4_i32_154 = arith.constant 4 : i32
    %438 = arith.addi %437, %c4_i32_154 : i32
    %439 = arith.index_cast %438 : i32 to index
    %440 = memref.load %arg1[%439] : memref<128xi32, #tpu.memory_space<smem>>
    %441 = vector.broadcast %440 : i32 to vector<8x128xi32>
    %442 = arith.select %436, %441, %434 : vector<8x128xi1>, vector<8x128xi32>
    %c5_i32_155 = arith.constant 5 : i32
    %443 = vector.broadcast %c5_i32_155 : i32 to vector<8x128xi32>
    %444 = arith.cmpi eq, %8, %443 : vector<8x128xi32>
    %c8_i32_156 = arith.constant 8 : i32
    %445 = arith.muli %401, %c8_i32_156 : i32
    %c5_i32_157 = arith.constant 5 : i32
    %446 = arith.addi %445, %c5_i32_157 : i32
    %447 = arith.index_cast %446 : i32 to index
    %448 = memref.load %arg1[%447] : memref<128xi32, #tpu.memory_space<smem>>
    %449 = vector.broadcast %448 : i32 to vector<8x128xi32>
    %450 = arith.select %444, %449, %442 : vector<8x128xi1>, vector<8x128xi32>
    %c6_i32_158 = arith.constant 6 : i32
    %451 = vector.broadcast %c6_i32_158 : i32 to vector<8x128xi32>
    %452 = arith.cmpi eq, %8, %451 : vector<8x128xi32>
    %c8_i32_159 = arith.constant 8 : i32
    %453 = arith.muli %401, %c8_i32_159 : i32
    %c6_i32_160 = arith.constant 6 : i32
    %454 = arith.addi %453, %c6_i32_160 : i32
    %455 = arith.index_cast %454 : i32 to index
    %456 = memref.load %arg1[%455] : memref<128xi32, #tpu.memory_space<smem>>
    %457 = vector.broadcast %456 : i32 to vector<8x128xi32>
    %458 = arith.select %452, %457, %450 : vector<8x128xi1>, vector<8x128xi32>
    %c7_i32_161 = arith.constant 7 : i32
    %459 = vector.broadcast %c7_i32_161 : i32 to vector<8x128xi32>
    %460 = arith.cmpi eq, %8, %459 : vector<8x128xi32>
    %c8_i32_162 = arith.constant 8 : i32
    %461 = arith.muli %401, %c8_i32_162 : i32
    %c7_i32_163 = arith.constant 7 : i32
    %462 = arith.addi %461, %c7_i32_163 : i32
    %463 = arith.index_cast %462 : i32 to index
    %464 = memref.load %arg1[%463] : memref<128xi32, #tpu.memory_space<smem>>
    %465 = vector.broadcast %464 : i32 to vector<8x128xi32>
    %466 = arith.select %460, %465, %458 : vector<8x128xi1>, vector<8x128xi32>
    %467 = arith.cmpi eq, %9, %466 : vector<8x128xi32>
    %468 = arith.extui %467 : vector<8x128xi1> to vector<8x128xi32>
    %469 = arith.sitofp %468 : vector<8x128xi32> to vector<8x128xf32>
    %cst_164 = arith.constant dense<0.000000e+00> : vector<8x128xf32>
    %470 = tpu.matmul %469, %3, %cst_164 {dimension_numbers = #tpu.dot_dimension_numbers<[1], [0], [0], [1], [0, 0, 1, 1], [], []>} : vector<8x128xf32>, vector<128x128xf32>, vector<8x128xf32> -> vector<8x128xf32>
    %cst_165 = arith.constant dense<0.000000e+00> : vector<8x128xf32>
    %471 = tpu.matmul %392, %4, %cst_165 {dimension_numbers = #tpu.dot_dimension_numbers<[1], [0], [0], [1], [0, 0, 1, 1], [], []>} : vector<8x32xf32>, vector<32x128xf32>, vector<8x128xf32> -> vector<8x128xf32>
    %472 = arith.addf %470, %471 : vector<8x128xf32>
    %473 = vector.broadcast %5 : vector<1x128xf32> to vector<8x128xf32>
    %474 = arith.addf %472, %473 : vector<8x128xf32>
    %475 = arith.negf %474 : vector<8x128xf32>
    %476 = math.exp %475 : vector<8x128xf32>
    %cst_166 = arith.constant 1.000000e+00 : f32
    %477 = vector.broadcast %cst_166 : f32 to vector<8x128xf32>
    %478 = arith.addf %477, %476 : vector<8x128xf32>
    %479 = arith.divf %477, %478 : vector<8x128xf32>
    %480 = math.tanh %474 : vector<8x128xf32>
    %481 = vector.extract_strided_slice %479 {offsets = [0, 0], sizes = [8, 32], strides = [1, 1]} : vector<8x128xf32> to vector<8x32xf32>
    %482 = vector.extract_strided_slice %479 {offsets = [0, 32], sizes = [8, 32], strides = [1, 1]} : vector<8x128xf32> to vector<8x32xf32>
    %483 = vector.extract_strided_slice %480 {offsets = [0, 64], sizes = [8, 32], strides = [1, 1]} : vector<8x128xf32> to vector<8x32xf32>
    %484 = vector.extract_strided_slice %479 {offsets = [0, 96], sizes = [8, 32], strides = [1, 1]} : vector<8x128xf32> to vector<8x32xf32>
    %485 = arith.mulf %482, %390 : vector<8x32xf32>
    %486 = arith.mulf %481, %483 : vector<8x32xf32>
    %487 = arith.addf %485, %486 : vector<8x32xf32>
    %488 = math.tanh %487 : vector<8x32xf32>
    %489 = arith.mulf %484, %488 : vector<8x32xf32>
    %cst_167 = arith.constant dense<0.000000e+00> : vector<8x128xf32>
    %490 = tpu.matmul %489, %6, %cst_167 {dimension_numbers = #tpu.dot_dimension_numbers<[1], [0], [0], [1], [0, 0, 1, 1], [], []>} : vector<8x32xf32>, vector<32x128xf32>, vector<8x128xf32> -> vector<8x128xf32>
    %491 = vector.broadcast %7 : vector<1x128xf32> to vector<8x128xf32>
    %492 = arith.addf %490, %491 : vector<8x128xf32>
    %493 = arith.index_cast %c4_i32_137 : i32 to index
    %c0_168 = arith.constant 0 : index
    %c0_169 = arith.constant 0 : index
    %494 = vector.load %arg9[%493, %c0_168, %c0_169] : memref<8x8x128xf32, #tpu.memory_space<vmem>>, vector<1x8x128xf32>
    %495 = vector.shape_cast %494 : vector<1x8x128xf32> to vector<8x128xf32>
    %496 = vector.shape_cast %492 : vector<8x128xf32> to vector<1x8x128xf32>
    tpu.vector_store %arg9[%493, %c0_168, %c0_169], %496 {strides = array<i32>} : memref<8x8x128xf32, #tpu.memory_space<vmem>>, vector<1x8x128xf32>,
    %c5_i32_170 = arith.constant 5 : i32
    %c8_i32_171 = arith.constant 8 : i32
    %497 = arith.muli %arg0, %c8_i32_171 : i32
    %498 = arith.addi %497, %c5_i32_170 : i32
    %c0_i32_172 = arith.constant 0 : i32
    %499 = vector.broadcast %c0_i32_172 : i32 to vector<8x128xi32>
    %c0_i32_173 = arith.constant 0 : i32
    %500 = vector.broadcast %c0_i32_173 : i32 to vector<8x128xi32>
    %501 = arith.cmpi eq, %8, %500 : vector<8x128xi32>
    %c8_i32_174 = arith.constant 8 : i32
    %502 = arith.muli %498, %c8_i32_174 : i32
    %c0_i32_175 = arith.constant 0 : i32
    %503 = arith.addi %502, %c0_i32_175 : i32
    %504 = arith.index_cast %503 : i32 to index
    %505 = memref.load %arg1[%504] : memref<128xi32, #tpu.memory_space<smem>>
    %506 = vector.broadcast %505 : i32 to vector<8x128xi32>
    %507 = arith.select %501, %506, %499 : vector<8x128xi1>, vector<8x128xi32>
    %c1_i32_176 = arith.constant 1 : i32
    %508 = vector.broadcast %c1_i32_176 : i32 to vector<8x128xi32>
    %509 = arith.cmpi eq, %8, %508 : vector<8x128xi32>
    %c8_i32_177 = arith.constant 8 : i32
    %510 = arith.muli %498, %c8_i32_177 : i32
    %c1_i32_178 = arith.constant 1 : i32
    %511 = arith.addi %510, %c1_i32_178 : i32
    %512 = arith.index_cast %511 : i32 to index
    %513 = memref.load %arg1[%512] : memref<128xi32, #tpu.memory_space<smem>>
    %514 = vector.broadcast %513 : i32 to vector<8x128xi32>
    %515 = arith.select %509, %514, %507 : vector<8x128xi1>, vector<8x128xi32>
    %c2_i32_179 = arith.constant 2 : i32
    %516 = vector.broadcast %c2_i32_179 : i32 to vector<8x128xi32>
    %517 = arith.cmpi eq, %8, %516 : vector<8x128xi32>
    %c8_i32_180 = arith.constant 8 : i32
    %518 = arith.muli %498, %c8_i32_180 : i32
    %c2_i32_181 = arith.constant 2 : i32
    %519 = arith.addi %518, %c2_i32_181 : i32
    %520 = arith.index_cast %519 : i32 to index
    %521 = memref.load %arg1[%520] : memref<128xi32, #tpu.memory_space<smem>>
    %522 = vector.broadcast %521 : i32 to vector<8x128xi32>
    %523 = arith.select %517, %522, %515 : vector<8x128xi1>, vector<8x128xi32>
    %c3_i32_182 = arith.constant 3 : i32
    %524 = vector.broadcast %c3_i32_182 : i32 to vector<8x128xi32>
    %525 = arith.cmpi eq, %8, %524 : vector<8x128xi32>
    %c8_i32_183 = arith.constant 8 : i32
    %526 = arith.muli %498, %c8_i32_183 : i32
    %c3_i32_184 = arith.constant 3 : i32
    %527 = arith.addi %526, %c3_i32_184 : i32
    %528 = arith.index_cast %527 : i32 to index
    %529 = memref.load %arg1[%528] : memref<128xi32, #tpu.memory_space<smem>>
    %530 = vector.broadcast %529 : i32 to vector<8x128xi32>
    %531 = arith.select %525, %530, %523 : vector<8x128xi1>, vector<8x128xi32>
    %c4_i32_185 = arith.constant 4 : i32
    %532 = vector.broadcast %c4_i32_185 : i32 to vector<8x128xi32>
    %533 = arith.cmpi eq, %8, %532 : vector<8x128xi32>
    %c8_i32_186 = arith.constant 8 : i32
    %534 = arith.muli %498, %c8_i32_186 : i32
    %c4_i32_187 = arith.constant 4 : i32
    %535 = arith.addi %534, %c4_i32_187 : i32
    %536 = arith.index_cast %535 : i32 to index
    %537 = memref.load %arg1[%536] : memref<128xi32, #tpu.memory_space<smem>>
    %538 = vector.broadcast %537 : i32 to vector<8x128xi32>
    %539 = arith.select %533, %538, %531 : vector<8x128xi1>, vector<8x128xi32>
    %c5_i32_188 = arith.constant 5 : i32
    %540 = vector.broadcast %c5_i32_188 : i32 to vector<8x128xi32>
    %541 = arith.cmpi eq, %8, %540 : vector<8x128xi32>
    %c8_i32_189 = arith.constant 8 : i32
    %542 = arith.muli %498, %c8_i32_189 : i32
    %c5_i32_190 = arith.constant 5 : i32
    %543 = arith.addi %542, %c5_i32_190 : i32
    %544 = arith.index_cast %543 : i32 to index
    %545 = memref.load %arg1[%544] : memref<128xi32, #tpu.memory_space<smem>>
    %546 = vector.broadcast %545 : i32 to vector<8x128xi32>
    %547 = arith.select %541, %546, %539 : vector<8x128xi1>, vector<8x128xi32>
    %c6_i32_191 = arith.constant 6 : i32
    %548 = vector.broadcast %c6_i32_191 : i32 to vector<8x128xi32>
    %549 = arith.cmpi eq, %8, %548 : vector<8x128xi32>
    %c8_i32_192 = arith.constant 8 : i32
    %550 = arith.muli %498, %c8_i32_192 : i32
    %c6_i32_193 = arith.constant 6 : i32
    %551 = arith.addi %550, %c6_i32_193 : i32
    %552 = arith.index_cast %551 : i32 to index
    %553 = memref.load %arg1[%552] : memref<128xi32, #tpu.memory_space<smem>>
    %554 = vector.broadcast %553 : i32 to vector<8x128xi32>
    %555 = arith.select %549, %554, %547 : vector<8x128xi1>, vector<8x128xi32>
    %c7_i32_194 = arith.constant 7 : i32
    %556 = vector.broadcast %c7_i32_194 : i32 to vector<8x128xi32>
    %557 = arith.cmpi eq, %8, %556 : vector<8x128xi32>
    %c8_i32_195 = arith.constant 8 : i32
    %558 = arith.muli %498, %c8_i32_195 : i32
    %c7_i32_196 = arith.constant 7 : i32
    %559 = arith.addi %558, %c7_i32_196 : i32
    %560 = arith.index_cast %559 : i32 to index
    %561 = memref.load %arg1[%560] : memref<128xi32, #tpu.memory_space<smem>>
    %562 = vector.broadcast %561 : i32 to vector<8x128xi32>
    %563 = arith.select %557, %562, %555 : vector<8x128xi1>, vector<8x128xi32>
    %564 = arith.cmpi eq, %9, %563 : vector<8x128xi32>
    %565 = arith.extui %564 : vector<8x128xi1> to vector<8x128xi32>
    %566 = arith.sitofp %565 : vector<8x128xi32> to vector<8x128xf32>
    %cst_197 = arith.constant dense<0.000000e+00> : vector<8x128xf32>
    %567 = tpu.matmul %566, %3, %cst_197 {dimension_numbers = #tpu.dot_dimension_numbers<[1], [0], [0], [1], [0, 0, 1, 1], [], []>} : vector<8x128xf32>, vector<128x128xf32>, vector<8x128xf32> -> vector<8x128xf32>
    %cst_198 = arith.constant dense<0.000000e+00> : vector<8x128xf32>
    %568 = tpu.matmul %489, %4, %cst_198 {dimension_numbers = #tpu.dot_dimension_numbers<[1], [0], [0], [1], [0, 0, 1, 1], [], []>} : vector<8x32xf32>, vector<32x128xf32>, vector<8x128xf32> -> vector<8x128xf32>
    %569 = arith.addf %567, %568 : vector<8x128xf32>
    %570 = vector.broadcast %5 : vector<1x128xf32> to vector<8x128xf32>
    %571 = arith.addf %569, %570 : vector<8x128xf32>
    %572 = arith.negf %571 : vector<8x128xf32>
    %573 = math.exp %572 : vector<8x128xf32>
    %cst_199 = arith.constant 1.000000e+00 : f32
    %574 = vector.broadcast %cst_199 : f32 to vector<8x128xf32>
    %575 = arith.addf %574, %573 : vector<8x128xf32>
    %576 = arith.divf %574, %575 : vector<8x128xf32>
    %577 = math.tanh %571 : vector<8x128xf32>
    %578 = vector.extract_strided_slice %576 {offsets = [0, 0], sizes = [8, 32], strides = [1, 1]} : vector<8x128xf32> to vector<8x32xf32>
    %579 = vector.extract_strided_slice %576 {offsets = [0, 32], sizes = [8, 32], strides = [1, 1]} : vector<8x128xf32> to vector<8x32xf32>
    %580 = vector.extract_strided_slice %577 {offsets = [0, 64], sizes = [8, 32], strides = [1, 1]} : vector<8x128xf32> to vector<8x32xf32>
    %581 = vector.extract_strided_slice %576 {offsets = [0, 96], sizes = [8, 32], strides = [1, 1]} : vector<8x128xf32> to vector<8x32xf32>
    %582 = arith.mulf %579, %487 : vector<8x32xf32>
    %583 = arith.mulf %578, %580 : vector<8x32xf32>
    %584 = arith.addf %582, %583 : vector<8x32xf32>
    %585 = math.tanh %584 : vector<8x32xf32>
    %586 = arith.mulf %581, %585 : vector<8x32xf32>
    %cst_200 = arith.constant dense<0.000000e+00> : vector<8x128xf32>
    %587 = tpu.matmul %586, %6, %cst_200 {dimension_numbers = #tpu.dot_dimension_numbers<[1], [0], [0], [1], [0, 0, 1, 1], [], []>} : vector<8x32xf32>, vector<32x128xf32>, vector<8x128xf32> -> vector<8x128xf32>
    %588 = vector.broadcast %7 : vector<1x128xf32> to vector<8x128xf32>
    %589 = arith.addf %587, %588 : vector<8x128xf32>
    %590 = arith.index_cast %c5_i32_170 : i32 to index
    %c0_201 = arith.constant 0 : index
    %c0_202 = arith.constant 0 : index
    %591 = vector.load %arg9[%590, %c0_201, %c0_202] : memref<8x8x128xf32, #tpu.memory_space<vmem>>, vector<1x8x128xf32>
    %592 = vector.shape_cast %591 : vector<1x8x128xf32> to vector<8x128xf32>
    %593 = vector.shape_cast %589 : vector<8x128xf32> to vector<1x8x128xf32>
    tpu.vector_store %arg9[%590, %c0_201, %c0_202], %593 {strides = array<i32>} : memref<8x8x128xf32, #tpu.memory_space<vmem>>, vector<1x8x128xf32>,
    %c6_i32_203 = arith.constant 6 : i32
    %c8_i32_204 = arith.constant 8 : i32
    %594 = arith.muli %arg0, %c8_i32_204 : i32
    %595 = arith.addi %594, %c6_i32_203 : i32
    %c0_i32_205 = arith.constant 0 : i32
    %596 = vector.broadcast %c0_i32_205 : i32 to vector<8x128xi32>
    %c0_i32_206 = arith.constant 0 : i32
    %597 = vector.broadcast %c0_i32_206 : i32 to vector<8x128xi32>
    %598 = arith.cmpi eq, %8, %597 : vector<8x128xi32>
    %c8_i32_207 = arith.constant 8 : i32
    %599 = arith.muli %595, %c8_i32_207 : i32
    %c0_i32_208 = arith.constant 0 : i32
    %600 = arith.addi %599, %c0_i32_208 : i32
    %601 = arith.index_cast %600 : i32 to index
    %602 = memref.load %arg1[%601] : memref<128xi32, #tpu.memory_space<smem>>
    %603 = vector.broadcast %602 : i32 to vector<8x128xi32>
    %604 = arith.select %598, %603, %596 : vector<8x128xi1>, vector<8x128xi32>
    %c1_i32_209 = arith.constant 1 : i32
    %605 = vector.broadcast %c1_i32_209 : i32 to vector<8x128xi32>
    %606 = arith.cmpi eq, %8, %605 : vector<8x128xi32>
    %c8_i32_210 = arith.constant 8 : i32
    %607 = arith.muli %595, %c8_i32_210 : i32
    %c1_i32_211 = arith.constant 1 : i32
    %608 = arith.addi %607, %c1_i32_211 : i32
    %609 = arith.index_cast %608 : i32 to index
    %610 = memref.load %arg1[%609] : memref<128xi32, #tpu.memory_space<smem>>
    %611 = vector.broadcast %610 : i32 to vector<8x128xi32>
    %612 = arith.select %606, %611, %604 : vector<8x128xi1>, vector<8x128xi32>
    %c2_i32_212 = arith.constant 2 : i32
    %613 = vector.broadcast %c2_i32_212 : i32 to vector<8x128xi32>
    %614 = arith.cmpi eq, %8, %613 : vector<8x128xi32>
    %c8_i32_213 = arith.constant 8 : i32
    %615 = arith.muli %595, %c8_i32_213 : i32
    %c2_i32_214 = arith.constant 2 : i32
    %616 = arith.addi %615, %c2_i32_214 : i32
    %617 = arith.index_cast %616 : i32 to index
    %618 = memref.load %arg1[%617] : memref<128xi32, #tpu.memory_space<smem>>
    %619 = vector.broadcast %618 : i32 to vector<8x128xi32>
    %620 = arith.select %614, %619, %612 : vector<8x128xi1>, vector<8x128xi32>
    %c3_i32_215 = arith.constant 3 : i32
    %621 = vector.broadcast %c3_i32_215 : i32 to vector<8x128xi32>
    %622 = arith.cmpi eq, %8, %621 : vector<8x128xi32>
    %c8_i32_216 = arith.constant 8 : i32
    %623 = arith.muli %595, %c8_i32_216 : i32
    %c3_i32_217 = arith.constant 3 : i32
    %624 = arith.addi %623, %c3_i32_217 : i32
    %625 = arith.index_cast %624 : i32 to index
    %626 = memref.load %arg1[%625] : memref<128xi32, #tpu.memory_space<smem>>
    %627 = vector.broadcast %626 : i32 to vector<8x128xi32>
    %628 = arith.select %622, %627, %620 : vector<8x128xi1>, vector<8x128xi32>
    %c4_i32_218 = arith.constant 4 : i32
    %629 = vector.broadcast %c4_i32_218 : i32 to vector<8x128xi32>
    %630 = arith.cmpi eq, %8, %629 : vector<8x128xi32>
    %c8_i32_219 = arith.constant 8 : i32
    %631 = arith.muli %595, %c8_i32_219 : i32
    %c4_i32_220 = arith.constant 4 : i32
    %632 = arith.addi %631, %c4_i32_220 : i32
    %633 = arith.index_cast %632 : i32 to index
    %634 = memref.load %arg1[%633] : memref<128xi32, #tpu.memory_space<smem>>
    %635 = vector.broadcast %634 : i32 to vector<8x128xi32>
    %636 = arith.select %630, %635, %628 : vector<8x128xi1>, vector<8x128xi32>
    %c5_i32_221 = arith.constant 5 : i32
    %637 = vector.broadcast %c5_i32_221 : i32 to vector<8x128xi32>
    %638 = arith.cmpi eq, %8, %637 : vector<8x128xi32>
    %c8_i32_222 = arith.constant 8 : i32
    %639 = arith.muli %595, %c8_i32_222 : i32
    %c5_i32_223 = arith.constant 5 : i32
    %640 = arith.addi %639, %c5_i32_223 : i32
    %641 = arith.index_cast %640 : i32 to index
    %642 = memref.load %arg1[%641] : memref<128xi32, #tpu.memory_space<smem>>
    %643 = vector.broadcast %642 : i32 to vector<8x128xi32>
    %644 = arith.select %638, %643, %636 : vector<8x128xi1>, vector<8x128xi32>
    %c6_i32_224 = arith.constant 6 : i32
    %645 = vector.broadcast %c6_i32_224 : i32 to vector<8x128xi32>
    %646 = arith.cmpi eq, %8, %645 : vector<8x128xi32>
    %c8_i32_225 = arith.constant 8 : i32
    %647 = arith.muli %595, %c8_i32_225 : i32
    %c6_i32_226 = arith.constant 6 : i32
    %648 = arith.addi %647, %c6_i32_226 : i32
    %649 = arith.index_cast %648 : i32 to index
    %650 = memref.load %arg1[%649] : memref<128xi32, #tpu.memory_space<smem>>
    %651 = vector.broadcast %650 : i32 to vector<8x128xi32>
    %652 = arith.select %646, %651, %644 : vector<8x128xi1>, vector<8x128xi32>
    %c7_i32_227 = arith.constant 7 : i32
    %653 = vector.broadcast %c7_i32_227 : i32 to vector<8x128xi32>
    %654 = arith.cmpi eq, %8, %653 : vector<8x128xi32>
    %c8_i32_228 = arith.constant 8 : i32
    %655 = arith.muli %595, %c8_i32_228 : i32
    %c7_i32_229 = arith.constant 7 : i32
    %656 = arith.addi %655, %c7_i32_229 : i32
    %657 = arith.index_cast %656 : i32 to index
    %658 = memref.load %arg1[%657] : memref<128xi32, #tpu.memory_space<smem>>
    %659 = vector.broadcast %658 : i32 to vector<8x128xi32>
    %660 = arith.select %654, %659, %652 : vector<8x128xi1>, vector<8x128xi32>
    %661 = arith.cmpi eq, %9, %660 : vector<8x128xi32>
    %662 = arith.extui %661 : vector<8x128xi1> to vector<8x128xi32>
    %663 = arith.sitofp %662 : vector<8x128xi32> to vector<8x128xf32>
    %cst_230 = arith.constant dense<0.000000e+00> : vector<8x128xf32>
    %664 = tpu.matmul %663, %3, %cst_230 {dimension_numbers = #tpu.dot_dimension_numbers<[1], [0], [0], [1], [0, 0, 1, 1], [], []>} : vector<8x128xf32>, vector<128x128xf32>, vector<8x128xf32> -> vector<8x128xf32>
    %cst_231 = arith.constant dense<0.000000e+00> : vector<8x128xf32>
    %665 = tpu.matmul %586, %4, %cst_231 {dimension_numbers = #tpu.dot_dimension_numbers<[1], [0], [0], [1], [0, 0, 1, 1], [], []>} : vector<8x32xf32>, vector<32x128xf32>, vector<8x128xf32> -> vector<8x128xf32>
    %666 = arith.addf %664, %665 : vector<8x128xf32>
    %667 = vector.broadcast %5 : vector<1x128xf32> to vector<8x128xf32>
    %668 = arith.addf %666, %667 : vector<8x128xf32>
    %669 = arith.negf %668 : vector<8x128xf32>
    %670 = math.exp %669 : vector<8x128xf32>
    %cst_232 = arith.constant 1.000000e+00 : f32
    %671 = vector.broadcast %cst_232 : f32 to vector<8x128xf32>
    %672 = arith.addf %671, %670 : vector<8x128xf32>
    %673 = arith.divf %671, %672 : vector<8x128xf32>
    %674 = math.tanh %668 : vector<8x128xf32>
    %675 = vector.extract_strided_slice %673 {offsets = [0, 0], sizes = [8, 32], strides = [1, 1]} : vector<8x128xf32> to vector<8x32xf32>
    %676 = vector.extract_strided_slice %673 {offsets = [0, 32], sizes = [8, 32], strides = [1, 1]} : vector<8x128xf32> to vector<8x32xf32>
    %677 = vector.extract_strided_slice %674 {offsets = [0, 64], sizes = [8, 32], strides = [1, 1]} : vector<8x128xf32> to vector<8x32xf32>
    %678 = vector.extract_strided_slice %673 {offsets = [0, 96], sizes = [8, 32], strides = [1, 1]} : vector<8x128xf32> to vector<8x32xf32>
    %679 = arith.mulf %676, %584 : vector<8x32xf32>
    %680 = arith.mulf %675, %677 : vector<8x32xf32>
    %681 = arith.addf %679, %680 : vector<8x32xf32>
    %682 = math.tanh %681 : vector<8x32xf32>
    %683 = arith.mulf %678, %682 : vector<8x32xf32>
    %cst_233 = arith.constant dense<0.000000e+00> : vector<8x128xf32>
    %684 = tpu.matmul %683, %6, %cst_233 {dimension_numbers = #tpu.dot_dimension_numbers<[1], [0], [0], [1], [0, 0, 1, 1], [], []>} : vector<8x32xf32>, vector<32x128xf32>, vector<8x128xf32> -> vector<8x128xf32>
    %685 = vector.broadcast %7 : vector<1x128xf32> to vector<8x128xf32>
    %686 = arith.addf %684, %685 : vector<8x128xf32>
    %687 = arith.index_cast %c6_i32_203 : i32 to index
    %c0_234 = arith.constant 0 : index
    %c0_235 = arith.constant 0 : index
    %688 = vector.load %arg9[%687, %c0_234, %c0_235] : memref<8x8x128xf32, #tpu.memory_space<vmem>>, vector<1x8x128xf32>
    %689 = vector.shape_cast %688 : vector<1x8x128xf32> to vector<8x128xf32>
    %690 = vector.shape_cast %686 : vector<8x128xf32> to vector<1x8x128xf32>
    tpu.vector_store %arg9[%687, %c0_234, %c0_235], %690 {strides = array<i32>} : memref<8x8x128xf32, #tpu.memory_space<vmem>>, vector<1x8x128xf32>,
    %c7_i32_236 = arith.constant 7 : i32
    %c8_i32_237 = arith.constant 8 : i32
    %691 = arith.muli %arg0, %c8_i32_237 : i32
    %692 = arith.addi %691, %c7_i32_236 : i32
    %c0_i32_238 = arith.constant 0 : i32
    %693 = vector.broadcast %c0_i32_238 : i32 to vector<8x128xi32>
    %c0_i32_239 = arith.constant 0 : i32
    %694 = vector.broadcast %c0_i32_239 : i32 to vector<8x128xi32>
    %695 = arith.cmpi eq, %8, %694 : vector<8x128xi32>
    %c8_i32_240 = arith.constant 8 : i32
    %696 = arith.muli %692, %c8_i32_240 : i32
    %c0_i32_241 = arith.constant 0 : i32
    %697 = arith.addi %696, %c0_i32_241 : i32
    %698 = arith.index_cast %697 : i32 to index
    %699 = memref.load %arg1[%698] : memref<128xi32, #tpu.memory_space<smem>>
    %700 = vector.broadcast %699 : i32 to vector<8x128xi32>
    %701 = arith.select %695, %700, %693 : vector<8x128xi1>, vector<8x128xi32>
    %c1_i32_242 = arith.constant 1 : i32
    %702 = vector.broadcast %c1_i32_242 : i32 to vector<8x128xi32>
    %703 = arith.cmpi eq, %8, %702 : vector<8x128xi32>
    %c8_i32_243 = arith.constant 8 : i32
    %704 = arith.muli %692, %c8_i32_243 : i32
    %c1_i32_244 = arith.constant 1 : i32
    %705 = arith.addi %704, %c1_i32_244 : i32
    %706 = arith.index_cast %705 : i32 to index
    %707 = memref.load %arg1[%706] : memref<128xi32, #tpu.memory_space<smem>>
    %708 = vector.broadcast %707 : i32 to vector<8x128xi32>
    %709 = arith.select %703, %708, %701 : vector<8x128xi1>, vector<8x128xi32>
    %c2_i32_245 = arith.constant 2 : i32
    %710 = vector.broadcast %c2_i32_245 : i32 to vector<8x128xi32>
    %711 = arith.cmpi eq, %8, %710 : vector<8x128xi32>
    %c8_i32_246 = arith.constant 8 : i32
    %712 = arith.muli %692, %c8_i32_246 : i32
    %c2_i32_247 = arith.constant 2 : i32
    %713 = arith.addi %712, %c2_i32_247 : i32
    %714 = arith.index_cast %713 : i32 to index
    %715 = memref.load %arg1[%714] : memref<128xi32, #tpu.memory_space<smem>>
    %716 = vector.broadcast %715 : i32 to vector<8x128xi32>
    %717 = arith.select %711, %716, %709 : vector<8x128xi1>, vector<8x128xi32>
    %c3_i32_248 = arith.constant 3 : i32
    %718 = vector.broadcast %c3_i32_248 : i32 to vector<8x128xi32>
    %719 = arith.cmpi eq, %8, %718 : vector<8x128xi32>
    %c8_i32_249 = arith.constant 8 : i32
    %720 = arith.muli %692, %c8_i32_249 : i32
    %c3_i32_250 = arith.constant 3 : i32
    %721 = arith.addi %720, %c3_i32_250 : i32
    %722 = arith.index_cast %721 : i32 to index
    %723 = memref.load %arg1[%722] : memref<128xi32, #tpu.memory_space<smem>>
    %724 = vector.broadcast %723 : i32 to vector<8x128xi32>
    %725 = arith.select %719, %724, %717 : vector<8x128xi1>, vector<8x128xi32>
    %c4_i32_251 = arith.constant 4 : i32
    %726 = vector.broadcast %c4_i32_251 : i32 to vector<8x128xi32>
    %727 = arith.cmpi eq, %8, %726 : vector<8x128xi32>
    %c8_i32_252 = arith.constant 8 : i32
    %728 = arith.muli %692, %c8_i32_252 : i32
    %c4_i32_253 = arith.constant 4 : i32
    %729 = arith.addi %728, %c4_i32_253 : i32
    %730 = arith.index_cast %729 : i32 to index
    %731 = memref.load %arg1[%730] : memref<128xi32, #tpu.memory_space<smem>>
    %732 = vector.broadcast %731 : i32 to vector<8x128xi32>
    %733 = arith.select %727, %732, %725 : vector<8x128xi1>, vector<8x128xi32>
    %c5_i32_254 = arith.constant 5 : i32
    %734 = vector.broadcast %c5_i32_254 : i32 to vector<8x128xi32>
    %735 = arith.cmpi eq, %8, %734 : vector<8x128xi32>
    %c8_i32_255 = arith.constant 8 : i32
    %736 = arith.muli %692, %c8_i32_255 : i32
    %c5_i32_256 = arith.constant 5 : i32
    %737 = arith.addi %736, %c5_i32_256 : i32
    %738 = arith.index_cast %737 : i32 to index
    %739 = memref.load %arg1[%738] : memref<128xi32, #tpu.memory_space<smem>>
    %740 = vector.broadcast %739 : i32 to vector<8x128xi32>
    %741 = arith.select %735, %740, %733 : vector<8x128xi1>, vector<8x128xi32>
    %c6_i32_257 = arith.constant 6 : i32
    %742 = vector.broadcast %c6_i32_257 : i32 to vector<8x128xi32>
    %743 = arith.cmpi eq, %8, %742 : vector<8x128xi32>
    %c8_i32_258 = arith.constant 8 : i32
    %744 = arith.muli %692, %c8_i32_258 : i32
    %c6_i32_259 = arith.constant 6 : i32
    %745 = arith.addi %744, %c6_i32_259 : i32
    %746 = arith.index_cast %745 : i32 to index
    %747 = memref.load %arg1[%746] : memref<128xi32, #tpu.memory_space<smem>>
    %748 = vector.broadcast %747 : i32 to vector<8x128xi32>
    %749 = arith.select %743, %748, %741 : vector<8x128xi1>, vector<8x128xi32>
    %c7_i32_260 = arith.constant 7 : i32
    %750 = vector.broadcast %c7_i32_260 : i32 to vector<8x128xi32>
    %751 = arith.cmpi eq, %8, %750 : vector<8x128xi32>
    %c8_i32_261 = arith.constant 8 : i32
    %752 = arith.muli %692, %c8_i32_261 : i32
    %c7_i32_262 = arith.constant 7 : i32
    %753 = arith.addi %752, %c7_i32_262 : i32
    %754 = arith.index_cast %753 : i32 to index
    %755 = memref.load %arg1[%754] : memref<128xi32, #tpu.memory_space<smem>>
    %756 = vector.broadcast %755 : i32 to vector<8x128xi32>
    %757 = arith.select %751, %756, %749 : vector<8x128xi1>, vector<8x128xi32>
    %758 = arith.cmpi eq, %9, %757 : vector<8x128xi32>
    %759 = arith.extui %758 : vector<8x128xi1> to vector<8x128xi32>
    %760 = arith.sitofp %759 : vector<8x128xi32> to vector<8x128xf32>
    %cst_263 = arith.constant dense<0.000000e+00> : vector<8x128xf32>
    %761 = tpu.matmul %760, %3, %cst_263 {dimension_numbers = #tpu.dot_dimension_numbers<[1], [0], [0], [1], [0, 0, 1, 1], [], []>} : vector<8x128xf32>, vector<128x128xf32>, vector<8x128xf32> -> vector<8x128xf32>
    %cst_264 = arith.constant dense<0.000000e+00> : vector<8x128xf32>
    %762 = tpu.matmul %683, %4, %cst_264 {dimension_numbers = #tpu.dot_dimension_numbers<[1], [0], [0], [1], [0, 0, 1, 1], [], []>} : vector<8x32xf32>, vector<32x128xf32>, vector<8x128xf32> -> vector<8x128xf32>
    %763 = arith.addf %761, %762 : vector<8x128xf32>
    %764 = vector.broadcast %5 : vector<1x128xf32> to vector<8x128xf32>
    %765 = arith.addf %763, %764 : vector<8x128xf32>
    %766 = arith.negf %765 : vector<8x128xf32>
    %767 = math.exp %766 : vector<8x128xf32>
    %cst_265 = arith.constant 1.000000e+00 : f32
    %768 = vector.broadcast %cst_265 : f32 to vector<8x128xf32>
    %769 = arith.addf %768, %767 : vector<8x128xf32>
    %770 = arith.divf %768, %769 : vector<8x128xf32>
    %771 = math.tanh %765 : vector<8x128xf32>
    %772 = vector.extract_strided_slice %770 {offsets = [0, 0], sizes = [8, 32], strides = [1, 1]} : vector<8x128xf32> to vector<8x32xf32>
    %773 = vector.extract_strided_slice %770 {offsets = [0, 32], sizes = [8, 32], strides = [1, 1]} : vector<8x128xf32> to vector<8x32xf32>
    %774 = vector.extract_strided_slice %771 {offsets = [0, 64], sizes = [8, 32], strides = [1, 1]} : vector<8x128xf32> to vector<8x32xf32>
    %775 = vector.extract_strided_slice %770 {offsets = [0, 96], sizes = [8, 32], strides = [1, 1]} : vector<8x128xf32> to vector<8x32xf32>
    %776 = arith.mulf %773, %681 : vector<8x32xf32>
    %777 = arith.mulf %772, %774 : vector<8x32xf32>
    %778 = arith.addf %776, %777 : vector<8x32xf32>
    %779 = math.tanh %778 : vector<8x32xf32>
    %780 = arith.mulf %775, %779 : vector<8x32xf32>
    %cst_266 = arith.constant dense<0.000000e+00> : vector<8x128xf32>
    %781 = tpu.matmul %780, %6, %cst_266 {dimension_numbers = #tpu.dot_dimension_numbers<[1], [0], [0], [1], [0, 0, 1, 1], [], []>} : vector<8x32xf32>, vector<32x128xf32>, vector<8x128xf32> -> vector<8x128xf32>
    %782 = vector.broadcast %7 : vector<1x128xf32> to vector<8x128xf32>
    %783 = arith.addf %781, %782 : vector<8x128xf32>
    %784 = arith.index_cast %c7_i32_236 : i32 to index
    %c0_267 = arith.constant 0 : index
    %c0_268 = arith.constant 0 : index
    %785 = vector.load %arg9[%784, %c0_267, %c0_268] : memref<8x8x128xf32, #tpu.memory_space<vmem>>, vector<1x8x128xf32>
    %786 = vector.shape_cast %785 : vector<1x8x128xf32> to vector<8x128xf32>
    %787 = vector.shape_cast %783 : vector<8x128xf32> to vector<1x8x128xf32>
    tpu.vector_store %arg9[%784, %c0_267, %c0_268], %787 {strides = array<i32>} : memref<8x8x128xf32, #tpu.memory_space<vmem>>, vector<1x8x128xf32>,
    %c8_i32_269 = arith.constant 8 : i32
    %c0_270 = arith.constant 0 : index
    %c0_271 = arith.constant 0 : index
    %788 = vector.load %arg12[%c0_270, %c0_271] : memref<8x32xf32, #tpu.memory_space<vmem>>, vector<8x32xf32>
    tpu.vector_store %arg12[%c0_270, %c0_271], %780 {strides = array<i32>} : memref<8x32xf32, #tpu.memory_space<vmem>>, vector<8x32xf32>,
    %c0_272 = arith.constant 0 : index
    %c0_273 = arith.constant 0 : index
    %789 = vector.load %arg13[%c0_272, %c0_273] : memref<8x32xf32, #tpu.memory_space<vmem>>, vector<8x32xf32>
    tpu.vector_store %arg13[%c0_272, %c0_273], %778 {strides = array<i32>} : memref<8x32xf32, #tpu.memory_space<vmem>>, vector<8x32xf32>,
    %c1_i32_274 = arith.constant 1 : i32
    %790 = arith.cmpi eq, %arg0, %c1_i32_274 : i32
    %791 = arith.extui %790 : i1 to i32
    %c0_i32_275 = arith.constant 0 : i32
    %792 = arith.cmpi ne, %791, %c0_i32_275 : i32
    scf.if %792 {
      %c0_276 = arith.constant 0 : index
      %c0_277 = arith.constant 0 : index
      %793 = vector.load %arg10[%c0_276, %c0_277] : memref<8x32xf32, #tpu.memory_space<vmem>>, vector<8x32xf32>
      tpu.vector_store %arg10[%c0_276, %c0_277], %780 {strides = array<i32>} : memref<8x32xf32, #tpu.memory_space<vmem>>, vector<8x32xf32>,
      %c0_278 = arith.constant 0 : index
      %c0_279 = arith.constant 0 : index
      %794 = vector.load %arg11[%c0_278, %c0_279] : memref<8x32xf32, #tpu.memory_space<vmem>>, vector<8x32xf32>
      tpu.vector_store %arg11[%c0_278, %c0_279], %778 {strides = array<i32>} : memref<8x32xf32, #tpu.memory_space<vmem>>, vector<8x32xf32>,
    } else {
    }
    return
  }
  func.func @transform_0(%arg0: i32, %arg1: memref<128xi32, #tpu.memory_space<smem>>) -> (i32, i32) {
    %c0_i32 = arith.constant 0 : i32
    %c0_i32_0 = arith.constant 0 : i32
    %c0_i32_1 = arith.constant 0 : i32
    return %c0_i32, %c0_i32_0 : i32, i32
  }
  func.func @transform_1(%arg0: i32, %arg1: memref<128xi32, #tpu.memory_space<smem>>) -> (i32, i32) {
    %c0_i32 = arith.constant 0 : i32
    %c0_i32_0 = arith.constant 0 : i32
    %c0_i32_1 = arith.constant 0 : i32
    return %c0_i32, %c0_i32_0 : i32, i32
  }
  func.func @transform_2(%arg0: i32, %arg1: memref<128xi32, #tpu.memory_space<smem>>) -> (i32, i32) {
    %c0_i32 = arith.constant 0 : i32
    %c0_i32_0 = arith.constant 0 : i32
    %c0_i32_1 = arith.constant 0 : i32
    return %c0_i32, %c0_i32_0 : i32, i32
  }
  func.func @transform_3(%arg0: i32, %arg1: memref<128xi32, #tpu.memory_space<smem>>) -> (i32, i32) {
    %c0_i32 = arith.constant 0 : i32
    %c0_i32_0 = arith.constant 0 : i32
    %c0_i32_1 = arith.constant 0 : i32
    return %c0_i32, %c0_i32_0 : i32, i32
  }
  func.func @transform_4(%arg0: i32, %arg1: memref<128xi32, #tpu.memory_space<smem>>) -> (i32, i32) {
    %c0_i32 = arith.constant 0 : i32
    %c0_i32_0 = arith.constant 0 : i32
    %c0_i32_1 = arith.constant 0 : i32
    return %c0_i32, %c0_i32_0 : i32, i32
  }
  func.func @transform_5(%arg0: i32, %arg1: memref<128xi32, #tpu.memory_space<smem>>) -> (i32, i32) {
    %c0_i32 = arith.constant 0 : i32
    %c0_i32_0 = arith.constant 0 : i32
    %c0_i32_1 = arith.constant 0 : i32
    return %c0_i32, %c0_i32_0 : i32, i32
  }
  func.func @transform_6(%arg0: i32, %arg1: memref<128xi32, #tpu.memory_space<smem>>) -> (i32, i32) {
    %c0_i32 = arith.constant 0 : i32
    %c0_i32_0 = arith.constant 0 : i32
    %c0_i32_1 = arith.constant 0 : i32
    return %c0_i32, %c0_i32_0 : i32, i32
  }
  func.func @transform_7(%arg0: i32, %arg1: memref<128xi32, #tpu.memory_space<smem>>) -> (i32, i32, i32) {
    %c0_i32 = arith.constant 0 : i32
    %c0_i32_0 = arith.constant 0 : i32
    %c0_i32_1 = arith.constant 0 : i32
    return %arg0, %c0_i32, %c0_i32_0 : i32, i32, i32
  }
  func.func @transform_8(%arg0: i32, %arg1: memref<128xi32, #tpu.memory_space<smem>>) -> (i32, i32) {
    %c0_i32 = arith.constant 0 : i32
    %c0_i32_0 = arith.constant 0 : i32
    %c0_i32_1 = arith.constant 0 : i32
    return %c0_i32, %c0_i32_0 : i32, i32
  }
  func.func @transform_9(%arg0: i32, %arg1: memref<128xi32, #tpu.memory_space<smem>>) -> (i32, i32) {
    %c0_i32 = arith.constant 0 : i32
    %c0_i32_0 = arith.constant 0 : i32
    %c0_i32_1 = arith.constant 0 : i32
    return %c0_i32, %c0_i32_0 : i32, i32
  }
}

</mosaic_0001>

<llo_original>
// kernel: tpu_custom_call.1
$region0: #{tpu_custom_call.1}
  #allocation0 [shape = 'u32[]', space=smem, size = 0x4, offset = 0x4, fixed_abs, tag = 'smem constant byte address 0x4 - core index']
  #allocation1 [shape = 'u32[144,128]{1,0:T(1,128)}', space=vmem, size = 0x12000, scoped, tag = 'internal scratch']
  #allocation2 [shape = 'f32[8,32]{1,0:T(8,128)}', space=vmem, size = 0x1000, scoped, tag = 'scratch operand']
  #allocation3 [shape = 'f32[8,32]{1,0:T(8,128)}', space=vmem, size = 0x1000, scoped, tag = 'scratch operand']
  #allocation4 [shape = 's32[1]{0}', space=sflag, size = 0x4, scoped, tag = 'scoped memory for tpu_custom_call.1']
  #allocation5 [shape = 'u8[512]{0}', space=smem, size = 0x200, scoped, tag = 'prefetched SMEM operand 0']
  %s0 = inlined_call_operand.hbm [shape: s32[128], index: 0, kind: input, shape index: {}]
  %s1 = inlined_call_operand.hbm [shape: f32[8,32], index: 1, kind: input, shape index: {}]
  %s2 = inlined_call_operand.hbm [shape: f32[8,32], index: 2, kind: input, shape index: {}]
  %s3 = inlined_call_operand.hbm [shape: f32[128,128], index: 3, kind: input, shape index: {}]
  %s4 = inlined_call_operand.hbm [shape: f32[32,128], index: 4, kind: input, shape index: {}]
  %s5 = inlined_call_operand.vmem [shape: f32[1,128], index: 5, kind: input, shape index: {}]
  %s6 = inlined_call_operand.hbm [shape: f32[32,128], index: 6, kind: input, shape index: {}]
  %s7 = inlined_call_operand.vmem [shape: f32[1,128], index: 7, kind: input, shape index: {}]
  %s8 = inlined_call_operand.hbm [shape: f32[16,8,128], index: 8, kind: output, shape index: {0}]
  %s9 = inlined_call_operand.hbm [shape: f32[8,32], index: 9, kind: output, shape index: {1}]
  %s10 = inlined_call_operand.hbm [shape: f32[8,32], index: 10, kind: output, shape index: {2}]
  %11 = xla_tuple %s8, %s9, %s10
  %s12 = sld [smem:[#allocation0]]
  $region105: #{tpu_custom_call.1} parent=0
    _
  %s14 = ssub.s32 1, %s12
  %s15 = scalar_select 0, %s14, %s12
  %17 = dma.hbm_to_smem %s0, 16, [#allocation5], [#allocation4]
  %18 = dma.done [#allocation4], 16
  %19 = sfence
  $region1: #{tpu_custom_call.1} parent=0
    #allocation6 [shape = 'u8[4096]{0}', space=vmem, size = 0x1000, scoped, tag = 'input window, operand 1, single buffered']
    #allocation7 [shape = 's32[2]{0}', space=sflag, size = 0x8, scoped, tag = 'scoped memory for tpu_custom_call.1']
    #allocation8 [shape = 's32[2]{0}', space=sflag, size = 0x8, scoped, tag = 'scoped memory for tpu_custom_call.1']
    #allocation9 [shape = 'u8[4096]{0}', space=vmem, size = 0x1000, scoped, tag = 'input window, operand 2, single buffered']
    #allocation10 [shape = 's32[1]{0}', space=sflag, size = 0x4, scoped, tag = 'scoped memory for tpu_custom_call.1']
    #allocation11 [shape = 'u8[65536]{0}', space=vmem, size = 0x10000, scoped, tag = 'input window, operand 3, single buffered']
    #allocation12 [shape = 'u8[16384]{0}', space=vmem, size = 0x4000, scoped, tag = 'input window, operand 4, single buffered']
    #allocation13 [shape = 's32[1]{0}', space=sflag, size = 0x4, scoped, tag = 'scoped memory for tpu_custom_call.1']
    #allocation14 [shape = 'u8[16384]{0}', space=vmem, size = 0x4000, scoped, tag = 'input window, operand 6, single buffered']
    #allocation15 [shape = 'u8[65536]{0}', space=vmem, size = 0x10000, scoped, tag = 'output window, operand 0']
    #allocation16 [shape = 'u8[4096]{0}', space=vmem, size = 0x1000, scoped, tag = 'output window, operand 1, single buffered']
    #allocation17 [shape = 's32[1]{0}', space=sflag, size = 0x4, scoped, tag = 'scoped memory for tpu_custom_call.1']
    #allocation18 [shape = 'u8[4096]{0}', space=vmem, size = 0x1000, scoped, tag = 'output window, operand 2, single buffered']
    %20 = vsyncpa [#allocation7], 0
    %21 = vsyncpa [#allocation10], 0
    %22 = vsyncpa [#allocation13], 0
    %23 = vsyncpa [#allocation8], 0
    %s24 = scalar_lea.sflag [#allocation8], 1
    %25 = vsyncpa %s24, 0
    %26 = vsyncpa [#allocation17], 0
    loop: start=0, step=1, limit=4
    $region2: #{tpu_custom_call.1} parent=1 // loop_pre_header
      _
    $region3: #{tpu_custom_call.1} parent=1 // loop_header
      %s28 = sphi 0, %s32
      %p29 = scmp.ge.s32.totalorder %s28, 4
      %s36 = sphi 0, %s36
      %s38 = sphi 0, %s36
      %s39 = sphi 0, %s38
      %s53 = sphi 0, %s39
      %s57 = sphi 0, %s57
      %s59 = sphi 0, %s57
      %s60 = sphi 0, %s59
      %s74 = sphi 0, %s60
      %s78 = sphi 0, %s78
      %s80 = sphi 0, %s78
      %s81 = sphi 0, %s80
      %s95 = sphi 0, %s81
      %s99 = sphi 0, %s99
      %s101 = sphi 0, %s99
      %s102 = sphi 0, %s101
      %s116 = sphi 0, %s102
      %s120 = sphi 0, %s120
      %s122 = sphi 0, %s120
      %s123 = sphi 0, %s122
      %s137 = sphi 0, %s123
      %s141 = sphi 0, %s141
      %s143 = sphi 0, %s141
      %s144 = sphi 0, %s143
      %s158 = sphi 0, %s144
      %s162 = sphi 0, %s162
      %s164 = sphi 0, %s162
      %s165 = sphi 0, %s164
      %s179 = sphi 0, %s165
      %s185 = sphi 0, %s187
      %s188 = sphi 0, %s185
      %s189 = sphi 0, %s188
      %s205 = sphi 0, %s189
      %s209 = sphi 0, %s209
      %s211 = sphi 0, %s209
      %s212 = sphi 0, %s211
      %s226 = sphi 0, %s212
      %s230 = sphi 0, %s230
      %s232 = sphi 0, %s230
      %s233 = sphi 0, %s232
      %s247 = sphi 0, %s233
    $region4: #{tpu_custom_call.1} parent=1 // loop_header_branch
      %31 = sbr.rel (%p29) target = $region8
    $region5: #{tpu_custom_call.1} parent=1 // loop_body
      %s33 = ssub.s32 %s28, 1
      %s34 = ssub.s32 %s28, 2
      %s35 = sadd.s32 %s28, 1
      %s37 = sadd.s32 %s36, 1
      %p40 = scmp.eq.s32.totalorder %s28, 1
      %p41 = scmp.ne.s32.totalorder %s36, %s38
      %p42 = scmp.eq.s32.totalorder %s28, 0
      %p43 = por %p41, %p42
      %p44 = scmp.ne.s32.totalorder %s36, %s38
      %p45 = scmp.eq.s32.totalorder %s33, 1
      %p46 = por %p44, %p45
      %p47 = scmp.ne.s32.totalorder %s38, %s39
      %p48 = scmp.eq.s32.totalorder %s33, 0
      %p49 = por %p47, %p48
      %p50 = scmp.ne.s32.totalorder %s38, %s39
      %p51 = scmp.eq.s32.totalorder %s34, 1
      %p52 = por %p50, %p51
      %p54 = scmp.ne.s32.totalorder %s39, %s53
      %p55 = scmp.eq.s32.totalorder %s34, 0
      %p56 = por %p54, %p55
      %s58 = sadd.s32 %s57, 1
      %p61 = scmp.eq.s32.totalorder %s28, 1
      %p62 = scmp.ne.s32.totalorder %s57, %s59
      %p63 = scmp.eq.s32.totalorder %s28, 0
      %p64 = por %p62, %p63
      %p65 = scmp.ne.s32.totalorder %s57, %s59
      %p66 = scmp.eq.s32.totalorder %s33, 1
      %p67 = por %p65, %p66
      %p68 = scmp.ne.s32.totalorder %s59, %s60
      %p69 = scmp.eq.s32.totalorder %s33, 0
      %p70 = por %p68, %p69
      %p71 = scmp.ne.s32.totalorder %s59, %s60
      %p72 = scmp.eq.s32.totalorder %s34, 1
      %p73 = por %p71, %p72
      %p75 = scmp.ne.s32.totalorder %s60, %s74
      %p76 = scmp.eq.s32.totalorder %s34, 0
      %p77 = por %p75, %p76
      %s79 = sadd.s32 %s78, 1
      %p82 = scmp.eq.s32.totalorder %s28, 1
      %p83 = scmp.ne.s32.totalorder %s78, %s80
      %p84 = scmp.eq.s32.totalorder %s28, 0
      %p85 = por %p83, %p84
      %p86 = scmp.ne.s32.totalorder %s78, %s80
      %p87 = scmp.eq.s32.totalorder %s33, 1
      %p88 = por %p86, %p87
      %p89 = scmp.ne.s32.totalorder %s80, %s81
      %p90 = scmp.eq.s32.totalorder %s33, 0
      %p91 = por %p89, %p90
      %p92 = scmp.ne.s32.totalorder %s80, %s81
      %p93 = scmp.eq.s32.totalorder %s34, 1
      %p94 = por %p92, %p93
      %p96 = scmp.ne.s32.totalorder %s81, %s95
      %p97 = scmp.eq.s32.totalorder %s34, 0
      %p98 = por %p96, %p97
      %s100 = sadd.s32 %s99, 1
      %p103 = scmp.eq.s32.totalorder %s28, 1
      %p104 = scmp.ne.s32.totalorder %s99, %s101
      %p105 = scmp.eq.s32.totalorder %s28, 0
      %p106 = por %p104, %p105
      %p107 = scmp.ne.s32.totalorder %s99, %s101
      %p108 = scmp.eq.s32.totalorder %s33, 1
      %p109 = por %p107, %p108
      %p110 = scmp.ne.s32.totalorder %s101, %s102
      %p111 = scmp.eq.s32.totalorder %s33, 0
      %p112 = por %p110, %p111
      %p113 = scmp.ne.s32.totalorder %s101, %s102
      %p114 = scmp.eq.s32.totalorder %s34, 1
      %p115 = por %p113, %p114
      %p117 = scmp.ne.s32.totalorder %s102, %s116
      %p118 = scmp.eq.s32.totalorder %s34, 0
      %p119 = por %p117, %p118
      %s121 = sadd.s32 %s120, 1
      %p124 = scmp.eq.s32.totalorder %s28, 1
      %p125 = scmp.ne.s32.totalorder %s120, %s122
      %p126 = scmp.eq.s32.totalorder %s28, 0
      %p127 = por %p125, %p126
      %p128 = scmp.ne.s32.totalorder %s120, %s122
      %p129 = scmp.eq.s32.totalorder %s33, 1
      %p130 = por %p128, %p129
      %p131 = scmp.ne.s32.totalorder %s122, %s123
      %p132 = scmp.eq.s32.totalorder %s33, 0
      %p133 = por %p131, %p132
      %p134 = scmp.ne.s32.totalorder %s122, %s123
      %p135 = scmp.eq.s32.totalorder %s34, 1
      %p136 = por %p134, %p135
      %p138 = scmp.ne.s32.totalorder %s123, %s137
      %p139 = scmp.eq.s32.totalorder %s34, 0
      %p140 = por %p138, %p139
      %s142 = sadd.s32 %s141, 1
      %p145 = scmp.eq.s32.totalorder %s28, 1
      %p146 = scmp.ne.s32.totalorder %s141, %s143
      %p147 = scmp.eq.s32.totalorder %s28, 0
      %p148 = por %p146, %p147
      %p149 = scmp.ne.s32.totalorder %s141, %s143
      %p150 = scmp.eq.s32.totalorder %s33, 1
      %p151 = por %p149, %p150
      %p152 = scmp.ne.s32.totalorder %s143, %s144
      %p153 = scmp.eq.s32.totalorder %s33, 0
      %p154 = por %p152, %p153
      %p155 = scmp.ne.s32.totalorder %s143, %s144
      %p156 = scmp.eq.s32.totalorder %s34, 1
      %p157 = por %p155, %p156
      %p159 = scmp.ne.s32.totalorder %s144, %s158
      %p160 = scmp.eq.s32.totalorder %s34, 0
      %p161 = por %p159, %p160
      %s163 = sadd.s32 %s162, 1
      %p166 = scmp.eq.s32.totalorder %s28, 1
      %p167 = scmp.ne.s32.totalorder %s162, %s164
      %p168 = scmp.eq.s32.totalorder %s28, 0
      %p169 = por %p167, %p168
      %p170 = scmp.ne.s32.totalorder %s162, %s164
      %p171 = scmp.eq.s32.totalorder %s33, 1
      %p172 = por %p170, %p171
      %p173 = scmp.ne.s32.totalorder %s164, %s165
      %p174 = scmp.eq.s32.totalorder %s33, 0
      %p175 = por %p173, %p174
      %p176 = scmp.ne.s32.totalorder %s164, %s165
      %p177 = scmp.eq.s32.totalorder %s34, 1
      %p178 = por %p176, %p177
      %p180 = scmp.ne.s32.totalorder %s165, %s179
      %p181 = scmp.eq.s32.totalorder %s34, 0
      %p182 = por %p180, %p181
      %s183 = ssub.s32 %s28, %s35
      %p184 = scmp.eq.s32.totalorder %s183, 0
      %s186 = sadd.s32 %s185, 1
      %s187 = scalar_select %p184, %s185, %s186
      %p190 = pneg %p184
      %p191 = scmp.eq.s32.totalorder %s28, 1
      %p192 = por %p190, %p191
      %p193 = scmp.ne.s32.totalorder %s185, %s188
      %p194 = scmp.eq.s32.totalorder %s28, 0
      %p195 = por %p193, %p194
      %p196 = scmp.ne.s32.totalorder %s185, %s188
      %p197 = scmp.eq.s32.totalorder %s33, 1
      %p198 = por %p196, %p197
      %p199 = scmp.ne.s32.totalorder %s188, %s189
      %p200 = scmp.eq.s32.totalorder %s33, 0
      %p201 = por %p199, %p200
      %p202 = scmp.ne.s32.totalorder %s188, %s189
      %p203 = scmp.eq.s32.totalorder %s34, 1
      %p204 = por %p202, %p203
      %p206 = scmp.ne.s32.totalorder %s189, %s205
      %p207 = scmp.eq.s32.totalorder %s34, 0
      %p208 = por %p206, %p207
      %s210 = sadd.s32 %s209, 1
      %p213 = scmp.eq.s32.totalorder %s28, 1
      %p214 = scmp.ne.s32.totalorder %s209, %s211
      %p215 = scmp.eq.s32.totalorder %s28, 0
      %p216 = por %p214, %p215
      %p217 = scmp.ne.s32.totalorder %s209, %s211
      %p218 = scmp.eq.s32.totalorder %s33, 1
      %p219 = por %p217, %p218
      %p220 = scmp.ne.s32.totalorder %s211, %s212
      %p221 = scmp.eq.s32.totalorder %s33, 0
      %p222 = por %p220, %p221
      %p223 = scmp.ne.s32.totalorder %s211, %s212
      %p224 = scmp.eq.s32.totalorder %s34, 1
      %p225 = por %p223, %p224
      %p227 = scmp.ne.s32.totalorder %s212, %s226
      %p228 = scmp.eq.s32.totalorder %s34, 0
      %p229 = por %p227, %p228
      %s231 = sadd.s32 %s230, 1
      %p234 = scmp.eq.s32.totalorder %s28, 1
      %p235 = scmp.ne.s32.totalorder %s230, %s232
      %p236 = scmp.eq.s32.totalorder %s28, 0
      %p237 = por %p235, %p236
      %p238 = scmp.ne.s32.totalorder %s230, %s232
      %p239 = scmp.eq.s32.totalorder %s33, 1
      %p240 = por %p238, %p239
      %p241 = scmp.ne.s32.totalorder %s232, %s233
      %p242 = scmp.eq.s32.totalorder %s33, 0
      %p243 = por %p241, %p242
      %p244 = scmp.ne.s32.totalorder %s232, %s233
      %p245 = scmp.eq.s32.totalorder %s34, 1
      %p246 = por %p244, %p245
      %p248 = scmp.ne.s32.totalorder %s233, %s247
      %p249 = scmp.eq.s32.totalorder %s34, 0
      %p250 = por %p248, %p249
      %p251 = scmp.le.s32.totalorder 1, %s28
      %p252 = scmp.lt.s32.totalorder %s28, 3
      %p253 = pnand %p251, %p252
      %p254 = pneg %p253
      // Predicated region
      $region9: #{tpu_custom_call.1} parent=5 // pred_check
        _
      $region10: #{tpu_custom_call.1} parent=5 // pred_check_branch
        %256 = sbr.rel (%p253) target = $region12
      $region11: #{tpu_custom_call.1} parent=5 // pred_region
        %s257 = ssub.s32 %s28, 1
        // Predicated region
        $region13: #{tpu_custom_call.1} parent=11 // pred_check
          %p258 = pneg %p49
        $region14: #{tpu_custom_call.1} parent=11 // pred_check_branch
          %260 = sbr.rel (%p258) target = $region16
        $region15: #{tpu_custom_call.1} parent=11 // pred_region
          %s262 = ssub.s32 128, 128
          %263 = vsyncadd [#allocation7], %s262
          %s265 = sshll.u32 [#allocation6], 4
          %s266 = int_to_ptr.vmem [resolvable:$true] %s265
          %268 = dma.hbm_to_vmem [thread:$0]  %s1, 128, %s266, [#allocation7]
        $region16: #{tpu_custom_call.1} parent=11 // pred_fallthru
          _
        // Predicated region
        $region17: #{tpu_custom_call.1} parent=11 // pred_check
          %p269 = pneg %p70
        $region18: #{tpu_custom_call.1} parent=11 // pred_check_branch
          %271 = sbr.rel (%p269) target = $region20
        $region19: #{tpu_custom_call.1} parent=11 // pred_region
          %s273 = ssub.s32 128, 128
          %274 = vsyncadd [#allocation10], %s273
          %s276 = sshll.u32 [#allocation9], 4
          %s277 = int_to_ptr.vmem [resolvable:$true] %s276
          %279 = dma.hbm_to_vmem [thread:$0]  %s2, 128, %s277, [#allocation10]
        $region20: #{tpu_custom_call.1} parent=11 // pred_fallthru
          _
        // Predicated region
        $region21: #{tpu_custom_call.1} parent=11 // pred_check
          %p280 = pneg %p91
        $region22: #{tpu_custom_call.1} parent=11 // pred_check_branch
          %282 = sbr.rel (%p280) target = $region24
        $region23: #{tpu_custom_call.1} parent=11 // pred_region
          %s284 = ssub.s32 2048, 2048
          %285 = vsyncadd [#allocation10], %s284
          %s286 = sshll.u32 [#allocation11], 4
          %s287 = int_to_ptr.vmem [resolvable:$true] %s286
          %292 = dma.hbm_to_vmem [thread:$0]  %s3, 2048, %s287, [#allocation10], 128, 128, 8
        $region24: #{tpu_custom_call.1} parent=11 // pred_fallthru
          _
        // Predicated region
        $region25: #{tpu_custom_call.1} parent=11 // pred_check
          %p293 = pneg %p112
        $region26: #{tpu_custom_call.1} parent=11 // pred_check_branch
          %295 = sbr.rel (%p293) target = $region28
        $region27: #{tpu_custom_call.1} parent=11 // pred_region
          %s297 = ssub.s32 512, 512
          %298 = vsyncadd [#allocation13], %s297
          %s299 = sshll.u32 [#allocation12], 4
          %s300 = int_to_ptr.vmem [resolvable:$true] %s299
          %305 = dma.hbm_to_vmem [thread:$0]  %s4, 512, %s300, [#allocation13], 128, 128, 8
        $region28: #{tpu_custom_call.1} parent=11 // pred_fallthru
          _
        // Predicated region
        $region29: #{tpu_custom_call.1} parent=11 // pred_check
          %p306 = pneg %p133
        $region30: #{tpu_custom_call.1} parent=11 // pred_check_branch
          %308 = sbr.rel (%p306) target = $region32
        $region31: #{tpu_custom_call.1} parent=11 // pred_region
          _
        $region32: #{tpu_custom_call.1} parent=11 // pred_fallthru
          _
        // Predicated region
        $region33: #{tpu_custom_call.1} parent=11 // pred_check
          %p309 = pneg %p154
        $region34: #{tpu_custom_call.1} parent=11 // pred_check_branch
          %311 = sbr.rel (%p309) target = $region36
        $region35: #{tpu_custom_call.1} parent=11 // pred_region
          %s313 = ssub.s32 512, 512
          %314 = vsyncadd [#allocation13], %s313
          %s315 = sshll.u32 [#allocation14], 4
          %s316 = int_to_ptr.vmem [resolvable:$true] %s315
          %321 = dma.hbm_to_vmem [thread:$0]  %s6, 512, %s316, [#allocation13], 128, 128, 8
        $region36: #{tpu_custom_call.1} parent=11 // pred_fallthru
          _
        // Predicated region
        $region37: #{tpu_custom_call.1} parent=11 // pred_check
          %p322 = pneg %p175
        $region38: #{tpu_custom_call.1} parent=11 // pred_check_branch
          %324 = sbr.rel (%p322) target = $region40
        $region39: #{tpu_custom_call.1} parent=11 // pred_region
          _
        $region40: #{tpu_custom_call.1} parent=11 // pred_fallthru
          _
      $region12: #{tpu_custom_call.1} parent=5 // pred_fallthru
        _
      %p325 = scmp.lt.s32.totalorder %s28, 2
      // Predicated region
      $region41: #{tpu_custom_call.1} parent=5 // pred_check
        %p326 = pneg %p325
      $region42: #{tpu_custom_call.1} parent=5 // pred_check_branch
        %328 = sbr.rel (%p326) target = $region44
      $region43: #{tpu_custom_call.1} parent=5 // pred_region
        _
      $region44: #{tpu_custom_call.1} parent=5 // pred_fallthru
        _
      %p329 = scmp.le.s32.totalorder 1, %s28
      %p330 = scmp.lt.s32.totalorder %s28, 3
      %p331 = pnand %p329, %p330
      %p332 = pneg %p331
      // Predicated region
      $region45: #{tpu_custom_call.1} parent=5 // pred_check
        _
      $region46: #{tpu_custom_call.1} parent=5 // pred_check_branch
        %334 = sbr.rel (%p331) target = $region48
      $region47: #{tpu_custom_call.1} parent=5 // pred_region
        %s335 = ssub.s32 %s28, 1
        // Predicated region
        $region49: #{tpu_custom_call.1} parent=47 // pred_check
          %p336 = pneg %p49
        $region50: #{tpu_custom_call.1} parent=47 // pred_check_branch
          %338 = sbr.rel (%p336) target = $region52
        $region51: #{tpu_custom_call.1} parent=47 // pred_region
          %339 = dma.done [#allocation7], 128
        $region52: #{tpu_custom_call.1} parent=47 // pred_fallthru
          _
        // Predicated region
        $region53: #{tpu_custom_call.1} parent=47 // pred_check
          %p340 = pneg %p70
        $region54: #{tpu_custom_call.1} parent=47 // pred_check_branch
          %342 = sbr.rel (%p340) target = $region56
        $region55: #{tpu_custom_call.1} parent=47 // pred_region
          %343 = dma.done [#allocation10], 128
        $region56: #{tpu_custom_call.1} parent=47 // pred_fallthru
          _
        // Predicated region
        $region57: #{tpu_custom_call.1} parent=47 // pred_check
          %p344 = pneg %p91
        $region58: #{tpu_custom_call.1} parent=47 // pred_check_branch
          %346 = sbr.rel (%p344) target = $region60
        $region59: #{tpu_custom_call.1} parent=47 // pred_region
          %347 = dma.done [#allocation10], 2048
        $region60: #{tpu_custom_call.1} parent=47 // pred_fallthru
          _
        // Predicated region
        $region61: #{tpu_custom_call.1} parent=47 // pred_check
          %p348 = pneg %p112
        $region62: #{tpu_custom_call.1} parent=47 // pred_check_branch
          %350 = sbr.rel (%p348) target = $region64
        $region63: #{tpu_custom_call.1} parent=47 // pred_region
          %351 = dma.done [#allocation13], 512
        $region64: #{tpu_custom_call.1} parent=47 // pred_fallthru
          _
        // Predicated region
        $region65: #{tpu_custom_call.1} parent=47 // pred_check
          %p352 = pneg %p154
        $region66: #{tpu_custom_call.1} parent=47 // pred_check_branch
          %354 = sbr.rel (%p352) target = $region68
        $region67: #{tpu_custom_call.1} parent=47 // pred_region
          %355 = dma.done [#allocation13], 512
        $region68: #{tpu_custom_call.1} parent=47 // pred_fallthru
          _
        %p356 = pneg %p49
        %p357 = pneg %p46
        %p358 = pneg %p70
        %p359 = pneg %p67
        %p360 = pneg %p91
        %p361 = pneg %p88
        %p362 = pneg %p112
        %p363 = pneg %p109
        %p364 = pneg %p133
        %p365 = pneg %p130
        %p366 = pneg %p154
        %p367 = pneg %p151
        %p368 = pneg %p175
        %p369 = pneg %p172
        %p370 = pneg %p201
        %p371 = pneg %p198
        %s372 = sand.u32 %s188, 1
        %s373 = scalar_lea.sflag [#allocation8], %s372
        %s374 = sand.u32 %s188, 1
        %s375 = smul.addr %s374, 64
        %s376 = scalar_lea.vmem [#allocation15], %s375
        %p377 = pneg %p222
        %p378 = pneg %p219
        %p379 = pneg %p243
        %p380 = pneg %p240
        %s381 = smul.u32 8, %s33
        %p382 = scmp.eq.s32.totalorder %s33, 0
        // Predicated region
        $region69: #{tpu_custom_call.1} parent=47 // pred_check
          %p383 = pneg %p382
        $region70: #{tpu_custom_call.1} parent=47 // pred_check_branch
          %385 = sbr.rel (%p383) target = $region72
        $region71: #{tpu_custom_call.1} parent=47 // pred_region
          %v386 = vld [vmem:[#allocation6] sm:$0xff]
          %vm387 = vcmask 261120
          %388 = vst.msk [vmem:[#allocation2] sm:$0xff] %vm387, %v386
          %v389 = vld [vmem:[#allocation9] sm:$0xff]
          %390 = vst.msk [vmem:[#allocation3] sm:$0xff] %vm387, %v389
        $region72: #{tpu_custom_call.1} parent=47 // pred_fallthru
          _
        %v391 = vld [vmem:[#allocation11] sm:$0xff]
        %v392 = vld [vmem:[#allocation11 + $0x8] sm:$0xff]
        %v393 = vld [vmem:[#allocation11 + $0x10] sm:$0xff]
        %v394 = vld [vmem:[#allocation11 + $0x18] sm:$0xff]
        %v395 = vld [vmem:[#allocation11 + $0x20] sm:$0xff]
        %v396 = vld [vmem:[#allocation11 + $0x28] sm:$0xff]
        %v397 = vld [vmem:[#allocation11 + $0x30] sm:$0xff]
        %v398 = vld [vmem:[#allocation11 + $0x38] sm:$0xff]
        %v399 = vld [vmem:[#allocation11 + $0x40] sm:$0xff]
        %v400 = vld [vmem:[#allocation11 + $0x48] sm:$0xff]
        %v401 = vld [vmem:[#allocation11 + $0x50] sm:$0xff]
        %v402 = vld [vmem:[#allocation11 + $0x58] sm:$0xff]
        %v403 = vld [vmem:[#allocation11 + $0x60] sm:$0xff]
        %v404 = vld [vmem:[#allocation11 + $0x68] sm:$0xff]
        %v405 = vld [vmem:[#allocation11 + $0x70] sm:$0xff]
        %v406 = vld [vmem:[#allocation11 + $0x78] sm:$0xff]
        %v407 = vld [vmem:[#allocation12] sm:$0xff]
        %v408 = vld [vmem:[#allocation12 + $0x8] sm:$0xff]
        %v409 = vld [vmem:[#allocation12 + $0x10] sm:$0xff]
        %v410 = vld [vmem:[#allocation12 + $0x18] sm:$0xff]
        %v411 = vld [vmem:[%s5] sm:$0x1]
        %v412 = vld [vmem:[#allocation14] sm:$0xff]
        %v413 = vld [vmem:[#allocation14 + $0x8] sm:$0xff]
        %v414 = vld [vmem:[#allocation14 + $0x10] sm:$0xff]
        %v415 = vld [vmem:[#allocation14 + $0x18] sm:$0xff]
        %v416 = vld [vmem:[%s7] sm:$0x1]
        %v417 = vlaneseq
        %v418 = vshrl.u32 %v417, 7
        %v419 = vlaneseq
        %v420 = vand.u32 %v419, 127
        %v421 = vld [vmem:[#allocation2] sm:$0xff]
        %v422 = vld [vmem:[#allocation3] sm:$0xff]
        %vm423 = vcmp.eq.s32.totalorder %v418, 0
        %s424 = smul.u32 %s33, 64
        %s425 = sld [smem:[#allocation5 + %s424]]
        %v426 = vstv %s425
        %v427 = vsel %vm423, %v426, 0
        %vm428 = vcmp.eq.s32.totalorder %v418, 1
        %s429 = sadd.s32 %s424, 1
        %s430 = sld [smem:[#allocation5 + %s429]]
        %v431 = vstv %s430
        %v432 = vsel %vm428, %v431, %v427
        %vm433 = vcmp.eq.s32.totalorder %v418, 2
        %s434 = sadd.s32 %s424, 2
        %s435 = sld [smem:[#allocation5 + %s434]]
        %v436 = vstv %s435
        %v437 = vsel %vm433, %v436, %v432
        %vm438 = vcmp.eq.s32.totalorder %v418, 3
        %s439 = sadd.s32 %s424, 3
        %s440 = sld [smem:[#allocation5 + %s439]]
        %v441 = vstv %s440
        %v442 = vsel %vm438, %v441, %v437
        %vm443 = vcmp.eq.s32.totalorder %v418, 4
        %s444 = sadd.s32 %s424, 4
        %s445 = sld [smem:[#allocation5 + %s444]]
        %v446 = vstv %s445
        %v447 = vsel %vm443, %v446, %v442
        %vm448 = vcmp.eq.s32.totalorder %v418, 5
        %s449 = sadd.s32 %s424, 5
        %s450 = sld [smem:[#allocation5 + %s449]]
        %v451 = vstv %s450
        %v452 = vsel %vm448, %v451, %v447
        %vm453 = vcmp.eq.s32.totalorder %v418, 6
        %s454 = sadd.s32 %s424, 6
        %s455 = sld [smem:[#allocation5 + %s454]]
        %v456 = vstv %s455
        %v457 = vsel %vm453, %v456, %v452
        %vm458 = vcmp.eq.s32.totalorder %v418, 7
        %s459 = sadd.s32 %s424, 7
        %s460 = sld [smem:[#allocation5 + %s459]]
        %v461 = vstv %s460
        %v462 = vsel %vm458, %v461, %v457
        %vm463 = vcmp.eq.s32.totalorder %v420, %v462
        %v464 = vsel %vm463, 1, 0
        %v465 = vcvt.s32.f32 %v464
        %vm466 = vcmask 261120
        %v468 = vsel %vm466, %v421, 0
        %470 = vmatprep.subr.mxu0 0.0
        %471 = vmatpush1.msra.mxu0 %v407
        %472 = vmatprep.subr.mxu0 0.0
        %473 = vmatpush1.msra.mxu0 %v408
        %474 = vmatprep.subr.mxu0 0.0
        %475 = vmatpush1.msra.mxu0 %v409
        %476 = vmatprep.subr.mxu0 0.0
        %477 = vmatpush1.msra.mxu0 %v410
        %478 = vmatprep.subr.mxu0 0.0
        %479 = vmatpush1.msra.mxu0 0.0
        %480 = vmatprep.subr.mxu0 0.0
        %481 = vmatpush1.msra.mxu0 0.0
        %482 = vmatprep.subr.mxu0 0.0
        %483 = vmatpush1.msra.mxu0 0.0
        %484 = vmatprep.subr.mxu0 0.0
        %485 = vmatpush1.msra.mxu0 0.0
        %486 = vmatprep.subr.mxu0 0.0
        %487 = vmatpush1.msra.mxu0 0.0
        %488 = vmatprep.subr.mxu0 0.0
        %489 = vmatpush1.msra.mxu0 0.0
        %490 = vmatprep.subr.mxu0 0.0
        %491 = vmatpush1.msra.mxu0 0.0
        %492 = vmatprep.subr.mxu0 0.0
        %493 = vmatpush1.msra.mxu0 0.0
        %494 = vmatprep.subr.mxu0 0.0
        %495 = vmatpush1.msra.mxu0 0.0
        %496 = vmatprep.subr.mxu0 0.0
        %497 = vmatpush1.msra.mxu0 0.0
        %498 = vmatprep.subr.mxu0 0.0
        %499 = vmatpush1.msra.mxu0 0.0
        %500 = vmatprep.subr.mxu0 0.0
        %501 = vmatpush1.msra.mxu0 0.0
        %502 = vmatprep.subr.mxu0 0.0
        %503 = vmatpush1.msra.mxu0 0.0
        %504 = vmatprep.subr.mxu0 0.0
        %505 = vmatpush1.msra.mxu0 0.0
        %506 = vmatprep.subr.mxu0 0.0
        %507 = vmatpush1.msra.mxu0 0.0
        %508 = vmatprep.subr.mxu0 0.0
        %509 = vmatpush1.msra.mxu0 0.0
        %510 = vmatprep.subr.mxu0 0.0
        %511 = vmatpush1.msra.mxu0 0.0
        %512 = vmatprep.subr.mxu0 0.0
        %513 = vmatpush1.msra.mxu0 0.0
        %514 = vmatprep.subr.mxu0 0.0
        %515 = vmatpush1.msra.mxu0 0.0
        %516 = vmatprep.subr.mxu0 0.0
        %517 = vmatpush1.msra.mxu0 0.0
        %518 = vmatprep.subr.mxu0 0.0
        %519 = vmatpush1.msra.mxu0 0.0
        %520 = vmatprep.subr.mxu0 0.0
        %521 = vmatpush1.msra.mxu0 0.0
        %522 = vmatprep.subr.mxu0 0.0
        %523 = vmatpush1.msra.mxu0 0.0
        %524 = vmatprep.subr.mxu0 0.0
        %525 = vmatpush1.msra.mxu0 0.0
        %526 = vmatprep.subr.mxu0 0.0
        %527 = vmatpush1.msra.mxu0 0.0
        %528 = vmatprep.subr.mxu0 0.0
        %529 = vmatpush1.msra.mxu0 0.0
        %530 = vmatprep.subr.mxu0 0.0
        %531 = vmatpush1.msra.mxu0 0.0
        %532 = vmatprep.subr.mxu0 0.0
        %533 = vmatpush1.msra.mxu0 0.0
        %534 = vmatprep.mubr.f32.mxu0 0.0
        %535 = vmatmul.mubr.f32.gmra.mrb[0].mxu0 %v468
        %v536 = vpop.f32.mrb[0].mxu0
        %v537 = vadd.f32 0.0, %v536
        %v538 = vpop.f32.mrb[0].mxu0
        %539 = vdwg.mxu0
        %540 = vmatprep.subr.mxu0 0.0
        %541 = vmatpush1.msra.mxu0 %v391
        %542 = vmatprep.subr.mxu0 0.0
        %543 = vmatpush1.msra.mxu0 %v392
        %544 = vmatprep.subr.mxu0 0.0
        %545 = vmatpush1.msra.mxu0 %v393
        %546 = vmatprep.subr.mxu0 0.0
        %547 = vmatpush1.msra.mxu0 %v394
        %548 = vmatprep.subr.mxu0 0.0
        %549 = vmatpush1.msra.mxu0 %v395
        %550 = vmatprep.subr.mxu0 0.0
        %551 = vmatpush1.msra.mxu0 %v396
        %552 = vmatprep.subr.mxu0 0.0
        %553 = vmatpush1.msra.mxu0 %v397
        %554 = vmatprep.subr.mxu0 0.0
        %555 = vmatpush1.msra.mxu0 %v398
        %556 = vmatprep.subr.mxu0 0.0
        %557 = vmatpush1.msra.mxu0 %v399
        %558 = vmatprep.subr.mxu0 0.0
        %559 = vmatpush1.msra.mxu0 %v400
        %560 = vmatprep.subr.mxu0 0.0
        %561 = vmatpush1.msra.mxu0 %v401
        %562 = vmatprep.subr.mxu0 0.0
        %563 = vmatpush1.msra.mxu0 %v402
        %564 = vmatprep.subr.mxu0 0.0
        %565 = vmatpush1.msra.mxu0 %v403
        %566 = vmatprep.subr.mxu0 0.0
        %567 = vmatpush1.msra.mxu0 %v404
        %568 = vmatprep.subr.mxu0 0.0
        %569 = vmatpush1.msra.mxu0 %v405
        %570 = vmatprep.subr.mxu0 0.0
        %571 = vmatpush1.msra.mxu0 %v406
        %572 = vmatprep.subr.mxu0 0.0
        %573 = vmatpush1.msra.mxu0 0.0
        %574 = vmatprep.subr.mxu0 0.0
        %575 = vmatpush1.msra.mxu0 0.0
        %576 = vmatprep.subr.mxu0 0.0
        %577 = vmatpush1.msra.mxu0 0.0
        %578 = vmatprep.subr.mxu0 0.0
        %579 = vmatpush1.msra.mxu0 0.0
        %580 = vmatprep.subr.mxu0 0.0
        %581 = vmatpush1.msra.mxu0 0.0
        %582 = vmatprep.subr.mxu0 0.0
        %583 = vmatpush1.msra.mxu0 0.0
        %584 = vmatprep.subr.mxu0 0.0
        %585 = vmatpush1.msra.mxu0 0.0
        %586 = vmatprep.subr.mxu0 0.0
        %587 = vmatpush1.msra.mxu0 0.0
        %588 = vmatprep.subr.mxu0 0.0
        %589 = vmatpush1.msra.mxu0 0.0
        %590 = vmatprep.subr.mxu0 0.0
        %591 = vmatpush1.msra.mxu0 0.0
        %592 = vmatprep.subr.mxu0 0.0
        %593 = vmatpush1.msra.mxu0 0.0
        %594 = vmatprep.subr.mxu0 0.0
        %595 = vmatpush1.msra.mxu0 0.0
        %596 = vmatprep.subr.mxu0 0.0
        %597 = vmatpush1.msra.mxu0 0.0
        %598 = vmatprep.subr.mxu0 0.0
        %599 = vmatpush1.msra.mxu0 0.0
        %600 = vmatprep.subr.mxu0 0.0
        %601 = vmatpush1.msra.mxu0 0.0
        %602 = vmatprep.subr.mxu0 0.0
        %603 = vmatpush1.msra.mxu0 0.0
        %604 = vmatprep.mubr.f32.mxu0 0.0
        %605 = vmatmul.mubr.f32.gmra.mrb[0].mxu0 %v465
        %v606 = vpop.f32.mrb[0].mxu0
        %v607 = vadd.f32 %v537, %v606
        %v608 = vpop.f32.mrb[0].mxu0
        %609 = vdwg.mxu0
        %v611 = vlaneseq
        %v612 = vshrl.u32 %v611, 7
        %v613 = vsub.s32 0, %v612
        %v614 = vrot.slane %v411, %v613
        %v616 = vadd.f32 %v607, %v614
        %v617 = vxor.u32 %v616, 2147483648
        %v618 = vmul.f32 %v617, 1.442695
        %v619 = vpow.pop %v618
        %v620 = vadd.f32 %v619, 1.0
        %v621 = vrcp.pop %v620
        %v622 = vmul.f32 1.0, %v621
        %v623 = vtanh.pop %v616
        %625 = vrot.lane.b32.xlu0 %v422, 32
        %v626 = vpop.permute.xlu0 %625
        %v628 = vmul.f32 %v622, %v626
        %630 = vrot.lane.b32.xlu0 %v623, 64
        %v631 = vpop.permute.xlu0 %630
        %v633 = vmul.f32 %v622, %v631
        %635 = vrot.lane.b32.xlu0 %v633, 32
        %v636 = vpop.permute.xlu0 %635
        %v638 = vadd.f32 %v628, %v636
        %v639 = vtanh.pop %v638
        %641 = vrot.lane.b32.xlu0 %v639, 64
        %v642 = vpop.permute.xlu0 %641
        %v644 = vmul.f32 %v622, %v642
        %v646 = vlaneseq
        %v647 = vshrl.u32 %v646, 7
        %v648 = vsub.s32 0, %v647
        %v649 = vrot.slane %v416, %v648
        %652 = vrot.lane.b32.xlu0 %v644, 32
        %v653 = vpop.permute.xlu0 %652
        %v654 = vsel %vm466, %v653, 0
        %656 = vmatprep.subr.mxu0 0.0
        %657 = vmatpush1.msra.mxu0 %v412
        %658 = vmatprep.subr.mxu0 0.0
        %659 = vmatpush1.msra.mxu0 %v413
        %660 = vmatprep.subr.mxu0 0.0
        %661 = vmatpush1.msra.mxu0 %v414
        %662 = vmatprep.subr.mxu0 0.0
        %663 = vmatpush1.msra.mxu0 %v415
        %664 = vmatprep.subr.mxu0 0.0
        %665 = vmatpush1.msra.mxu0 0.0
        %666 = vmatprep.subr.mxu0 0.0
        %667 = vmatpush1.msra.mxu0 0.0
        %668 = vmatprep.subr.mxu0 0.0
        %669 = vmatpush1.msra.mxu0 0.0
        %670 = vmatprep.subr.mxu0 0.0
        %671 = vmatpush1.msra.mxu0 0.0
        %672 = vmatprep.subr.mxu0 0.0
        %673 = vmatpush1.msra.mxu0 0.0
        %674 = vmatprep.subr.mxu0 0.0
        %675 = vmatpush1.msra.mxu0 0.0
        %676 = vmatprep.subr.mxu0 0.0
        %677 = vmatpush1.msra.mxu0 0.0
        %678 = vmatprep.subr.mxu0 0.0
        %679 = vmatpush1.msra.mxu0 0.0
        %680 = vmatprep.subr.mxu0 0.0
        %681 = vmatpush1.msra.mxu0 0.0
        %682 = vmatprep.subr.mxu0 0.0
        %683 = vmatpush1.msra.mxu0 0.0
        %684 = vmatprep.subr.mxu0 0.0
        %685 = vmatpush1.msra.mxu0 0.0
        %686 = vmatprep.subr.mxu0 0.0
        %687 = vmatpush1.msra.mxu0 0.0
        %688 = vmatprep.subr.mxu0 0.0
        %689 = vmatpush1.msra.mxu0 0.0
        %690 = vmatprep.subr.mxu0 0.0
        %691 = vmatpush1.msra.mxu0 0.0
        %692 = vmatprep.subr.mxu0 0.0
        %693 = vmatpush1.msra.mxu0 0.0
        %694 = vmatprep.subr.mxu0 0.0
        %695 = vmatpush1.msra.mxu0 0.0
        %696 = vmatprep.subr.mxu0 0.0
        %697 = vmatpush1.msra.mxu0 0.0
        %698 = vmatprep.subr.mxu0 0.0
        %699 = vmatpush1.msra.mxu0 0.0
        %700 = vmatprep.subr.mxu0 0.0
        %701 = vmatpush1.msra.mxu0 0.0
        %702 = vmatprep.subr.mxu0 0.0
        %703 = vmatpush1.msra.mxu0 0.0
        %704 = vmatprep.subr.mxu0 0.0
        %705 = vmatpush1.msra.mxu0 0.0
        %706 = vmatprep.subr.mxu0 0.0
        %707 = vmatpush1.msra.mxu0 0.0
        %708 = vmatprep.subr.mxu0 0.0
        %709 = vmatpush1.msra.mxu0 0.0
        %710 = vmatprep.subr.mxu0 0.0
        %711 = vmatpush1.msra.mxu0 0.0
        %712 = vmatprep.subr.mxu0 0.0
        %713 = vmatpush1.msra.mxu0 0.0
        %714 = vmatprep.subr.mxu0 0.0
        %715 = vmatpush1.msra.mxu0 0.0
        %716 = vmatprep.subr.mxu0 0.0
        %717 = vmatpush1.msra.mxu0 0.0
        %718 = vmatprep.subr.mxu0 0.0
        %719 = vmatpush1.msra.mxu0 0.0
        %720 = vmatprep.mubr.f32.mxu0 0.0
        %721 = vmatmul.mubr.f32.gmra.mrb[0].mxu0 %v654
        %v722 = vpop.f32.mrb[0].mxu0
        %v723 = vadd.f32 %v649, %v722
        %v724 = vpop.f32.mrb[0].mxu0
        %725 = vdwg.mxu0
        %726 = vst [vmem:[%s376] sm:$0xff] %v723
        %s727 = smul.u32 %s33, 8
        %s728 = sadd.s32 %s727, 1
        %s729 = smul.u32 %s728, 8
        %s730 = sld [smem:[#allocation5 + %s729]]
        %v731 = vstv %s730
        %v732 = vsel %vm423, %v731, 0
        %s733 = sadd.s32 %s729, 1
        %s734 = sld [smem:[#allocation5 + %s733]]
        %v735 = vstv %s734
        %v736 = vsel %vm428, %v735, %v732
        %s737 = sadd.s32 %s729, 2
        %s738 = sld [smem:[#allocation5 + %s737]]
        %v739 = vstv %s738
        %v740 = vsel %vm433, %v739, %v736
        %s741 = sadd.s32 %s729, 3
        %s742 = sld [smem:[#allocation5 + %s741]]
        %v743 = vstv %s742
        %v744 = vsel %vm438, %v743, %v740
        %s745 = sadd.s32 %s729, 4
        %s746 = sld [smem:[#allocation5 + %s745]]
        %v747 = vstv %s746
        %v748 = vsel %vm443, %v747, %v744
        %s749 = sadd.s32 %s729, 5
        %s750 = sld [smem:[#allocation5 + %s749]]
        %v751 = vstv %s750
        %v752 = vsel %vm448, %v751, %v748
        %s753 = sadd.s32 %s729, 6
        %s754 = sld [smem:[#allocation5 + %s753]]
        %v755 = vstv %s754
        %v756 = vsel %vm453, %v755, %v752
        %s757 = sadd.s32 %s729, 7
        %s758 = sld [smem:[#allocation5 + %s757]]
        %v759 = vstv %s758
        %v760 = vsel %vm458, %v759, %v756
        %vm761 = vcmp.eq.s32.totalorder %v420, %v760
        %v762 = vsel %vm761, 1, 0
        %v763 = vcvt.s32.f32 %v762
        %764 = vmatprep.subr.mxu0 0.0
        %765 = vmatpush1.msra.mxu0 %v407
        %766 = vmatprep.subr.mxu0 0.0
        %767 = vmatpush1.msra.mxu0 %v408
        %768 = vmatprep.subr.mxu0 0.0
        %769 = vmatpush1.msra.mxu0 %v409
        %770 = vmatprep.subr.mxu0 0.0
        %771 = vmatpush1.msra.mxu0 %v410
        %772 = vmatprep.subr.mxu0 0.0
        %773 = vmatpush1.msra.mxu0 0.0
        %774 = vmatprep.subr.mxu0 0.0
        %775 = vmatpush1.msra.mxu0 0.0
        %776 = vmatprep.subr.mxu0 0.0
        %777 = vmatpush1.msra.mxu0 0.0
        %778 = vmatprep.subr.mxu0 0.0
        %779 = vmatpush1.msra.mxu0 0.0
        %780 = vmatprep.subr.mxu0 0.0
        %781 = vmatpush1.msra.mxu0 0.0
        %782 = vmatprep.subr.mxu0 0.0
        %783 = vmatpush1.msra.mxu0 0.0
        %784 = vmatprep.subr.mxu0 0.0
        %785 = vmatpush1.msra.mxu0 0.0
        %786 = vmatprep.subr.mxu0 0.0
        %787 = vmatpush1.msra.mxu0 0.0
        %788 = vmatprep.subr.mxu0 0.0
        %789 = vmatpush1.msra.mxu0 0.0
        %790 = vmatprep.subr.mxu0 0.0
        %791 = vmatpush1.msra.mxu0 0.0
        %792 = vmatprep.subr.mxu0 0.0
        %793 = vmatpush1.msra.mxu0 0.0
        %794 = vmatprep.subr.mxu0 0.0
        %795 = vmatpush1.msra.mxu0 0.0
        %796 = vmatprep.subr.mxu0 0.0
        %797 = vmatpush1.msra.mxu0 0.0
        %798 = vmatprep.subr.mxu0 0.0
        %799 = vmatpush1.msra.mxu0 0.0
        %800 = vmatprep.subr.mxu0 0.0
        %801 = vmatpush1.msra.mxu0 0.0
        %802 = vmatprep.subr.mxu0 0.0
        %803 = vmatpush1.msra.mxu0 0.0
        %804 = vmatprep.subr.mxu0 0.0
        %805 = vmatpush1.msra.mxu0 0.0
        %806 = vmatprep.subr.mxu0 0.0
        %807 = vmatpush1.msra.mxu0 0.0
        %808 = vmatprep.subr.mxu0 0.0
        %809 = vmatpush1.msra.mxu0 0.0
        %810 = vmatprep.subr.mxu0 0.0
        %811 = vmatpush1.msra.mxu0 0.0
        %812 = vmatprep.subr.mxu0 0.0
        %813 = vmatpush1.msra.mxu0 0.0
        %814 = vmatprep.subr.mxu0 0.0
        %815 = vmatpush1.msra.mxu0 0.0
        %816 = vmatprep.subr.mxu0 0.0
        %817 = vmatpush1.msra.mxu0 0.0
        %818 = vmatprep.subr.mxu0 0.0
        %819 = vmatpush1.msra.mxu0 0.0
        %820 = vmatprep.subr.mxu0 0.0
        %821 = vmatpush1.msra.mxu0 0.0
        %822 = vmatprep.subr.mxu0 0.0
        %823 = vmatpush1.msra.mxu0 0.0
        %824 = vmatprep.subr.mxu0 0.0
        %825 = vmatpush1.msra.mxu0 0.0
        %826 = vmatprep.subr.mxu0 0.0
        %827 = vmatpush1.msra.mxu0 0.0
        %828 = vmatprep.mubr.f32.mxu0 0.0
        %829 = vmatmul.mubr.f32.gmra.mrb[0].mxu0 %v654
        %v830 = vpop.f32.mrb[0].mxu0
        %v831 = vadd.f32 0.0, %v830
        %v832 = vpop.f32.mrb[0].mxu0
        %833 = vdwg.mxu0
        %834 = vmatprep.subr.mxu0 0.0
        %835 = vmatpush1.msra.mxu0 %v391
        %836 = vmatprep.subr.mxu0 0.0
        %837 = vmatpush1.msra.mxu0 %v392
        %838 = vmatprep.subr.mxu0 0.0
        %839 = vmatpush1.msra.mxu0 %v393
        %840 = vmatprep.subr.mxu0 0.0
        %841 = vmatpush1.msra.mxu0 %v394
        %842 = vmatprep.subr.mxu0 0.0
        %843 = vmatpush1.msra.mxu0 %v395
        %844 = vmatprep.subr.mxu0 0.0
        %845 = vmatpush1.msra.mxu0 %v396
        %846 = vmatprep.subr.mxu0 0.0
        %847 = vmatpush1.msra.mxu0 %v397
        %848 = vmatprep.subr.mxu0 0.0
        %849 = vmatpush1.msra.mxu0 %v398
        %850 = vmatprep.subr.mxu0 0.0
        %851 = vmatpush1.msra.mxu0 %v399
        %852 = vmatprep.subr.mxu0 0.0
        %853 = vmatpush1.msra.mxu0 %v400
        %854 = vmatprep.subr.mxu0 0.0
        %855 = vmatpush1.msra.mxu0 %v401
        %856 = vmatprep.subr.mxu0 0.0
        %857 = vmatpush1.msra.mxu0 %v402
        %858 = vmatprep.subr.mxu0 0.0
        %859 = vmatpush1.msra.mxu0 %v403
        %860 = vmatprep.subr.mxu0 0.0
        %861 = vmatpush1.msra.mxu0 %v404
        %862 = vmatprep.subr.mxu0 0.0
        %863 = vmatpush1.msra.mxu0 %v405
        %864 = vmatprep.subr.mxu0 0.0
        %865 = vmatpush1.msra.mxu0 %v406
        %866 = vmatprep.subr.mxu0 0.0
        %867 = vmatpush1.msra.mxu0 0.0
        %868 = vmatprep.subr.mxu0 0.0
        %869 = vmatpush1.msra.mxu0 0.0
        %870 = vmatprep.subr.mxu0 0.0
        %871 = vmatpush1.msra.mxu0 0.0
        %872 = vmatprep.subr.mxu0 0.0
        %873 = vmatpush1.msra.mxu0 0.0
        %874 = vmatprep.subr.mxu0 0.0
        %875 = vmatpush1.msra.mxu0 0.0
        %876 = vmatprep.subr.mxu0 0.0
        %877 = vmatpush1.msra.mxu0 0.0
        %878 = vmatprep.subr.mxu0 0.0
        %879 = vmatpush1.msra.mxu0 0.0
        %880 = vmatprep.subr.mxu0 0.0
        %881 = vmatpush1.msra.mxu0 0.0
        %882 = vmatprep.subr.mxu0 0.0
        %883 = vmatpush1.msra.mxu0 0.0
        %884 = vmatprep.subr.mxu0 0.0
        %885 = vmatpush1.msra.mxu0 0.0
        %886 = vmatprep.subr.mxu0 0.0
        %887 = vmatpush1.msra.mxu0 0.0
        %888 = vmatprep.subr.mxu0 0.0
        %889 = vmatpush1.msra.mxu0 0.0
        %890 = vmatprep.subr.mxu0 0.0
        %891 = vmatpush1.msra.mxu0 0.0
        %892 = vmatprep.subr.mxu0 0.0
        %893 = vmatpush1.msra.mxu0 0.0
        %894 = vmatprep.subr.mxu0 0.0
        %895 = vmatpush1.msra.mxu0 0.0
        %896 = vmatprep.subr.mxu0 0.0
        %897 = vmatpush1.msra.mxu0 0.0
        %898 = vmatprep.mubr.f32.mxu0 0.0
        %899 = vmatmul.mubr.f32.gmra.mrb[0].mxu0 %v763
        %v900 = vpop.f32.mrb[0].mxu0
        %v901 = vadd.f32 %v831, %v900
        %v902 = vpop.f32.mrb[0].mxu0
        %903 = vdwg.mxu0
        %v904 = vadd.f32 %v901, %v614
        %v905 = vxor.u32 %v904, 2147483648
        %v906 = vmul.f32 %v905, 1.442695
        %v907 = vpow.pop %v906
        %v908 = vadd.f32 %v907, 1.0
        %v909 = vrcp.pop %v908
        %v910 = vmul.f32 1.0, %v909
        %v911 = vtanh.pop %v904
        %v912 = vmul.f32 %v910, %v638
        %914 = vrot.lane.b32.xlu0 %v911, 64
        %v915 = vpop.permute.xlu0 %914
        %v917 = vmul.f32 %v910, %v915
        %919 = vrot.lane.b32.xlu0 %v917, 32
        %v920 = vpop.permute.xlu0 %919
        %v922 = vadd.f32 %v912, %v920
        %v923 = vtanh.pop %v922
        %925 = vrot.lane.b32.xlu0 %v923, 64
        %v926 = vpop.permute.xlu0 %925
        %v928 = vmul.f32 %v910, %v926
        %930 = vrot.lane.b32.xlu0 %v928, 32
        %v931 = vpop.permute.xlu0 %930
        %v932 = vsel %vm466, %v931, 0
        %934 = vmatprep.subr.mxu0 0.0
        %935 = vmatpush1.msra.mxu0 %v412
        %936 = vmatprep.subr.mxu0 0.0
        %937 = vmatpush1.msra.mxu0 %v413
        %938 = vmatprep.subr.mxu0 0.0
        %939 = vmatpush1.msra.mxu0 %v414
        %940 = vmatprep.subr.mxu0 0.0
        %941 = vmatpush1.msra.mxu0 %v415
        %942 = vmatprep.subr.mxu0 0.0
        %943 = vmatpush1.msra.mxu0 0.0
        %944 = vmatprep.subr.mxu0 0.0
        %945 = vmatpush1.msra.mxu0 0.0
        %946 = vmatprep.subr.mxu0 0.0
        %947 = vmatpush1.msra.mxu0 0.0
        %948 = vmatprep.subr.mxu0 0.0
        %949 = vmatpush1.msra.mxu0 0.0
        %950 = vmatprep.subr.mxu0 0.0
        %951 = vmatpush1.msra.mxu0 0.0
        %952 = vmatprep.subr.mxu0 0.0
        %953 = vmatpush1.msra.mxu0 0.0
        %954 = vmatprep.subr.mxu0 0.0
        %955 = vmatpush1.msra.mxu0 0.0
        %956 = vmatprep.subr.mxu0 0.0
        %957 = vmatpush1.msra.mxu0 0.0
        %958 = vmatprep.subr.mxu0 0.0
        %959 = vmatpush1.msra.mxu0 0.0
        %960 = vmatprep.subr.mxu0 0.0
        %961 = vmatpush1.msra.mxu0 0.0
        %962 = vmatprep.subr.mxu0 0.0
        %963 = vmatpush1.msra.mxu0 0.0
        %964 = vmatprep.subr.mxu0 0.0
        %965 = vmatpush1.msra.mxu0 0.0
        %966 = vmatprep.subr.mxu0 0.0
        %967 = vmatpush1.msra.mxu0 0.0
        %968 = vmatprep.subr.mxu0 0.0
        %969 = vmatpush1.msra.mxu0 0.0
        %970 = vmatprep.subr.mxu0 0.0
        %971 = vmatpush1.msra.mxu0 0.0
        %972 = vmatprep.subr.mxu0 0.0
        %973 = vmatpush1.msra.mxu0 0.0
        %974 = vmatprep.subr.mxu0 0.0
        %975 = vmatpush1.msra.mxu0 0.0
        %976 = vmatprep.subr.mxu0 0.0
        %977 = vmatpush1.msra.mxu0 0.0
        %978 = vmatprep.subr.mxu0 0.0
        %979 = vmatpush1.msra.mxu0 0.0
        %980 = vmatprep.subr.mxu0 0.0
        %981 = vmatpush1.msra.mxu0 0.0
        %982 = vmatprep.subr.mxu0 0.0
        %983 = vmatpush1.msra.mxu0 0.0
        %984 = vmatprep.subr.mxu0 0.0
        %985 = vmatpush1.msra.mxu0 0.0
        %986 = vmatprep.subr.mxu0 0.0
        %987 = vmatpush1.msra.mxu0 0.0
        %988 = vmatprep.subr.mxu0 0.0
        %989 = vmatpush1.msra.mxu0 0.0
        %990 = vmatprep.subr.mxu0 0.0
        %991 = vmatpush1.msra.mxu0 0.0
        %992 = vmatprep.subr.mxu0 0.0
        %993 = vmatpush1.msra.mxu0 0.0
        %994 = vmatprep.subr.mxu0 0.0
        %995 = vmatpush1.msra.mxu0 0.0
        %996 = vmatprep.subr.mxu0 0.0
        %997 = vmatpush1.msra.mxu0 0.0
        %998 = vmatprep.mubr.f32.mxu0 0.0
        %999 = vmatmul.mubr.f32.gmra.mrb[0].mxu0 %v932
        %v1000 = vpop.f32.mrb[0].mxu0
        %v1001 = vadd.f32 %v649, %v1000
        %v1002 = vpop.f32.mrb[0].mxu0
        %1003 = vdwg.mxu0
        %s1004 = scalar_lea.vmem %s376, 8 [#allocation15]
        %1005 = vst [vmem:[%s1004] sm:$0xff] %v1001
        %s1006 = sadd.s32 %s727, 2
        %s1007 = smul.u32 %s1006, 8
        %s1008 = sld [smem:[#allocation5 + %s1007]]
        %v1009 = vstv %s1008
        %v1010 = vsel %vm423, %v1009, 0
        %s1011 = sadd.s32 %s1007, 1
        %s1012 = sld [smem:[#allocation5 + %s1011]]
        %v1013 = vstv %s1012
        %v1014 = vsel %vm428, %v1013, %v1010
        %s1015 = sadd.s32 %s1007, 2
        %s1016 = sld [smem:[#allocation5 + %s1015]]
        %v1017 = vstv %s1016
        %v1018 = vsel %vm433, %v1017, %v1014
        %s1019 = sadd.s32 %s1007, 3
        %s1020 = sld [smem:[#allocation5 + %s1019]]
        %v1021 = vstv %s1020
        %v1022 = vsel %vm438, %v1021, %v1018
        %s1023 = sadd.s32 %s1007, 4
        %s1024 = sld [smem:[#allocation5 + %s1023]]
        %v1025 = vstv %s1024
        %v1026 = vsel %vm443, %v1025, %v1022
        %s1027 = sadd.s32 %s1007, 5
        %s1028 = sld [smem:[#allocation5 + %s1027]]
        %v1029 = vstv %s1028
        %v1030 = vsel %vm448, %v1029, %v1026
        %s1031 = sadd.s32 %s1007, 6
        %s1032 = sld [smem:[#allocation5 + %s1031]]
        %v1033 = vstv %s1032
        %v1034 = vsel %vm453, %v1033, %v1030
        %s1035 = sadd.s32 %s1007, 7
        %s1036 = sld [smem:[#allocation5 + %s1035]]
        %v1037 = vstv %s1036
        %v1038 = vsel %vm458, %v1037, %v1034
        %vm1039 = vcmp.eq.s32.totalorder %v420, %v1038
        %v1040 = vsel %vm1039, 1, 0
        %v1041 = vcvt.s32.f32 %v1040
        %1042 = vmatprep.subr.mxu0 0.0
        %1043 = vmatpush1.msra.mxu0 %v407
        %1044 = vmatprep.subr.mxu0 0.0
        %1045 = vmatpush1.msra.mxu0 %v408
        %1046 = vmatprep.subr.mxu0 0.0
        %1047 = vmatpush1.msra.mxu0 %v409
        %1048 = vmatprep.subr.mxu0 0.0
        %1049 = vmatpush1.msra.mxu0 %v410
        %1050 = vmatprep.subr.mxu0 0.0
        %1051 = vmatpush1.msra.mxu0 0.0
        %1052 = vmatprep.subr.mxu0 0.0
        %1053 = vmatpush1.msra.mxu0 0.0
        %1054 = vmatprep.subr.mxu0 0.0
        %1055 = vmatpush1.msra.mxu0 0.0
        %1056 = vmatprep.subr.mxu0 0.0
        %1057 = vmatpush1.msra.mxu0 0.0
        %1058 = vmatprep.subr.mxu0 0.0
        %1059 = vmatpush1.msra.mxu0 0.0
        %1060 = vmatprep.subr.mxu0 0.0
        %1061 = vmatpush1.msra.mxu0 0.0
        %1062 = vmatprep.subr.mxu0 0.0
        %1063 = vmatpush1.msra.mxu0 0.0
        %1064 = vmatprep.subr.mxu0 0.0
        %1065 = vmatpush1.msra.mxu0 0.0
        %1066 = vmatprep.subr.mxu0 0.0
        %1067 = vmatpush1.msra.mxu0 0.0
        %1068 = vmatprep.subr.mxu0 0.0
        %1069 = vmatpush1.msra.mxu0 0.0
        %1070 = vmatprep.subr.mxu0 0.0
        %1071 = vmatpush1.msra.mxu0 0.0
        %1072 = vmatprep.subr.mxu0 0.0
        %1073 = vmatpush1.msra.mxu0 0.0
        %1074 = vmatprep.subr.mxu0 0.0
        %1075 = vmatpush1.msra.mxu0 0.0
        %1076 = vmatprep.subr.mxu0 0.0
        %1077 = vmatpush1.msra.mxu0 0.0
        %1078 = vmatprep.subr.mxu0 0.0
        %1079 = vmatpush1.msra.mxu0 0.0
        %1080 = vmatprep.subr.mxu0 0.0
        %1081 = vmatpush1.msra.mxu0 0.0
        %1082 = vmatprep.subr.mxu0 0.0
        %1083 = vmatpush1.msra.mxu0 0.0
        %1084 = vmatprep.subr.mxu0 0.0
        %1085 = vmatpush1.msra.mxu0 0.0
        %1086 = vmatprep.subr.mxu0 0.0
        %1087 = vmatpush1.msra.mxu0 0.0
        %1088 = vmatprep.subr.mxu0 0.0
        %1089 = vmatpush1.msra.mxu0 0.0
        %1090 = vmatprep.subr.mxu0 0.0
        %1091 = vmatpush1.msra.mxu0 0.0
        %1092 = vmatprep.subr.mxu0 0.0
        %1093 = vmatpush1.msra.mxu0 0.0
        %1094 = vmatprep.subr.mxu0 0.0
        %1095 = vmatpush1.msra.mxu0 0.0
        %1096 = vmatprep.subr.mxu0 0.0
        %1097 = vmatpush1.msra.mxu0 0.0
        %1098 = vmatprep.subr.mxu0 0.0
        %1099 = vmatpush1.msra.mxu0 0.0
        %1100 = vmatprep.subr.mxu0 0.0
        %1101 = vmatpush1.msra.mxu0 0.0
        %1102 = vmatprep.subr.mxu0 0.0
        %1103 = vmatpush1.msra.mxu0 0.0
        %1104 = vmatprep.subr.mxu0 0.0
        %1105 = vmatpush1.msra.mxu0 0.0
        %1106 = vmatprep.mubr.f32.mxu0 0.0
        %1107 = vmatmul.mubr.f32.gmra.mrb[0].mxu0 %v932
        %v1108 = vpop.f32.mrb[0].mxu0
        %v1109 = vadd.f32 0.0, %v1108
        %v1110 = vpop.f32.mrb[0].mxu0
        %1111 = vdwg.mxu0
        %1112 = vmatprep.subr.mxu0 0.0
        %1113 = vmatpush1.msra.mxu0 %v391
        %1114 = vmatprep.subr.mxu0 0.0
        %1115 = vmatpush1.msra.mxu0 %v392
        %1116 = vmatprep.subr.mxu0 0.0
        %1117 = vmatpush1.msra.mxu0 %v393
        %1118 = vmatprep.subr.mxu0 0.0
        %1119 = vmatpush1.msra.mxu0 %v394
        %1120 = vmatprep.subr.mxu0 0.0
        %1121 = vmatpush1.msra.mxu0 %v395
        %1122 = vmatprep.subr.mxu0 0.0
        %1123 = vmatpush1.msra.mxu0 %v396
        %1124 = vmatprep.subr.mxu0 0.0
        %1125 = vmatpush1.msra.mxu0 %v397
        %1126 = vmatprep.subr.mxu0 0.0
        %1127 = vmatpush1.msra.mxu0 %v398
        %1128 = vmatprep.subr.mxu0 0.0
        %1129 = vmatpush1.msra.mxu0 %v399
        %1130 = vmatprep.subr.mxu0 0.0
        %1131 = vmatpush1.msra.mxu0 %v400
        %1132 = vmatprep.subr.mxu0 0.0
        %1133 = vmatpush1.msra.mxu0 %v401
        %1134 = vmatprep.subr.mxu0 0.0
        %1135 = vmatpush1.msra.mxu0 %v402
        %1136 = vmatprep.subr.mxu0 0.0
        %1137 = vmatpush1.msra.mxu0 %v403
        %1138 = vmatprep.subr.mxu0 0.0
        %1139 = vmatpush1.msra.mxu0 %v404
        %1140 = vmatprep.subr.mxu0 0.0
        %1141 = vmatpush1.msra.mxu0 %v405
        %1142 = vmatprep.subr.mxu0 0.0
        %1143 = vmatpush1.msra.mxu0 %v406
        %1144 = vmatprep.subr.mxu0 0.0
        %1145 = vmatpush1.msra.mxu0 0.0
        %1146 = vmatprep.subr.mxu0 0.0
        %1147 = vmatpush1.msra.mxu0 0.0
        %1148 = vmatprep.subr.mxu0 0.0
        %1149 = vmatpush1.msra.mxu0 0.0
        %1150 = vmatprep.subr.mxu0 0.0
        %1151 = vmatpush1.msra.mxu0 0.0
        %1152 = vmatprep.subr.mxu0 0.0
        %1153 = vmatpush1.msra.mxu0 0.0
        %1154 = vmatprep.subr.mxu0 0.0
        %1155 = vmatpush1.msra.mxu0 0.0
        %1156 = vmatprep.subr.mxu0 0.0
        %1157 = vmatpush1.msra.mxu0 0.0
        %1158 = vmatprep.subr.mxu0 0.0
        %1159 = vmatpush1.msra.mxu0 0.0
        %1160 = vmatprep.subr.mxu0 0.0
        %1161 = vmatpush1.msra.mxu0 0.0
        %1162 = vmatprep.subr.mxu0 0.0
        %1163 = vmatpush1.msra.mxu0 0.0
        %1164 = vmatprep.subr.mxu0 0.0
        %1165 = vmatpush1.msra.mxu0 0.0
        %1166 = vmatprep.subr.mxu0 0.0
        %1167 = vmatpush1.msra.mxu0 0.0
        %1168 = vmatprep.subr.mxu0 0.0
        %1169 = vmatpush1.msra.mxu0 0.0
        %1170 = vmatprep.subr.mxu0 0.0
        %1171 = vmatpush1.msra.mxu0 0.0
        %1172 = vmatprep.subr.mxu0 0.0
        %1173 = vmatpush1.msra.mxu0 0.0
        %1174 = vmatprep.subr.mxu0 0.0
        %1175 = vmatpush1.msra.mxu0 0.0
        %1176 = vmatprep.mubr.f32.mxu0 0.0
        %1177 = vmatmul.mubr.f32.gmra.mrb[0].mxu0 %v1041
        %v1178 = vpop.f32.mrb[0].mxu0
        %v1179 = vadd.f32 %v1109, %v1178
        %v1180 = vpop.f32.mrb[0].mxu0
        %1181 = vdwg.mxu0
        %v1182 = vadd.f32 %v1179, %v614
        %v1183 = vxor.u32 %v1182, 2147483648
        %v1184 = vmul.f32 %v1183, 1.442695
        %v1185 = vpow.pop %v1184
        %v1186 = vadd.f32 %v1185, 1.0
        %v1187 = vrcp.pop %v1186
        %v1188 = vmul.f32 1.0, %v1187
        %v1189 = vtanh.pop %v1182
        %v1190 = vmul.f32 %v1188, %v922
        %1192 = vrot.lane.b32.xlu0 %v1189, 64
        %v1193 = vpop.permute.xlu0 %1192
        %v1195 = vmul.f32 %v1188, %v1193
        %1197 = vrot.lane.b32.xlu0 %v1195, 32
        %v1198 = vpop.permute.xlu0 %1197
        %v1200 = vadd.f32 %v1190, %v1198
        %v1201 = vtanh.pop %v1200
        %1203 = vrot.lane.b32.xlu0 %v1201, 64
        %v1204 = vpop.permute.xlu0 %1203
        %v1206 = vmul.f32 %v1188, %v1204
        %1208 = vrot.lane.b32.xlu0 %v1206, 32
        %v1209 = vpop.permute.xlu0 %1208
        %v1210 = vsel %vm466, %v1209, 0
        %1212 = vmatprep.subr.mxu0 0.0
        %1213 = vmatpush1.msra.mxu0 %v412
        %1214 = vmatprep.subr.mxu0 0.0
        %1215 = vmatpush1.msra.mxu0 %v413
        %1216 = vmatprep.subr.mxu0 0.0
        %1217 = vmatpush1.msra.mxu0 %v414
        %1218 = vmatprep.subr.mxu0 0.0
        %1219 = vmatpush1.msra.mxu0 %v415
        %1220 = vmatprep.subr.mxu0 0.0
        %1221 = vmatpush1.msra.mxu0 0.0
        %1222 = vmatprep.subr.mxu0 0.0
        %1223 = vmatpush1.msra.mxu0 0.0
        %1224 = vmatprep.subr.mxu0 0.0
        %1225 = vmatpush1.msra.mxu0 0.0
        %1226 = vmatprep.subr.mxu0 0.0
        %1227 = vmatpush1.msra.mxu0 0.0
        %1228 = vmatprep.subr.mxu0 0.0
        %1229 = vmatpush1.msra.mxu0 0.0
        %1230 = vmatprep.subr.mxu0 0.0
        %1231 = vmatpush1.msra.mxu0 0.0
        %1232 = vmatprep.subr.mxu0 0.0
        %1233 = vmatpush1.msra.mxu0 0.0
        %1234 = vmatprep.subr.mxu0 0.0
        %1235 = vmatpush1.msra.mxu0 0.0
        %1236 = vmatprep.subr.mxu0 0.0
        %1237 = vmatpush1.msra.mxu0 0.0
        %1238 = vmatprep.subr.mxu0 0.0
        %1239 = vmatpush1.msra.mxu0 0.0
        %1240 = vmatprep.subr.mxu0 0.0
        %1241 = vmatpush1.msra.mxu0 0.0
        %1242 = vmatprep.subr.mxu0 0.0
        %1243 = vmatpush1.msra.mxu0 0.0
        %1244 = vmatprep.subr.mxu0 0.0
        %1245 = vmatpush1.msra.mxu0 0.0
        %1246 = vmatprep.subr.mxu0 0.0
        %1247 = vmatpush1.msra.mxu0 0.0
        %1248 = vmatprep.subr.mxu0 0.0
        %1249 = vmatpush1.msra.mxu0 0.0
        %1250 = vmatprep.subr.mxu0 0.0
        %1251 = vmatpush1.msra.mxu0 0.0
        %1252 = vmatprep.subr.mxu0 0.0
        %1253 = vmatpush1.msra.mxu0 0.0
        %1254 = vmatprep.subr.mxu0 0.0
        %1255 = vmatpush1.msra.mxu0 0.0
        %1256 = vmatprep.subr.mxu0 0.0
        %1257 = vmatpush1.msra.mxu0 0.0
        %1258 = vmatprep.subr.mxu0 0.0
        %1259 = vmatpush1.msra.mxu0 0.0
        %1260 = vmatprep.subr.mxu0 0.0
        %1261 = vmatpush1.msra.mxu0 0.0
        %1262 = vmatprep.subr.mxu0 0.0
        %1263 = vmatpush1.msra.mxu0 0.0
        %1264 = vmatprep.subr.mxu0 0.0
        %1265 = vmatpush1.msra.mxu0 0.0
        %1266 = vmatprep.subr.mxu0 0.0
        %1267 = vmatpush1.msra.mxu0 0.0
        %1268 = vmatprep.subr.mxu0 0.0
        %1269 = vmatpush1.msra.mxu0 0.0
        %1270 = vmatprep.subr.mxu0 0.0
        %1271 = vmatpush1.msra.mxu0 0.0
        %1272 = vmatprep.subr.mxu0 0.0
        %1273 = vmatpush1.msra.mxu0 0.0
        %1274 = vmatprep.subr.mxu0 0.0
        %1275 = vmatpush1.msra.mxu0 0.0
        %1276 = vmatprep.mubr.f32.mxu0 0.0
        %1277 = vmatmul.mubr.f32.gmra.mrb[0].mxu0 %v1210
        %v1278 = vpop.f32.mrb[0].mxu0
        %v1279 = vadd.f32 %v649, %v1278
        %v1280 = vpop.f32.mrb[0].mxu0
        %1281 = vdwg.mxu0
        %s1282 = scalar_lea.vmem %s376, 16 [#allocation15]
        %1283 = vst [vmem:[%s1282] sm:$0xff] %v1279
        %s1284 = sadd.s32 %s727, 3
        %s1285 = smul.u32 %s1284, 8
        %s1286 = sld [smem:[#allocation5 + %s1285]]
        %v1287 = vstv %s1286
        %v1288 = vsel %vm423, %v1287, 0
        %s1289 = sadd.s32 %s1285, 1
        %s1290 = sld [smem:[#allocation5 + %s1289]]
        %v1291 = vstv %s1290
        %v1292 = vsel %vm428, %v1291, %v1288
        %s1293 = sadd.s32 %s1285, 2
        %s1294 = sld [smem:[#allocation5 + %s1293]]
        %v1295 = vstv %s1294
        %v1296 = vsel %vm433, %v1295, %v1292
        %s1297 = sadd.s32 %s1285, 3
        %s1298 = sld [smem:[#allocation5 + %s1297]]
        %v1299 = vstv %s1298
        %v1300 = vsel %vm438, %v1299, %v1296
        %s1301 = sadd.s32 %s1285, 4
        %s1302 = sld [smem:[#allocation5 + %s1301]]
        %v1303 = vstv %s1302
        %v1304 = vsel %vm443, %v1303, %v1300
        %s1305 = sadd.s32 %s1285, 5
        %s1306 = sld [smem:[#allocation5 + %s1305]]
        %v1307 = vstv %s1306
        %v1308 = vsel %vm448, %v1307, %v1304
        %s1309 = sadd.s32 %s1285, 6
        %s1310 = sld [smem:[#allocation5 + %s1309]]
        %v1311 = vstv %s1310
        %v1312 = vsel %vm453, %v1311, %v1308
        %s1313 = sadd.s32 %s1285, 7
        %s1314 = sld [smem:[#allocation5 + %s1313]]
        %v1315 = vstv %s1314
        %v1316 = vsel %vm458, %v1315, %v1312
        %vm1317 = vcmp.eq.s32.totalorder %v420, %v1316
        %v1318 = vsel %vm1317, 1, 0
        %v1319 = vcvt.s32.f32 %v1318
        %1320 = vmatprep.subr.mxu0 0.0
        %1321 = vmatpush1.msra.mxu0 %v407
        %1322 = vmatprep.subr.mxu0 0.0
        %1323 = vmatpush1.msra.mxu0 %v408
        %1324 = vmatprep.subr.mxu0 0.0
        %1325 = vmatpush1.msra.mxu0 %v409
        %1326 = vmatprep.subr.mxu0 0.0
        %1327 = vmatpush1.msra.mxu0 %v410
        %1328 = vmatprep.subr.mxu0 0.0
        %1329 = vmatpush1.msra.mxu0 0.0
        %1330 = vmatprep.subr.mxu0 0.0
        %1331 = vmatpush1.msra.mxu0 0.0
        %1332 = vmatprep.subr.mxu0 0.0
        %1333 = vmatpush1.msra.mxu0 0.0
        %1334 = vmatprep.subr.mxu0 0.0
        %1335 = vmatpush1.msra.mxu0 0.0
        %1336 = vmatprep.subr.mxu0 0.0
        %1337 = vmatpush1.msra.mxu0 0.0
        %1338 = vmatprep.subr.mxu0 0.0
        %1339 = vmatpush1.msra.mxu0 0.0
        %1340 = vmatprep.subr.mxu0 0.0
        %1341 = vmatpush1.msra.mxu0 0.0
        %1342 = vmatprep.subr.mxu0 0.0
        %1343 = vmatpush1.msra.mxu0 0.0
        %1344 = vmatprep.subr.mxu0 0.0
        %1345 = vmatpush1.msra.mxu0 0.0
        %1346 = vmatprep.subr.mxu0 0.0
        %1347 = vmatpush1.msra.mxu0 0.0
        %1348 = vmatprep.subr.mxu0 0.0
        %1349 = vmatpush1.msra.mxu0 0.0
        %1350 = vmatprep.subr.mxu0 0.0
        %1351 = vmatpush1.msra.mxu0 0.0
        %1352 = vmatprep.subr.mxu0 0.0
        %1353 = vmatpush1.msra.mxu0 0.0
        %1354 = vmatprep.subr.mxu0 0.0
        %1355 = vmatpush1.msra.mxu0 0.0
        %1356 = vmatprep.subr.mxu0 0.0
        %1357 = vmatpush1.msra.mxu0 0.0
        %1358 = vmatprep.subr.mxu0 0.0
        %1359 = vmatpush1.msra.mxu0 0.0
        %1360 = vmatprep.subr.mxu0 0.0
        %1361 = vmatpush1.msra.mxu0 0.0
        %1362 = vmatprep.subr.mxu0 0.0
        %1363 = vmatpush1.msra.mxu0 0.0
        %1364 = vmatprep.subr.mxu0 0.0
        %1365 = vmatpush1.msra.mxu0 0.0
        %1366 = vmatprep.subr.mxu0 0.0
        %1367 = vmatpush1.msra.mxu0 0.0
        %1368 = vmatprep.subr.mxu0 0.0
        %1369 = vmatpush1.msra.mxu0 0.0
        %1370 = vmatprep.subr.mxu0 0.0
        %1371 = vmatpush1.msra.mxu0 0.0
        %1372 = vmatprep.subr.mxu0 0.0
        %1373 = vmatpush1.msra.mxu0 0.0
        %1374 = vmatprep.subr.mxu0 0.0
        %1375 = vmatpush1.msra.mxu0 0.0
        %1376 = vmatprep.subr.mxu0 0.0
        %1377 = vmatpush1.msra.mxu0 0.0
        %1378 = vmatprep.subr.mxu0 0.0
        %1379 = vmatpush1.msra.mxu0 0.0
        %1380 = vmatprep.subr.mxu0 0.0
        %1381 = vmatpush1.msra.mxu0 0.0
        %1382 = vmatprep.subr.mxu0 0.0
        %1383 = vmatpush1.msra.mxu0 0.0
        %1384 = vmatprep.mubr.f32.mxu0 0.0
        %1385 = vmatmul.mubr.f32.gmra.mrb[0].mxu0 %v1210
        %v1386 = vpop.f32.mrb[0].mxu0
        %v1387 = vadd.f32 0.0, %v1386
        %v1388 = vpop.f32.mrb[0].mxu0
        %1389 = vdwg.mxu0
        %1390 = vmatprep.subr.mxu0 0.0
        %1391 = vmatpush1.msra.mxu0 %v391
        %1392 = vmatprep.subr.mxu0 0.0
        %1393 = vmatpush1.msra.mxu0 %v392
        %1394 = vmatprep.subr.mxu0 0.0
        %1395 = vmatpush1.msra.mxu0 %v393
        %1396 = vmatprep.subr.mxu0 0.0
        %1397 = vmatpush1.msra.mxu0 %v394
        %1398 = vmatprep.subr.mxu0 0.0
        %1399 = vmatpush1.msra.mxu0 %v395
        %1400 = vmatprep.subr.mxu0 0.0
        %1401 = vmatpush1.msra.mxu0 %v396
        %1402 = vmatprep.subr.mxu0 0.0
        %1403 = vmatpush1.msra.mxu0 %v397
        %1404 = vmatprep.subr.mxu0 0.0
        %1405 = vmatpush1.msra.mxu0 %v398
        %1406 = vmatprep.subr.mxu0 0.0
        %1407 = vmatpush1.msra.mxu0 %v399
        %1408 = vmatprep.subr.mxu0 0.0
        %1409 = vmatpush1.msra.mxu0 %v400
        %1410 = vmatprep.subr.mxu0 0.0
        %1411 = vmatpush1.msra.mxu0 %v401
        %1412 = vmatprep.subr.mxu0 0.0
        %1413 = vmatpush1.msra.mxu0 %v402
        %1414 = vmatprep.subr.mxu0 0.0
        %1415 = vmatpush1.msra.mxu0 %v403
        %1416 = vmatprep.subr.mxu0 0.0
        %1417 = vmatpush1.msra.mxu0 %v404
        %1418 = vmatprep.subr.mxu0 0.0
        %1419 = vmatpush1.msra.mxu0 %v405
        %1420 = vmatprep.subr.mxu0 0.0
        %1421 = vmatpush1.msra.mxu0 %v406
        %1422 = vmatprep.subr.mxu0 0.0
        %1423 = vmatpush1.msra.mxu0 0.0
        %1424 = vmatprep.subr.mxu0 0.0
        %1425 = vmatpush1.msra.mxu0 0.0
        %1426 = vmatprep.subr.mxu0 0.0
        %1427 = vmatpush1.msra.mxu0 0.0
        %1428 = vmatprep.subr.mxu0 0.0
        %1429 = vmatpush1.msra.mxu0 0.0
        %1430 = vmatprep.subr.mxu0 0.0
        %1431 = vmatpush1.msra.mxu0 0.0
        %1432 = vmatprep.subr.mxu0 0.0
        %1433 = vmatpush1.msra.mxu0 0.0
        %1434 = vmatprep.subr.mxu0 0.0
        %1435 = vmatpush1.msra.mxu0 0.0
        %1436 = vmatprep.subr.mxu0 0.0
        %1437 = vmatpush1.msra.mxu0 0.0
        %1438 = vmatprep.subr.mxu0 0.0
        %1439 = vmatpush1.msra.mxu0 0.0
        %1440 = vmatprep.subr.mxu0 0.0
        %1441 = vmatpush1.msra.mxu0 0.0
        %1442 = vmatprep.subr.mxu0 0.0
        %1443 = vmatpush1.msra.mxu0 0.0
        %1444 = vmatprep.subr.mxu0 0.0
        %1445 = vmatpush1.msra.mxu0 0.0
        %1446 = vmatprep.subr.mxu0 0.0
        %1447 = vmatpush1.msra.mxu0 0.0
        %1448 = vmatprep.subr.mxu0 0.0
        %1449 = vmatpush1.msra.mxu0 0.0
        %1450 = vmatprep.subr.mxu0 0.0
        %1451 = vmatpush1.msra.mxu0 0.0
        %1452 = vmatprep.subr.mxu0 0.0
        %1453 = vmatpush1.msra.mxu0 0.0
        %1454 = vmatprep.mubr.f32.mxu0 0.0
        %1455 = vmatmul.mubr.f32.gmra.mrb[0].mxu0 %v1319
        %v1456 = vpop.f32.mrb[0].mxu0
        %v1457 = vadd.f32 %v1387, %v1456
        %v1458 = vpop.f32.mrb[0].mxu0
        %1459 = vdwg.mxu0
        %v1460 = vadd.f32 %v1457, %v614
        %v1461 = vxor.u32 %v1460, 2147483648
        %v1462 = vmul.f32 %v1461, 1.442695
        %v1463 = vpow.pop %v1462
        %v1464 = vadd.f32 %v1463, 1.0
        %v1465 = vrcp.pop %v1464
        %v1466 = vmul.f32 1.0, %v1465
        %v1467 = vtanh.pop %v1460
        %v1468 = vmul.f32 %v1466, %v1200
        %1470 = vrot.lane.b32.xlu0 %v1467, 64
        %v1471 = vpop.permute.xlu0 %1470
        %v1473 = vmul.f32 %v1466, %v1471
        %1475 = vrot.lane.b32.xlu0 %v1473, 32
        %v1476 = vpop.permute.xlu0 %1475
        %v1478 = vadd.f32 %v1468, %v1476
        %v1479 = vtanh.pop %v1478
        %1481 = vrot.lane.b32.xlu0 %v1479, 64
        %v1482 = vpop.permute.xlu0 %1481
        %v1484 = vmul.f32 %v1466, %v1482
        %1486 = vrot.lane.b32.xlu0 %v1484, 32
        %v1487 = vpop.permute.xlu0 %1486
        %v1488 = vsel %vm466, %v1487, 0
        %1490 = vmatprep.subr.mxu0 0.0
        %1491 = vmatpush1.msra.mxu0 %v412
        %1492 = vmatprep.subr.mxu0 0.0
        %1493 = vmatpush1.msra.mxu0 %v413
        %1494 = vmatprep.subr.mxu0 0.0
        %1495 = vmatpush1.msra.mxu0 %v414
        %1496 = vmatprep.subr.mxu0 0.0
        %1497 = vmatpush1.msra.mxu0 %v415
        %1498 = vmatprep.subr.mxu0 0.0
        %1499 = vmatpush1.msra.mxu0 0.0
        %1500 = vmatprep.subr.mxu0 0.0
        %1501 = vmatpush1.msra.mxu0 0.0
        %1502 = vmatprep.subr.mxu0 0.0
        %1503 = vmatpush1.msra.mxu0 0.0
        %1504 = vmatprep.subr.mxu0 0.0
        %1505 = vmatpush1.msra.mxu0 0.0
        %1506 = vmatprep.subr.mxu0 0.0
        %1507 = vmatpush1.msra.mxu0 0.0
        %1508 = vmatprep.subr.mxu0 0.0
        %1509 = vmatpush1.msra.mxu0 0.0
        %1510 = vmatprep.subr.mxu0 0.0
        %1511 = vmatpush1.msra.mxu0 0.0
        %1512 = vmatprep.subr.mxu0 0.0
        %1513 = vmatpush1.msra.mxu0 0.0
        %1514 = vmatprep.subr.mxu0 0.0
        %1515 = vmatpush1.msra.mxu0 0.0
        %1516 = vmatprep.subr.mxu0 0.0
        %1517 = vmatpush1.msra.mxu0 0.0
        %1518 = vmatprep.subr.mxu0 0.0
        %1519 = vmatpush1.msra.mxu0 0.0
        %1520 = vmatprep.subr.mxu0 0.0
        %1521 = vmatpush1.msra.mxu0 0.0
        %1522 = vmatprep.subr.mxu0 0.0
        %1523 = vmatpush1.msra.mxu0 0.0
        %1524 = vmatprep.subr.mxu0 0.0
        %1525 = vmatpush1.msra.mxu0 0.0
        %1526 = vmatprep.subr.mxu0 0.0
        %1527 = vmatpush1.msra.mxu0 0.0
        %1528 = vmatprep.subr.mxu0 0.0
        %1529 = vmatpush1.msra.mxu0 0.0
        %1530 = vmatprep.subr.mxu0 0.0
        %1531 = vmatpush1.msra.mxu0 0.0
        %1532 = vmatprep.subr.mxu0 0.0
        %1533 = vmatpush1.msra.mxu0 0.0
        %1534 = vmatprep.subr.mxu0 0.0
        %1535 = vmatpush1.msra.mxu0 0.0
        %1536 = vmatprep.subr.mxu0 0.0
        %1537 = vmatpush1.msra.mxu0 0.0
        %1538 = vmatprep.subr.mxu0 0.0
        %1539 = vmatpush1.msra.mxu0 0.0
        %1540 = vmatprep.subr.mxu0 0.0
        %1541 = vmatpush1.msra.mxu0 0.0
        %1542 = vmatprep.subr.mxu0 0.0
        %1543 = vmatpush1.msra.mxu0 0.0
        %1544 = vmatprep.subr.mxu0 0.0
        %1545 = vmatpush1.msra.mxu0 0.0
        %1546 = vmatprep.subr.mxu0 0.0
        %1547 = vmatpush1.msra.mxu0 0.0
        %1548 = vmatprep.subr.mxu0 0.0
        %1549 = vmatpush1.msra.mxu0 0.0
        %1550 = vmatprep.subr.mxu0 0.0
        %1551 = vmatpush1.msra.mxu0 0.0
        %1552 = vmatprep.subr.mxu0 0.0
        %1553 = vmatpush1.msra.mxu0 0.0
        %1554 = vmatprep.mubr.f32.mxu0 0.0
        %1555 = vmatmul.mubr.f32.gmra.mrb[0].mxu0 %v1488
        %v1556 = vpop.f32.mrb[0].mxu0
        %v1557 = vadd.f32 %v649, %v1556
        %v1558 = vpop.f32.mrb[0].mxu0
        %1559 = vdwg.mxu0
        %s1560 = scalar_lea.vmem %s376, 24 [#allocation15]
        %1561 = vst [vmem:[%s1560] sm:$0xff] %v1557
        %s1562 = sadd.s32 %s727, 4
        %s1563 = smul.u32 %s1562, 8
        %s1564 = sld [smem:[#allocation5 + %s1563]]
        %v1565 = vstv %s1564
        %v1566 = vsel %vm423, %v1565, 0
        %s1567 = sadd.s32 %s1563, 1
        %s1568 = sld [smem:[#allocation5 + %s1567]]
        %v1569 = vstv %s1568
        %v1570 = vsel %vm428, %v1569, %v1566
        %s1571 = sadd.s32 %s1563, 2
        %s1572 = sld [smem:[#allocation5 + %s1571]]
        %v1573 = vstv %s1572
        %v1574 = vsel %vm433, %v1573, %v1570
        %s1575 = sadd.s32 %s1563, 3
        %s1576 = sld [smem:[#allocation5 + %s1575]]
        %v1577 = vstv %s1576
        %v1578 = vsel %vm438, %v1577, %v1574
        %s1579 = sadd.s32 %s1563, 4
        %s1580 = sld [smem:[#allocation5 + %s1579]]
        %v1581 = vstv %s1580
        %v1582 = vsel %vm443, %v1581, %v1578
        %s1583 = sadd.s32 %s1563, 5
        %s1584 = sld [smem:[#allocation5 + %s1583]]
        %v1585 = vstv %s1584
        %v1586 = vsel %vm448, %v1585, %v1582
        %s1587 = sadd.s32 %s1563, 6
        %s1588 = sld [smem:[#allocation5 + %s1587]]
        %v1589 = vstv %s1588
        %v1590 = vsel %vm453, %v1589, %v1586
        %s1591 = sadd.s32 %s1563, 7
        %s1592 = sld [smem:[#allocation5 + %s1591]]
        %v1593 = vstv %s1592
        %v1594 = vsel %vm458, %v1593, %v1590
        %vm1595 = vcmp.eq.s32.totalorder %v420, %v1594
        %v1596 = vsel %vm1595, 1, 0
        %v1597 = vcvt.s32.f32 %v1596
        %1598 = vmatprep.subr.mxu0 0.0
        %1599 = vmatpush1.msra.mxu0 %v407
        %1600 = vmatprep.subr.mxu0 0.0
        %1601 = vmatpush1.msra.mxu0 %v408
        %1602 = vmatprep.subr.mxu0 0.0
        %1603 = vmatpush1.msra.mxu0 %v409
        %1604 = vmatprep.subr.mxu0 0.0
        %1605 = vmatpush1.msra.mxu0 %v410
        %1606 = vmatprep.subr.mxu0 0.0
        %1607 = vmatpush1.msra.mxu0 0.0
        %1608 = vmatprep.subr.mxu0 0.0
        %1609 = vmatpush1.msra.mxu0 0.0
        %1610 = vmatprep.subr.mxu0 0.0
        %1611 = vmatpush1.msra.mxu0 0.0
        %1612 = vmatprep.subr.mxu0 0.0
        %1613 = vmatpush1.msra.mxu0 0.0
        %1614 = vmatprep.subr.mxu0 0.0
        %1615 = vmatpush1.msra.mxu0 0.0
        %1616 = vmatprep.subr.mxu0 0.0
        %1617 = vmatpush1.msra.mxu0 0.0
        %1618 = vmatprep.subr.mxu0 0.0
        %1619 = vmatpush1.msra.mxu0 0.0
        %1620 = vmatprep.subr.mxu0 0.0
        %1621 = vmatpush1.msra.mxu0 0.0
        %1622 = vmatprep.subr.mxu0 0.0
        %1623 = vmatpush1.msra.mxu0 0.0
        %1624 = vmatprep.subr.mxu0 0.0
        %1625 = vmatpush1.msra.mxu0 0.0
        %1626 = vmatprep.subr.mxu0 0.0
        %1627 = vmatpush1.msra.mxu0 0.0
        %1628 = vmatprep.subr.mxu0 0.0
        %1629 = vmatpush1.msra.mxu0 0.0
        %1630 = vmatprep.subr.mxu0 0.0
        %1631 = vmatpush1.msra.mxu0 0.0
        %1632 = vmatprep.subr.mxu0 0.0
        %1633 = vmatpush1.msra.mxu0 0.0
        %1634 = vmatprep.subr.mxu0 0.0
        %1635 = vmatpush1.msra.mxu0 0.0
        %1636 = vmatprep.subr.mxu0 0.0
        %1637 = vmatpush1.msra.mxu0 0.0
        %1638 = vmatprep.subr.mxu0 0.0
        %1639 = vmatpush1.msra.mxu0 0.0
        %1640 = vmatprep.subr.mxu0 0.0
        %1641 = vmatpush1.msra.mxu0 0.0
        %1642 = vmatprep.subr.mxu0 0.0
        %1643 = vmatpush1.msra.mxu0 0.0
        %1644 = vmatprep.subr.mxu0 0.0
        %1645 = vmatpush1.msra.mxu0 0.0
        %1646 = vmatprep.subr.mxu0 0.0
        %1647 = vmatpush1.msra.mxu0 0.0
        %1648 = vmatprep.subr.mxu0 0.0
        %1649 = vmatpush1.msra.mxu0 0.0
        %1650 = vmatprep.subr.mxu0 0.0
        %1651 = vmatpush1.msra.mxu0 0.0
        %1652 = vmatprep.subr.mxu0 0.0
        %1653 = vmatpush1.msra.mxu0 0.0
        %1654 = vmatprep.subr.mxu0 0.0
        %1655 = vmatpush1.msra.mxu0 0.0
        %1656 = vmatprep.subr.mxu0 0.0
        %1657 = vmatpush1.msra.mxu0 0.0
        %1658 = vmatprep.subr.mxu0 0.0
        %1659 = vmatpush1.msra.mxu0 0.0
        %1660 = vmatprep.subr.mxu0 0.0
        %1661 = vmatpush1.msra.mxu0 0.0
        %1662 = vmatprep.mubr.f32.mxu0 0.0
        %1663 = vmatmul.mubr.f32.gmra.mrb[0].mxu0 %v1488
        %v1664 = vpop.f32.mrb[0].mxu0
        %v1665 = vadd.f32 0.0, %v1664
        %v1666 = vpop.f32.mrb[0].mxu0
        %1667 = vdwg.mxu0
        %1668 = vmatprep.subr.mxu0 0.0
        %1669 = vmatpush1.msra.mxu0 %v391
        %1670 = vmatprep.subr.mxu0 0.0
        %1671 = vmatpush1.msra.mxu0 %v392
        %1672 = vmatprep.subr.mxu0 0.0
        %1673 = vmatpush1.msra.mxu0 %v393
        %1674 = vmatprep.subr.mxu0 0.0
        %1675 = vmatpush1.msra.mxu0 %v394
        %1676 = vmatprep.subr.mxu0 0.0
        %1677 = vmatpush1.msra.mxu0 %v395
        %1678 = vmatprep.subr.mxu0 0.0
        %1679 = vmatpush1.msra.mxu0 %v396
        %1680 = vmatprep.subr.mxu0 0.0
        %1681 = vmatpush1.msra.mxu0 %v397
        %1682 = vmatprep.subr.mxu0 0.0
        %1683 = vmatpush1.msra.mxu0 %v398
        %1684 = vmatprep.subr.mxu0 0.0
        %1685 = vmatpush1.msra.mxu0 %v399
        %1686 = vmatprep.subr.mxu0 0.0
        %1687 = vmatpush1.msra.mxu0 %v400
        %1688 = vmatprep.subr.mxu0 0.0
        %1689 = vmatpush1.msra.mxu0 %v401
        %1690 = vmatprep.subr.mxu0 0.0
        %1691 = vmatpush1.msra.mxu0 %v402
        %1692 = vmatprep.subr.mxu0 0.0
        %1693 = vmatpush1.msra.mxu0 %v403
        %1694 = vmatprep.subr.mxu0 0.0
        %1695 = vmatpush1.msra.mxu0 %v404
        %1696 = vmatprep.subr.mxu0 0.0
        %1697 = vmatpush1.msra.mxu0 %v405
        %1698 = vmatprep.subr.mxu0 0.0
        %1699 = vmatpush1.msra.mxu0 %v406
        %1700 = vmatprep.subr.mxu0 0.0
        %1701 = vmatpush1.msra.mxu0 0.0
        %1702 = vmatprep.subr.mxu0 0.0
        %1703 = vmatpush1.msra.mxu0 0.0
        %1704 = vmatprep.subr.mxu0 0.0
        %1705 = vmatpush1.msra.mxu0 0.0
        %1706 = vmatprep.subr.mxu0 0.0
        %1707 = vmatpush1.msra.mxu0 0.0
        %1708 = vmatprep.subr.mxu0 0.0
        %1709 = vmatpush1.msra.mxu0 0.0
        %1710 = vmatprep.subr.mxu0 0.0
        %1711 = vmatpush1.msra.mxu0 0.0
        %1712 = vmatprep.subr.mxu0 0.0
        %1713 = vmatpush1.msra.mxu0 0.0
        %1714 = vmatprep.subr.mxu0 0.0
        %1715 = vmatpush1.msra.mxu0 0.0
        %1716 = vmatprep.subr.mxu0 0.0
        %1717 = vmatpush1.msra.mxu0 0.0
        %1718 = vmatprep.subr.mxu0 0.0
        %1719 = vmatpush1.msra.mxu0 0.0
        %1720 = vmatprep.subr.mxu0 0.0
        %1721 = vmatpush1.msra.mxu0 0.0
        %1722 = vmatprep.subr.mxu0 0.0
        %1723 = vmatpush1.msra.mxu0 0.0
        %1724 = vmatprep.subr.mxu0 0.0
        %1725 = vmatpush1.msra.mxu0 0.0
        %1726 = vmatprep.subr.mxu0 0.0
        %1727 = vmatpush1.msra.mxu0 0.0
        %1728 = vmatprep.subr.mxu0 0.0
        %1729 = vmatpush1.msra.mxu0 0.0
        %1730 = vmatprep.subr.mxu0 0.0
        %1731 = vmatpush1.msra.mxu0 0.0
        %1732 = vmatprep.mubr.f32.mxu0 0.0
        %1733 = vmatmul.mubr.f32.gmra.mrb[0].mxu0 %v1597
        %v1734 = vpop.f32.mrb[0].mxu0
        %v1735 = vadd.f32 %v1665, %v1734
        %v1736 = vpop.f32.mrb[0].mxu0
        %1737 = vdwg.mxu0
        %v1738 = vadd.f32 %v1735, %v614
        %v1739 = vxor.u32 %v1738, 2147483648
        %v1740 = vmul.f32 %v1739, 1.442695
        %v1741 = vpow.pop %v1740
        %v1742 = vadd.f32 %v1741, 1.0
        %v1743 = vrcp.pop %v1742
        %v1744 = vmul.f32 1.0, %v1743
        %v1745 = vtanh.pop %v1738
        %v1746 = vmul.f32 %v1744, %v1478
        %1748 = vrot.lane.b32.xlu0 %v1745, 64
        %v1749 = vpop.permute.xlu0 %1748
        %v1751 = vmul.f32 %v1744, %v1749
        %1753 = vrot.lane.b32.xlu0 %v1751, 32
        %v1754 = vpop.permute.xlu0 %1753
        %v1756 = vadd.f32 %v1746, %v1754
        %v1757 = vtanh.pop %v1756
        %1759 = vrot.lane.b32.xlu0 %v1757, 64
        %v1760 = vpop.permute.xlu0 %1759
        %v1762 = vmul.f32 %v1744, %v1760
        %1764 = vrot.lane.b32.xlu0 %v1762, 32
        %v1765 = vpop.permute.xlu0 %1764
        %v1766 = vsel %vm466, %v1765, 0
        %1768 = vmatprep.subr.mxu0 0.0
        %1769 = vmatpush1.msra.mxu0 %v412
        %1770 = vmatprep.subr.mxu0 0.0
        %1771 = vmatpush1.msra.mxu0 %v413
        %1772 = vmatprep.subr.mxu0 0.0
        %1773 = vmatpush1.msra.mxu0 %v414
        %1774 = vmatprep.subr.mxu0 0.0
        %1775 = vmatpush1.msra.mxu0 %v415
        %1776 = vmatprep.subr.mxu0 0.0
        %1777 = vmatpush1.msra.mxu0 0.0
        %1778 = vmatprep.subr.mxu0 0.0
        %1779 = vmatpush1.msra.mxu0 0.0
        %1780 = vmatprep.subr.mxu0 0.0
        %1781 = vmatpush1.msra.mxu0 0.0
        %1782 = vmatprep.subr.mxu0 0.0
        %1783 = vmatpush1.msra.mxu0 0.0
        %1784 = vmatprep.subr.mxu0 0.0
        %1785 = vmatpush1.msra.mxu0 0.0
        %1786 = vmatprep.subr.mxu0 0.0
        %1787 = vmatpush1.msra.mxu0 0.0
        %1788 = vmatprep.subr.mxu0 0.0
        %1789 = vmatpush1.msra.mxu0 0.0
        %1790 = vmatprep.subr.mxu0 0.0
        %1791 = vmatpush1.msra.mxu0 0.0
        %1792 = vmatprep.subr.mxu0 0.0
        %1793 = vmatpush1.msra.mxu0 0.0
        %1794 = vmatprep.subr.mxu0 0.0
        %1795 = vmatpush1.msra.mxu0 0.0
        %1796 = vmatprep.subr.mxu0 0.0
        %1797 = vmatpush1.msra.mxu0 0.0
        %1798 = vmatprep.subr.mxu0 0.0
        %1799 = vmatpush1.msra.mxu0 0.0
        %1800 = vmatprep.subr.mxu0 0.0
        %1801 = vmatpush1.msra.mxu0 0.0
        %1802 = vmatprep.subr.mxu0 0.0
        %1803 = vmatpush1.msra.mxu0 0.0
        %1804 = vmatprep.subr.mxu0 0.0
        %1805 = vmatpush1.msra.mxu0 0.0
        %1806 = vmatprep.subr.mxu0 0.0
        %1807 = vmatpush1.msra.mxu0 0.0
        %1808 = vmatprep.subr.mxu0 0.0
        %1809 = vmatpush1.msra.mxu0 0.0
        %1810 = vmatprep.subr.mxu0 0.0
        %1811 = vmatpush1.msra.mxu0 0.0
        %1812 = vmatprep.subr.mxu0 0.0
        %1813 = vmatpush1.msra.mxu0 0.0
        %1814 = vmatprep.subr.mxu0 0.0
        %1815 = vmatpush1.msra.mxu0 0.0
        %1816 = vmatprep.subr.mxu0 0.0
        %1817 = vmatpush1.msra.mxu0 0.0
        %1818 = vmatprep.subr.mxu0 0.0
        %1819 = vmatpush1.msra.mxu0 0.0
        %1820 = vmatprep.subr.mxu0 0.0
        %1821 = vmatpush1.msra.mxu0 0.0
        %1822 = vmatprep.subr.mxu0 0.0
        %1823 = vmatpush1.msra.mxu0 0.0
        %1824 = vmatprep.subr.mxu0 0.0
        %1825 = vmatpush1.msra.mxu0 0.0
        %1826 = vmatprep.subr.mxu0 0.0
        %1827 = vmatpush1.msra.mxu0 0.0
        %1828 = vmatprep.subr.mxu0 0.0
        %1829 = vmatpush1.msra.mxu0 0.0
        %1830 = vmatprep.subr.mxu0 0.0
        %1831 = vmatpush1.msra.mxu0 0.0
        %1832 = vmatprep.mubr.f32.mxu0 0.0
        %1833 = vmatmul.mubr.f32.gmra.mrb[0].mxu0 %v1766
        %v1834 = vpop.f32.mrb[0].mxu0
        %v1835 = vadd.f32 %v649, %v1834
        %v1836 = vpop.f32.mrb[0].mxu0
        %1837 = vdwg.mxu0
        %s1838 = scalar_lea.vmem %s376, 32 [#allocation15]
        %1839 = vst [vmem:[%s1838] sm:$0xff] %v1835
        %s1840 = sadd.s32 %s727, 5
        %s1841 = smul.u32 %s1840, 8
        %s1842 = sld [smem:[#allocation5 + %s1841]]
        %v1843 = vstv %s1842
        %v1844 = vsel %vm423, %v1843, 0
        %s1845 = sadd.s32 %s1841, 1
        %s1846 = sld [smem:[#allocation5 + %s1845]]
        %v1847 = vstv %s1846
        %v1848 = vsel %vm428, %v1847, %v1844
        %s1849 = sadd.s32 %s1841, 2
        %s1850 = sld [smem:[#allocation5 + %s1849]]
        %v1851 = vstv %s1850
        %v1852 = vsel %vm433, %v1851, %v1848
        %s1853 = sadd.s32 %s1841, 3
        %s1854 = sld [smem:[#allocation5 + %s1853]]
        %v1855 = vstv %s1854
        %v1856 = vsel %vm438, %v1855, %v1852
        %s1857 = sadd.s32 %s1841, 4
        %s1858 = sld [smem:[#allocation5 + %s1857]]
        %v1859 = vstv %s1858
        %v1860 = vsel %vm443, %v1859, %v1856
        %s1861 = sadd.s32 %s1841, 5
        %s1862 = sld [smem:[#allocation5 + %s1861]]
        %v1863 = vstv %s1862
        %v1864 = vsel %vm448, %v1863, %v1860
        %s1865 = sadd.s32 %s1841, 6
        %s1866 = sld [smem:[#allocation5 + %s1865]]
        %v1867 = vstv %s1866
        %v1868 = vsel %vm453, %v1867, %v1864
        %s1869 = sadd.s32 %s1841, 7
        %s1870 = sld [smem:[#allocation5 + %s1869]]
        %v1871 = vstv %s1870
        %v1872 = vsel %vm458, %v1871, %v1868
        %vm1873 = vcmp.eq.s32.totalorder %v420, %v1872
        %v1874 = vsel %vm1873, 1, 0
        %v1875 = vcvt.s32.f32 %v1874
        %1876 = vmatprep.subr.mxu0 0.0
        %1877 = vmatpush1.msra.mxu0 %v407
        %1878 = vmatprep.subr.mxu0 0.0
        %1879 = vmatpush1.msra.mxu0 %v408
        %1880 = vmatprep.subr.mxu0 0.0
        %1881 = vmatpush1.msra.mxu0 %v409
        %1882 = vmatprep.subr.mxu0 0.0
        %1883 = vmatpush1.msra.mxu0 %v410
        %1884 = vmatprep.subr.mxu0 0.0
        %1885 = vmatpush1.msra.mxu0 0.0
        %1886 = vmatprep.subr.mxu0 0.0
        %1887 = vmatpush1.msra.mxu0 0.0
        %1888 = vmatprep.subr.mxu0 0.0
        %1889 = vmatpush1.msra.mxu0 0.0
        %1890 = vmatprep.subr.mxu0 0.0
        %1891 = vmatpush1.msra.mxu0 0.0
        %1892 = vmatprep.subr.mxu0 0.0
        %1893 = vmatpush1.msra.mxu0 0.0
        %1894 = vmatprep.subr.mxu0 0.0
        %1895 = vmatpush1.msra.mxu0 0.0
        %1896 = vmatprep.subr.mxu0 0.0
        %1897 = vmatpush1.msra.mxu0 0.0
        %1898 = vmatprep.subr.mxu0 0.0
        %1899 = vmatpush1.msra.mxu0 0.0
        %1900 = vmatprep.subr.mxu0 0.0
        %1901 = vmatpush1.msra.mxu0 0.0
        %1902 = vmatprep.subr.mxu0 0.0
        %1903 = vmatpush1.msra.mxu0 0.0
        %1904 = vmatprep.subr.mxu0 0.0
        %1905 = vmatpush1.msra.mxu0 0.0
        %1906 = vmatprep.subr.mxu0 0.0
        %1907 = vmatpush1.msra.mxu0 0.0
        %1908 = vmatprep.subr.mxu0 0.0
        %1909 = vmatpush1.msra.mxu0 0.0
        %1910 = vmatprep.subr.mxu0 0.0
        %1911 = vmatpush1.msra.mxu0 0.0
        %1912 = vmatprep.subr.mxu0 0.0
        %1913 = vmatpush1.msra.mxu0 0.0
        %1914 = vmatprep.subr.mxu0 0.0
        %1915 = vmatpush1.msra.mxu0 0.0
        %1916 = vmatprep.subr.mxu0 0.0
        %1917 = vmatpush1.msra.mxu0 0.0
        %1918 = vmatprep.subr.mxu0 0.0
        %1919 = vmatpush1.msra.mxu0 0.0
        %1920 = vmatprep.subr.mxu0 0.0
        %1921 = vmatpush1.msra.mxu0 0.0
        %1922 = vmatprep.subr.mxu0 0.0
        %1923 = vmatpush1.msra.mxu0 0.0
        %1924 = vmatprep.subr.mxu0 0.0
        %1925 = vmatpush1.msra.mxu0 0.0
        %1926 = vmatprep.subr.mxu0 0.0
        %1927 = vmatpush1.msra.mxu0 0.0
        %1928 = vmatprep.subr.mxu0 0.0
        %1929 = vmatpush1.msra.mxu0 0.0
        %1930 = vmatprep.subr.mxu0 0.0
        %1931 = vmatpush1.msra.mxu0 0.0
        %1932 = vmatprep.subr.mxu0 0.0
        %1933 = vmatpush1.msra.mxu0 0.0
        %1934 = vmatprep.subr.mxu0 0.0
        %1935 = vmatpush1.msra.mxu0 0.0
        %1936 = vmatprep.subr.mxu0 0.0
        %1937 = vmatpush1.msra.mxu0 0.0
        %1938 = vmatprep.subr.mxu0 0.0
        %1939 = vmatpush1.msra.mxu0 0.0
        %1940 = vmatprep.mubr.f32.mxu0 0.0
        %1941 = vmatmul.mubr.f32.gmra.mrb[0].mxu0 %v1766
        %v1942 = vpop.f32.mrb[0].mxu0
        %v1943 = vadd.f32 0.0, %v1942
        %v1944 = vpop.f32.mrb[0].mxu0
        %1945 = vdwg.mxu0
        %1946 = vmatprep.subr.mxu0 0.0
        %1947 = vmatpush1.msra.mxu0 %v391
        %1948 = vmatprep.subr.mxu0 0.0
        %1949 = vmatpush1.msra.mxu0 %v392
        %1950 = vmatprep.subr.mxu0 0.0
        %1951 = vmatpush1.msra.mxu0 %v393
        %1952 = vmatprep.subr.mxu0 0.0
        %1953 = vmatpush1.msra.mxu0 %v394
        %1954 = vmatprep.subr.mxu0 0.0
        %1955 = vmatpush1.msra.mxu0 %v395
        %1956 = vmatprep.subr.mxu0 0.0
        %1957 = vmatpush1.msra.mxu0 %v396
        %1958 = vmatprep.subr.mxu0 0.0
        %1959 = vmatpush1.msra.mxu0 %v397
        %1960 = vmatprep.subr.mxu0 0.0
        %1961 = vmatpush1.msra.mxu0 %v398
        %1962 = vmatprep.subr.mxu0 0.0
        %1963 = vmatpush1.msra.mxu0 %v399
        %1964 = vmatprep.subr.mxu0 0.0
        %1965 = vmatpush1.msra.mxu0 %v400
        %1966 = vmatprep.subr.mxu0 0.0
        %1967 = vmatpush1.msra.mxu0 %v401
        %1968 = vmatprep.subr.mxu0 0.0
        %1969 = vmatpush1.msra.mxu0 %v402
        %1970 = vmatprep.subr.mxu0 0.0
        %1971 = vmatpush1.msra.mxu0 %v403
        %1972 = vmatprep.subr.mxu0 0.0
        %1973 = vmatpush1.msra.mxu0 %v404
        %1974 = vmatprep.subr.mxu0 0.0
        %1975 = vmatpush1.msra.mxu0 %v405
        %1976 = vmatprep.subr.mxu0 0.0
        %1977 = vmatpush1.msra.mxu0 %v406
        %1978 = vmatprep.subr.mxu0 0.0
        %1979 = vmatpush1.msra.mxu0 0.0
        %1980 = vmatprep.subr.mxu0 0.0
        %1981 = vmatpush1.msra.mxu0 0.0
        %1982 = vmatprep.subr.mxu0 0.0
        %1983 = vmatpush1.msra.mxu0 0.0
        %1984 = vmatprep.subr.mxu0 0.0
        %1985 = vmatpush1.msra.mxu0 0.0
        %1986 = vmatprep.subr.mxu0 0.0
        %1987 = vmatpush1.msra.mxu0 0.0
        %1988 = vmatprep.subr.mxu0 0.0
        %1989 = vmatpush1.msra.mxu0 0.0
        %1990 = vmatprep.subr.mxu0 0.0
        %1991 = vmatpush1.msra.mxu0 0.0
        %1992 = vmatprep.subr.mxu0 0.0
        %1993 = vmatpush1.msra.mxu0 0.0
        %1994 = vmatprep.subr.mxu0 0.0
        %1995 = vmatpush1.msra.mxu0 0.0
        %1996 = vmatprep.subr.mxu0 0.0
        %1997 = vmatpush1.msra.mxu0 0.0
        %1998 = vmatprep.subr.mxu0 0.0
        %1999 = vmatpush1.msra.mxu0 0.0
        %2000 = vmatprep.subr.mxu0 0.0
        %2001 = vmatpush1.msra.mxu0 0.0
        %2002 = vmatprep.subr.mxu0 0.0
        %2003 = vmatpush1.msra.mxu0 0.0
        %2004 = vmatprep.subr.mxu0 0.0
        %2005 = vmatpush1.msra.mxu0 0.0
        %2006 = vmatprep.subr.mxu0 0.0
        %2007 = vmatpush1.msra.mxu0 0.0
        %2008 = vmatprep.subr.mxu0 0.0
        %2009 = vmatpush1.msra.mxu0 0.0
        %2010 = vmatprep.mubr.f32.mxu0 0.0
        %2011 = vmatmul.mubr.f32.gmra.mrb[0].mxu0 %v1875
        %v2012 = vpop.f32.mrb[0].mxu0
        %v2013 = vadd.f32 %v1943, %v2012
        %v2014 = vpop.f32.mrb[0].mxu0
        %2015 = vdwg.mxu0
        %v2016 = vadd.f32 %v2013, %v614
        %v2017 = vxor.u32 %v2016, 2147483648
        %v2018 = vmul.f32 %v2017, 1.442695
        %v2019 = vpow.pop %v2018
        %v2020 = vadd.f32 %v2019, 1.0
        %v2021 = vrcp.pop %v2020
        %v2022 = vmul.f32 1.0, %v2021
        %v2023 = vtanh.pop %v2016
        %v2024 = vmul.f32 %v2022, %v1756
        %2026 = vrot.lane.b32.xlu0 %v2023, 64
        %v2027 = vpop.permute.xlu0 %2026
        %v2029 = vmul.f32 %v2022, %v2027
        %2031 = vrot.lane.b32.xlu0 %v2029, 32
        %v2032 = vpop.permute.xlu0 %2031
        %v2034 = vadd.f32 %v2024, %v2032
        %v2035 = vtanh.pop %v2034
        %2037 = vrot.lane.b32.xlu0 %v2035, 64
        %v2038 = vpop.permute.xlu0 %2037
        %v2040 = vmul.f32 %v2022, %v2038
        %2042 = vrot.lane.b32.xlu0 %v2040, 32
        %v2043 = vpop.permute.xlu0 %2042
        %v2044 = vsel %vm466, %v2043, 0
        %2046 = vmatprep.subr.mxu0 0.0
        %2047 = vmatpush1.msra.mxu0 %v412
        %2048 = vmatprep.subr.mxu0 0.0
        %2049 = vmatpush1.msra.mxu0 %v413
        %2050 = vmatprep.subr.mxu0 0.0
        %2051 = vmatpush1.msra.mxu0 %v414
        %2052 = vmatprep.subr.mxu0 0.0
        %2053 = vmatpush1.msra.mxu0 %v415
        %2054 = vmatprep.subr.mxu0 0.0
        %2055 = vmatpush1.msra.mxu0 0.0
        %2056 = vmatprep.subr.mxu0 0.0
        %2057 = vmatpush1.msra.mxu0 0.0
        %2058 = vmatprep.subr.mxu0 0.0
        %2059 = vmatpush1.msra.mxu0 0.0
        %2060 = vmatprep.subr.mxu0 0.0
        %2061 = vmatpush1.msra.mxu0 0.0
        %2062 = vmatprep.subr.mxu0 0.0
        %2063 = vmatpush1.msra.mxu0 0.0
        %2064 = vmatprep.subr.mxu0 0.0
        %2065 = vmatpush1.msra.mxu0 0.0
        %2066 = vmatprep.subr.mxu0 0.0
        %2067 = vmatpush1.msra.mxu0 0.0
        %2068 = vmatprep.subr.mxu0 0.0
        %2069 = vmatpush1.msra.mxu0 0.0
        %2070 = vmatprep.subr.mxu0 0.0
        %2071 = vmatpush1.msra.mxu0 0.0
        %2072 = vmatprep.subr.mxu0 0.0
        %2073 = vmatpush1.msra.mxu0 0.0
        %2074 = vmatprep.subr.mxu0 0.0
        %2075 = vmatpush1.msra.mxu0 0.0
        %2076 = vmatprep.subr.mxu0 0.0
        %2077 = vmatpush1.msra.mxu0 0.0
        %2078 = vmatprep.subr.mxu0 0.0
        %2079 = vmatpush1.msra.mxu0 0.0
        %2080 = vmatprep.subr.mxu0 0.0
        %2081 = vmatpush1.msra.mxu0 0.0
        %2082 = vmatprep.subr.mxu0 0.0
        %2083 = vmatpush1.msra.mxu0 0.0
        %2084 = vmatprep.subr.mxu0 0.0
        %2085 = vmatpush1.msra.mxu0 0.0
        %2086 = vmatprep.subr.mxu0 0.0
        %2087 = vmatpush1.msra.mxu0 0.0
        %2088 = vmatprep.subr.mxu0 0.0
        %2089 = vmatpush1.msra.mxu0 0.0
        %2090 = vmatprep.subr.mxu0 0.0
        %2091 = vmatpush1.msra.mxu0 0.0
        %2092 = vmatprep.subr.mxu0 0.0
        %2093 = vmatpush1.msra.mxu0 0.0
        %2094 = vmatprep.subr.mxu0 0.0
        %2095 = vmatpush1.msra.mxu0 0.0
        %2096 = vmatprep.subr.mxu0 0.0
        %2097 = vmatpush1.msra.mxu0 0.0
        %2098 = vmatprep.subr.mxu0 0.0
        %2099 = vmatpush1.msra.mxu0 0.0
        %2100 = vmatprep.subr.mxu0 0.0
        %2101 = vmatpush1.msra.mxu0 0.0
        %2102 = vmatprep.subr.mxu0 0.0
        %2103 = vmatpush1.msra.mxu0 0.0
        %2104 = vmatprep.subr.mxu0 0.0
        %2105 = vmatpush1.msra.mxu0 0.0
        %2106 = vmatprep.subr.mxu0 0.0
        %2107 = vmatpush1.msra.mxu0 0.0
        %2108 = vmatprep.subr.mxu0 0.0
        %2109 = vmatpush1.msra.mxu0 0.0
        %2110 = vmatprep.mubr.f32.mxu0 0.0
        %2111 = vmatmul.mubr.f32.gmra.mrb[0].mxu0 %v2044
        %v2112 = vpop.f32.mrb[0].mxu0
        %v2113 = vadd.f32 %v649, %v2112
        %v2114 = vpop.f32.mrb[0].mxu0
        %2115 = vdwg.mxu0
        %s2116 = scalar_lea.vmem %s376, 40 [#allocation15]
        %2117 = vst [vmem:[%s2116] sm:$0xff] %v2113
        %s2118 = sadd.s32 %s727, 6
        %s2119 = smul.u32 %s2118, 8
        %s2120 = sld [smem:[#allocation5 + %s2119]]
        %v2121 = vstv %s2120
        %v2122 = vsel %vm423, %v2121, 0
        %s2123 = sadd.s32 %s2119, 1
        %s2124 = sld [smem:[#allocation5 + %s2123]]
        %v2125 = vstv %s2124
        %v2126 = vsel %vm428, %v2125, %v2122
        %s2127 = sadd.s32 %s2119, 2
        %s2128 = sld [smem:[#allocation5 + %s2127]]
        %v2129 = vstv %s2128
        %v2130 = vsel %vm433, %v2129, %v2126
        %s2131 = sadd.s32 %s2119, 3
        %s2132 = sld [smem:[#allocation5 + %s2131]]
        %v2133 = vstv %s2132
        %v2134 = vsel %vm438, %v2133, %v2130
        %s2135 = sadd.s32 %s2119, 4
        %s2136 = sld [smem:[#allocation5 + %s2135]]
        %v2137 = vstv %s2136
        %v2138 = vsel %vm443, %v2137, %v2134
        %s2139 = sadd.s32 %s2119, 5
        %s2140 = sld [smem:[#allocation5 + %s2139]]
        %v2141 = vstv %s2140
        %v2142 = vsel %vm448, %v2141, %v2138
        %s2143 = sadd.s32 %s2119, 6
        %s2144 = sld [smem:[#allocation5 + %s2143]]
        %v2145 = vstv %s2144
        %v2146 = vsel %vm453, %v2145, %v2142
        %s2147 = sadd.s32 %s2119, 7
        %s2148 = sld [smem:[#allocation5 + %s2147]]
        %v2149 = vstv %s2148
        %v2150 = vsel %vm458, %v2149, %v2146
        %vm2151 = vcmp.eq.s32.totalorder %v420, %v2150
        %v2152 = vsel %vm2151, 1, 0
        %v2153 = vcvt.s32.f32 %v2152
        %2154 = vmatprep.subr.mxu0 0.0
        %2155 = vmatpush1.msra.mxu0 %v407
        %2156 = vmatprep.subr.mxu0 0.0
        %2157 = vmatpush1.msra.mxu0 %v408
        %2158 = vmatprep.subr.mxu0 0.0
        %2159 = vmatpush1.msra.mxu0 %v409
        %2160 = vmatprep.subr.mxu0 0.0
        %2161 = vmatpush1.msra.mxu0 %v410
        %2162 = vmatprep.subr.mxu0 0.0
        %2163 = vmatpush1.msra.mxu0 0.0
        %2164 = vmatprep.subr.mxu0 0.0
        %2165 = vmatpush1.msra.mxu0 0.0
        %2166 = vmatprep.subr.mxu0 0.0
        %2167 = vmatpush1.msra.mxu0 0.0
        %2168 = vmatprep.subr.mxu0 0.0
        %2169 = vmatpush1.msra.mxu0 0.0
        %2170 = vmatprep.subr.mxu0 0.0
        %2171 = vmatpush1.msra.mxu0 0.0
        %2172 = vmatprep.subr.mxu0 0.0
        %2173 = vmatpush1.msra.mxu0 0.0
        %2174 = vmatprep.subr.mxu0 0.0
        %2175 = vmatpush1.msra.mxu0 0.0
        %2176 = vmatprep.subr.mxu0 0.0
        %2177 = vmatpush1.msra.mxu0 0.0
        %2178 = vmatprep.subr.mxu0 0.0
        %2179 = vmatpush1.msra.mxu0 0.0
        %2180 = vmatprep.subr.mxu0 0.0
        %2181 = vmatpush1.msra.mxu0 0.0
        %2182 = vmatprep.subr.mxu0 0.0
        %2183 = vmatpush1.msra.mxu0 0.0
        %2184 = vmatprep.subr.mxu0 0.0
        %2185 = vmatpush1.msra.mxu0 0.0
        %2186 = vmatprep.subr.mxu0 0.0
        %2187 = vmatpush1.msra.mxu0 0.0
        %2188 = vmatprep.subr.mxu0 0.0
        %2189 = vmatpush1.msra.mxu0 0.0
        %2190 = vmatprep.subr.mxu0 0.0
        %2191 = vmatpush1.msra.mxu0 0.0
        %2192 = vmatprep.subr.mxu0 0.0
        %2193 = vmatpush1.msra.mxu0 0.0
        %2194 = vmatprep.subr.mxu0 0.0
        %2195 = vmatpush1.msra.mxu0 0.0
        %2196 = vmatprep.subr.mxu0 0.0
        %2197 = vmatpush1.msra.mxu0 0.0
        %2198 = vmatprep.subr.mxu0 0.0
        %2199 = vmatpush1.msra.mxu0 0.0
        %2200 = vmatprep.subr.mxu0 0.0
        %2201 = vmatpush1.msra.mxu0 0.0
        %2202 = vmatprep.subr.mxu0 0.0
        %2203 = vmatpush1.msra.mxu0 0.0
        %2204 = vmatprep.subr.mxu0 0.0
        %2205 = vmatpush1.msra.mxu0 0.0
        %2206 = vmatprep.subr.mxu0 0.0
        %2207 = vmatpush1.msra.mxu0 0.0
        %2208 = vmatprep.subr.mxu0 0.0
        %2209 = vmatpush1.msra.mxu0 0.0
        %2210 = vmatprep.subr.mxu0 0.0
        %2211 = vmatpush1.msra.mxu0 0.0
        %2212 = vmatprep.subr.mxu0 0.0
        %2213 = vmatpush1.msra.mxu0 0.0
        %2214 = vmatprep.subr.mxu0 0.0
        %2215 = vmatpush1.msra.mxu0 0.0
        %2216 = vmatprep.subr.mxu0 0.0
        %2217 = vmatpush1.msra.mxu0 0.0
        %2218 = vmatprep.mubr.f32.mxu0 0.0
        %2219 = vmatmul.mubr.f32.gmra.mrb[0].mxu0 %v2044
        %v2220 = vpop.f32.mrb[0].mxu0
        %v2221 = vadd.f32 0.0, %v2220
        %v2222 = vpop.f32.mrb[0].mxu0
        %2223 = vdwg.mxu0
        %2224 = vmatprep.subr.mxu0 0.0
        %2225 = vmatpush1.msra.mxu0 %v391
        %2226 = vmatprep.subr.mxu0 0.0
        %2227 = vmatpush1.msra.mxu0 %v392
        %2228 = vmatprep.subr.mxu0 0.0
        %2229 = vmatpush1.msra.mxu0 %v393
        %2230 = vmatprep.subr.mxu0 0.0
        %2231 = vmatpush1.msra.mxu0 %v394
        %2232 = vmatprep.subr.mxu0 0.0
        %2233 = vmatpush1.msra.mxu0 %v395
        %2234 = vmatprep.subr.mxu0 0.0
        %2235 = vmatpush1.msra.mxu0 %v396
        %2236 = vmatprep.subr.mxu0 0.0
        %2237 = vmatpush1.msra.mxu0 %v397
        %2238 = vmatprep.subr.mxu0 0.0
        %2239 = vmatpush1.msra.mxu0 %v398
        %2240 = vmatprep.subr.mxu0 0.0
        %2241 = vmatpush1.msra.mxu0 %v399
        %2242 = vmatprep.subr.mxu0 0.0
        %2243 = vmatpush1.msra.mxu0 %v400
        %2244 = vmatprep.subr.mxu0 0.0
        %2245 = vmatpush1.msra.mxu0 %v401
        %2246 = vmatprep.subr.mxu0 0.0
        %2247 = vmatpush1.msra.mxu0 %v402
        %2248 = vmatprep.subr.mxu0 0.0
        %2249 = vmatpush1.msra.mxu0 %v403
        %2250 = vmatprep.subr.mxu0 0.0
        %2251 = vmatpush1.msra.mxu0 %v404
        %2252 = vmatprep.subr.mxu0 0.0
        %2253 = vmatpush1.msra.mxu0 %v405
        %2254 = vmatprep.subr.mxu0 0.0
        %2255 = vmatpush1.msra.mxu0 %v406
        %2256 = vmatprep.subr.mxu0 0.0
        %2257 = vmatpush1.msra.mxu0 0.0
        %2258 = vmatprep.subr.mxu0 0.0
        %2259 = vmatpush1.msra.mxu0 0.0
        %2260 = vmatprep.subr.mxu0 0.0
        %2261 = vmatpush1.msra.mxu0 0.0
        %2262 = vmatprep.subr.mxu0 0.0
        %2263 = vmatpush1.msra.mxu0 0.0
        %2264 = vmatprep.subr.mxu0 0.0
        %2265 = vmatpush1.msra.mxu0 0.0
        %2266 = vmatprep.subr.mxu0 0.0
        %2267 = vmatpush1.msra.mxu0 0.0
        %2268 = vmatprep.subr.mxu0 0.0
        %2269 = vmatpush1.msra.mxu0 0.0
        %2270 = vmatprep.subr.mxu0 0.0
        %2271 = vmatpush1.msra.mxu0 0.0
        %2272 = vmatprep.subr.mxu0 0.0
        %2273 = vmatpush1.msra.mxu0 0.0
        %2274 = vmatprep.subr.mxu0 0.0
        %2275 = vmatpush1.msra.mxu0 0.0
        %2276 = vmatprep.subr.mxu0 0.0
        %2277 = vmatpush1.msra.mxu0 0.0
        %2278 = vmatprep.subr.mxu0 0.0
        %2279 = vmatpush1.msra.mxu0 0.0
        %2280 = vmatprep.subr.mxu0 0.0
        %2281 = vmatpush1.msra.mxu0 0.0
        %2282 = vmatprep.subr.mxu0 0.0
        %2283 = vmatpush1.msra.mxu0 0.0
        %2284 = vmatprep.subr.mxu0 0.0
        %2285 = vmatpush1.msra.mxu0 0.0
        %2286 = vmatprep.subr.mxu0 0.0
        %2287 = vmatpush1.msra.mxu0 0.0
        %2288 = vmatprep.mubr.f32.mxu0 0.0
        %2289 = vmatmul.mubr.f32.gmra.mrb[0].mxu0 %v2153
        %v2290 = vpop.f32.mrb[0].mxu0
        %v2291 = vadd.f32 %v2221, %v2290
        %v2292 = vpop.f32.mrb[0].mxu0
        %2293 = vdwg.mxu0
        %v2294 = vadd.f32 %v2291, %v614
        %v2295 = vxor.u32 %v2294, 2147483648
        %v2296 = vmul.f32 %v2295, 1.442695
        %v2297 = vpow.pop %v2296
        %v2298 = vadd.f32 %v2297, 1.0
        %v2299 = vrcp.pop %v2298
        %v2300 = vmul.f32 1.0, %v2299
        %v2301 = vtanh.pop %v2294
        %v2302 = vmul.f32 %v2300, %v2034
        %2304 = vrot.lane.b32.xlu0 %v2301, 64
        %v2305 = vpop.permute.xlu0 %2304
        %v2307 = vmul.f32 %v2300, %v2305
        %2309 = vrot.lane.b32.xlu0 %v2307, 32
        %v2310 = vpop.permute.xlu0 %2309
        %v2312 = vadd.f32 %v2302, %v2310
        %v2313 = vtanh.pop %v2312
        %2315 = vrot.lane.b32.xlu0 %v2313, 64
        %v2316 = vpop.permute.xlu0 %2315
        %v2318 = vmul.f32 %v2300, %v2316
        %2320 = vrot.lane.b32.xlu0 %v2318, 32
        %v2321 = vpop.permute.xlu0 %2320
        %v2322 = vsel %vm466, %v2321, 0
        %2324 = vmatprep.subr.mxu0 0.0
        %2325 = vmatpush1.msra.mxu0 %v412
        %2326 = vmatprep.subr.mxu0 0.0
        %2327 = vmatpush1.msra.mxu0 %v413
        %2328 = vmatprep.subr.mxu0 0.0
        %2329 = vmatpush1.msra.mxu0 %v414
        %2330 = vmatprep.subr.mxu0 0.0
        %2331 = vmatpush1.msra.mxu0 %v415
        %2332 = vmatprep.subr.mxu0 0.0
        %2333 = vmatpush1.msra.mxu0 0.0
        %2334 = vmatprep.subr.mxu0 0.0
        %2335 = vmatpush1.msra.mxu0 0.0
        %2336 = vmatprep.subr.mxu0 0.0
        %2337 = vmatpush1.msra.mxu0 0.0
        %2338 = vmatprep.subr.mxu0 0.0
        %2339 = vmatpush1.msra.mxu0 0.0
        %2340 = vmatprep.subr.mxu0 0.0
        %2341 = vmatpush1.msra.mxu0 0.0
        %2342 = vmatprep.subr.mxu0 0.0
        %2343 = vmatpush1.msra.mxu0 0.0
        %2344 = vmatprep.subr.mxu0 0.0
        %2345 = vmatpush1.msra.mxu0 0.0
        %2346 = vmatprep.subr.mxu0 0.0
        %2347 = vmatpush1.msra.mxu0 0.0
        %2348 = vmatprep.subr.mxu0 0.0
        %2349 = vmatpush1.msra.mxu0 0.0
        %2350 = vmatprep.subr.mxu0 0.0
        %2351 = vmatpush1.msra.mxu0 0.0
        %2352 = vmatprep.subr.mxu0 0.0
        %2353 = vmatpush1.msra.mxu0 0.0
        %2354 = vmatprep.subr.mxu0 0.0
        %2355 = vmatpush1.msra.mxu0 0.0
        %2356 = vmatprep.subr.mxu0 0.0
        %2357 = vmatpush1.msra.mxu0 0.0
        %2358 = vmatprep.subr.mxu0 0.0
        %2359 = vmatpush1.msra.mxu0 0.0
        %2360 = vmatprep.subr.mxu0 0.0
        %2361 = vmatpush1.msra.mxu0 0.0
        %2362 = vmatprep.subr.mxu0 0.0
        %2363 = vmatpush1.msra.mxu0 0.0
        %2364 = vmatprep.subr.mxu0 0.0
        %2365 = vmatpush1.msra.mxu0 0.0
        %2366 = vmatprep.subr.mxu0 0.0
        %2367 = vmatpush1.msra.mxu0 0.0
        %2368 = vmatprep.subr.mxu0 0.0
        %2369 = vmatpush1.msra.mxu0 0.0
        %2370 = vmatprep.subr.mxu0 0.0
        %2371 = vmatpush1.msra.mxu0 0.0
        %2372 = vmatprep.subr.mxu0 0.0
        %2373 = vmatpush1.msra.mxu0 0.0
        %2374 = vmatprep.subr.mxu0 0.0
        %2375 = vmatpush1.msra.mxu0 0.0
        %2376 = vmatprep.subr.mxu0 0.0
        %2377 = vmatpush1.msra.mxu0 0.0
        %2378 = vmatprep.subr.mxu0 0.0
        %2379 = vmatpush1.msra.mxu0 0.0
        %2380 = vmatprep.subr.mxu0 0.0
        %2381 = vmatpush1.msra.mxu0 0.0
        %2382 = vmatprep.subr.mxu0 0.0
        %2383 = vmatpush1.msra.mxu0 0.0
        %2384 = vmatprep.subr.mxu0 0.0
        %2385 = vmatpush1.msra.mxu0 0.0
        %2386 = vmatprep.subr.mxu0 0.0
        %2387 = vmatpush1.msra.mxu0 0.0
        %2388 = vmatprep.mubr.f32.mxu0 0.0
        %2389 = vmatmul.mubr.f32.gmra.mrb[0].mxu0 %v2322
        %v2390 = vpop.f32.mrb[0].mxu0
        %v2391 = vadd.f32 %v649, %v2390
        %v2392 = vpop.f32.mrb[0].mxu0
        %2393 = vdwg.mxu0
        %s2394 = scalar_lea.vmem %s376, 48 [#allocation15]
        %2395 = vst [vmem:[%s2394] sm:$0xff] %v2391
        %s2396 = sadd.s32 %s727, 7
        %s2397 = smul.u32 %s2396, 8
        %s2398 = sld [smem:[#allocation5 + %s2397]]
        %v2399 = vstv %s2398
        %v2400 = vsel %vm423, %v2399, 0
        %s2401 = sadd.s32 %s2397, 1
        %s2402 = sld [smem:[#allocation5 + %s2401]]
        %v2403 = vstv %s2402
        %v2404 = vsel %vm428, %v2403, %v2400
        %s2405 = sadd.s32 %s2397, 2
        %s2406 = sld [smem:[#allocation5 + %s2405]]
        %v2407 = vstv %s2406
        %v2408 = vsel %vm433, %v2407, %v2404
        %s2409 = sadd.s32 %s2397, 3
        %s2410 = sld [smem:[#allocation5 + %s2409]]
        %v2411 = vstv %s2410
        %v2412 = vsel %vm438, %v2411, %v2408
        %s2413 = sadd.s32 %s2397, 4
        %s2414 = sld [smem:[#allocation5 + %s2413]]
        %v2415 = vstv %s2414
        %v2416 = vsel %vm443, %v2415, %v2412
        %s2417 = sadd.s32 %s2397, 5
        %s2418 = sld [smem:[#allocation5 + %s2417]]
        %v2419 = vstv %s2418
        %v2420 = vsel %vm448, %v2419, %v2416
        %s2421 = sadd.s32 %s2397, 6
        %s2422 = sld [smem:[#allocation5 + %s2421]]
        %v2423 = vstv %s2422
        %v2424 = vsel %vm453, %v2423, %v2420
        %s2425 = sadd.s32 %s2397, 7
        %s2426 = sld [smem:[#allocation5 + %s2425]]
        %v2427 = vstv %s2426
        %v2428 = vsel %vm458, %v2427, %v2424
        %vm2429 = vcmp.eq.s32.totalorder %v420, %v2428
        %v2430 = vsel %vm2429, 1, 0
        %v2431 = vcvt.s32.f32 %v2430
        %2432 = vmatprep.subr.mxu0 0.0
        %2433 = vmatpush1.msra.mxu0 %v407
        %2434 = vmatprep.subr.mxu0 0.0
        %2435 = vmatpush1.msra.mxu0 %v408
        %2436 = vmatprep.subr.mxu0 0.0
        %2437 = vmatpush1.msra.mxu0 %v409
        %2438 = vmatprep.subr.mxu0 0.0
        %2439 = vmatpush1.msra.mxu0 %v410
        %2440 = vmatprep.subr.mxu0 0.0
        %2441 = vmatpush1.msra.mxu0 0.0
        %2442 = vmatprep.subr.mxu0 0.0
        %2443 = vmatpush1.msra.mxu0 0.0
        %2444 = vmatprep.subr.mxu0 0.0
        %2445 = vmatpush1.msra.mxu0 0.0
        %2446 = vmatprep.subr.mxu0 0.0
        %2447 = vmatpush1.msra.mxu0 0.0
        %2448 = vmatprep.subr.mxu0 0.0
        %2449 = vmatpush1.msra.mxu0 0.0
        %2450 = vmatprep.subr.mxu0 0.0
        %2451 = vmatpush1.msra.mxu0 0.0
        %2452 = vmatprep.subr.mxu0 0.0
        %2453 = vmatpush1.msra.mxu0 0.0
        %2454 = vmatprep.subr.mxu0 0.0
        %2455 = vmatpush1.msra.mxu0 0.0
        %2456 = vmatprep.subr.mxu0 0.0
        %2457 = vmatpush1.msra.mxu0 0.0
        %2458 = vmatprep.subr.mxu0 0.0
        %2459 = vmatpush1.msra.mxu0 0.0
        %2460 = vmatprep.subr.mxu0 0.0
        %2461 = vmatpush1.msra.mxu0 0.0
        %2462 = vmatprep.subr.mxu0 0.0
        %2463 = vmatpush1.msra.mxu0 0.0
        %2464 = vmatprep.subr.mxu0 0.0
        %2465 = vmatpush1.msra.mxu0 0.0
        %2466 = vmatprep.subr.mxu0 0.0
        %2467 = vmatpush1.msra.mxu0 0.0
        %2468 = vmatprep.subr.mxu0 0.0
        %2469 = vmatpush1.msra.mxu0 0.0
        %2470 = vmatprep.subr.mxu0 0.0
        %2471 = vmatpush1.msra.mxu0 0.0
        %2472 = vmatprep.subr.mxu0 0.0
        %2473 = vmatpush1.msra.mxu0 0.0
        %2474 = vmatprep.subr.mxu0 0.0
        %2475 = vmatpush1.msra.mxu0 0.0
        %2476 = vmatprep.subr.mxu0 0.0
        %2477 = vmatpush1.msra.mxu0 0.0
        %2478 = vmatprep.subr.mxu0 0.0
        %2479 = vmatpush1.msra.mxu0 0.0
        %2480 = vmatprep.subr.mxu0 0.0
        %2481 = vmatpush1.msra.mxu0 0.0
        %2482 = vmatprep.subr.mxu0 0.0
        %2483 = vmatpush1.msra.mxu0 0.0
        %2484 = vmatprep.subr.mxu0 0.0
        %2485 = vmatpush1.msra.mxu0 0.0
        %2486 = vmatprep.subr.mxu0 0.0
        %2487 = vmatpush1.msra.mxu0 0.0
        %2488 = vmatprep.subr.mxu0 0.0
        %2489 = vmatpush1.msra.mxu0 0.0
        %2490 = vmatprep.subr.mxu0 0.0
        %2491 = vmatpush1.msra.mxu0 0.0
        %2492 = vmatprep.subr.mxu0 0.0
        %2493 = vmatpush1.msra.mxu0 0.0
        %2494 = vmatprep.subr.mxu0 0.0
        %2495 = vmatpush1.msra.mxu0 0.0
        %2496 = vmatprep.mubr.f32.mxu0 0.0
        %2497 = vmatmul.mubr.f32.gmra.mrb[0].mxu0 %v2322
        %v2498 = vpop.f32.mrb[0].mxu0
        %v2499 = vadd.f32 0.0, %v2498
        %v2500 = vpop.f32.mrb[0].mxu0
        %2501 = vdwg.mxu0
        %2502 = vmatprep.subr.mxu0 0.0
        %2503 = vmatpush1.msra.mxu0 %v391
        %2504 = vmatprep.subr.mxu0 0.0
        %2505 = vmatpush1.msra.mxu0 %v392
        %2506 = vmatprep.subr.mxu0 0.0
        %2507 = vmatpush1.msra.mxu0 %v393
        %2508 = vmatprep.subr.mxu0 0.0
        %2509 = vmatpush1.msra.mxu0 %v394
        %2510 = vmatprep.subr.mxu0 0.0
        %2511 = vmatpush1.msra.mxu0 %v395
        %2512 = vmatprep.subr.mxu0 0.0
        %2513 = vmatpush1.msra.mxu0 %v396
        %2514 = vmatprep.subr.mxu0 0.0
        %2515 = vmatpush1.msra.mxu0 %v397
        %2516 = vmatprep.subr.mxu0 0.0
        %2517 = vmatpush1.msra.mxu0 %v398
        %2518 = vmatprep.subr.mxu0 0.0
        %2519 = vmatpush1.msra.mxu0 %v399
        %2520 = vmatprep.subr.mxu0 0.0
        %2521 = vmatpush1.msra.mxu0 %v400
        %2522 = vmatprep.subr.mxu0 0.0
        %2523 = vmatpush1.msra.mxu0 %v401
        %2524 = vmatprep.subr.mxu0 0.0
        %2525 = vmatpush1.msra.mxu0 %v402
        %2526 = vmatprep.subr.mxu0 0.0
        %2527 = vmatpush1.msra.mxu0 %v403
        %2528 = vmatprep.subr.mxu0 0.0
        %2529 = vmatpush1.msra.mxu0 %v404
        %2530 = vmatprep.subr.mxu0 0.0
        %2531 = vmatpush1.msra.mxu0 %v405
        %2532 = vmatprep.subr.mxu0 0.0
        %2533 = vmatpush1.msra.mxu0 %v406
        %2534 = vmatprep.subr.mxu0 0.0
        %2535 = vmatpush1.msra.mxu0 0.0
        %2536 = vmatprep.subr.mxu0 0.0
        %2537 = vmatpush1.msra.mxu0 0.0
        %2538 = vmatprep.subr.mxu0 0.0
        %2539 = vmatpush1.msra.mxu0 0.0
        %2540 = vmatprep.subr.mxu0 0.0
        %2541 = vmatpush1.msra.mxu0 0.0
        %2542 = vmatprep.subr.mxu0 0.0
        %2543 = vmatpush1.msra.mxu0 0.0
        %2544 = vmatprep.subr.mxu0 0.0
        %2545 = vmatpush1.msra.mxu0 0.0
        %2546 = vmatprep.subr.mxu0 0.0
        %2547 = vmatpush1.msra.mxu0 0.0
        %2548 = vmatprep.subr.mxu0 0.0
        %2549 = vmatpush1.msra.mxu0 0.0
        %2550 = vmatprep.subr.mxu0 0.0
        %2551 = vmatpush1.msra.mxu0 0.0
        %2552 = vmatprep.subr.mxu0 0.0
        %2553 = vmatpush1.msra.mxu0 0.0
        %2554 = vmatprep.subr.mxu0 0.0
        %2555 = vmatpush1.msra.mxu0 0.0
        %2556 = vmatprep.subr.mxu0 0.0
        %2557 = vmatpush1.msra.mxu0 0.0
        %2558 = vmatprep.subr.mxu0 0.0
        %2559 = vmatpush1.msra.mxu0 0.0
        %2560 = vmatprep.subr.mxu0 0.0
        %2561 = vmatpush1.msra.mxu0 0.0
        %2562 = vmatprep.subr.mxu0 0.0
        %2563 = vmatpush1.msra.mxu0 0.0
        %2564 = vmatprep.subr.mxu0 0.0
        %2565 = vmatpush1.msra.mxu0 0.0
        %2566 = vmatprep.mubr.f32.mxu0 0.0
        %2567 = vmatmul.mubr.f32.gmra.mrb[0].mxu0 %v2431
        %v2568 = vpop.f32.mrb[0].mxu0
        %v2569 = vadd.f32 %v2499, %v2568
        %v2570 = vpop.f32.mrb[0].mxu0
        %2571 = vdwg.mxu0
        %v2572 = vadd.f32 %v2569, %v614
        %v2573 = vxor.u32 %v2572, 2147483648
        %v2574 = vmul.f32 %v2573, 1.442695
        %v2575 = vpow.pop %v2574
        %v2576 = vadd.f32 %v2575, 1.0
        %v2577 = vrcp.pop %v2576
        %v2578 = vmul.f32 1.0, %v2577
        %v2579 = vtanh.pop %v2572
        %v2580 = vmul.f32 %v2578, %v2312
        %2582 = vrot.lane.b32.xlu0 %v2579, 64
        %v2583 = vpop.permute.xlu0 %2582
        %v2585 = vmul.f32 %v2578, %v2583
        %2587 = vrot.lane.b32.xlu0 %v2585, 32
        %v2588 = vpop.permute.xlu0 %2587
        %v2590 = vadd.f32 %v2580, %v2588
        %v2591 = vtanh.pop %v2590
        %2593 = vrot.lane.b32.xlu0 %v2591, 64
        %v2594 = vpop.permute.xlu0 %2593
        %v2596 = vmul.f32 %v2578, %v2594
        %2598 = vrot.lane.b32.xlu0 %v2596, 32
        %v2599 = vpop.permute.xlu0 %2598
        %v2600 = vsel %vm466, %v2599, 0
        %2602 = vmatprep.subr.mxu0 0.0
        %2603 = vmatpush1.msra.mxu0 %v412
        %2604 = vmatprep.subr.mxu0 0.0
        %2605 = vmatpush1.msra.mxu0 %v413
        %2606 = vmatprep.subr.mxu0 0.0
        %2607 = vmatpush1.msra.mxu0 %v414
        %2608 = vmatprep.subr.mxu0 0.0
        %2609 = vmatpush1.msra.mxu0 %v415
        %2610 = vmatprep.subr.mxu0 0.0
        %2611 = vmatpush1.msra.mxu0 0.0
        %2612 = vmatprep.subr.mxu0 0.0
        %2613 = vmatpush1.msra.mxu0 0.0
        %2614 = vmatprep.subr.mxu0 0.0
        %2615 = vmatpush1.msra.mxu0 0.0
        %2616 = vmatprep.subr.mxu0 0.0
        %2617 = vmatpush1.msra.mxu0 0.0
        %2618 = vmatprep.subr.mxu0 0.0
        %2619 = vmatpush1.msra.mxu0 0.0
        %2620 = vmatprep.subr.mxu0 0.0
        %2621 = vmatpush1.msra.mxu0 0.0
        %2622 = vmatprep.subr.mxu0 0.0
        %2623 = vmatpush1.msra.mxu0 0.0
        %2624 = vmatprep.subr.mxu0 0.0
        %2625 = vmatpush1.msra.mxu0 0.0
        %2626 = vmatprep.subr.mxu0 0.0
        %2627 = vmatpush1.msra.mxu0 0.0
        %2628 = vmatprep.subr.mxu0 0.0
        %2629 = vmatpush1.msra.mxu0 0.0
        %2630 = vmatprep.subr.mxu0 0.0
        %2631 = vmatpush1.msra.mxu0 0.0
        %2632 = vmatprep.subr.mxu0 0.0
        %2633 = vmatpush1.msra.mxu0 0.0
        %2634 = vmatprep.subr.mxu0 0.0
        %2635 = vmatpush1.msra.mxu0 0.0
        %2636 = vmatprep.subr.mxu0 0.0
        %2637 = vmatpush1.msra.mxu0 0.0
        %2638 = vmatprep.subr.mxu0 0.0
        %2639 = vmatpush1.msra.mxu0 0.0
        %2640 = vmatprep.subr.mxu0 0.0
        %2641 = vmatpush1.msra.mxu0 0.0
        %2642 = vmatprep.subr.mxu0 0.0
        %2643 = vmatpush1.msra.mxu0 0.0
        %2644 = vmatprep.subr.mxu0 0.0
        %2645 = vmatpush1.msra.mxu0 0.0
        %2646 = vmatprep.subr.mxu0 0.0
        %2647 = vmatpush1.msra.mxu0 0.0
        %2648 = vmatprep.subr.mxu0 0.0
        %2649 = vmatpush1.msra.mxu0 0.0
        %2650 = vmatprep.subr.mxu0 0.0
        %2651 = vmatpush1.msra.mxu0 0.0
        %2652 = vmatprep.subr.mxu0 0.0
        %2653 = vmatpush1.msra.mxu0 0.0
        %2654 = vmatprep.subr.mxu0 0.0
        %2655 = vmatpush1.msra.mxu0 0.0
        %2656 = vmatprep.subr.mxu0 0.0
        %2657 = vmatpush1.msra.mxu0 0.0
        %2658 = vmatprep.subr.mxu0 0.0
        %2659 = vmatpush1.msra.mxu0 0.0
        %2660 = vmatprep.subr.mxu0 0.0
        %2661 = vmatpush1.msra.mxu0 0.0
        %2662 = vmatprep.subr.mxu0 0.0
        %2663 = vmatpush1.msra.mxu0 0.0
        %2664 = vmatprep.subr.mxu0 0.0
        %2665 = vmatpush1.msra.mxu0 0.0
        %2666 = vmatprep.mubr.f32.mxu0 0.0
        %2667 = vmatmul.mubr.f32.gmra.mrb[0].mxu0 %v2600
        %v2668 = vpop.f32.mrb[0].mxu0
        %v2669 = vadd.f32 %v649, %v2668
        %v2670 = vpop.f32.mrb[0].mxu0
        %2671 = vdwg.mxu0
        %s2672 = scalar_lea.vmem %s376, 56 [#allocation15]
        %2673 = vst [vmem:[%s2672] sm:$0xff] %v2669
        %2675 = vst.msk [vmem:[#allocation2] sm:$0xff] %vm466, %v2599
        %2677 = vrot.lane.b32.xlu0 %v2590, 96
        %v2678 = vpop.permute.xlu0 %2677
        %2680 = vst.msk [vmem:[#allocation3] sm:$0xff] %vm466, %v2678
        %p2681 = scmp.eq.s32.totalorder %s33, 1
        // Predicated region
        $region73: #{tpu_custom_call.1} parent=47 // pred_check
          %p2682 = pneg %p2681
        $region74: #{tpu_custom_call.1} parent=47 // pred_check_branch
          %2684 = sbr.rel (%p2682) target = $region76
        $region75: #{tpu_custom_call.1} parent=47 // pred_region
          %2685 = vst.msk [vmem:[#allocation16] sm:$0xff] %vm466, %v2599
          %2686 = vst.msk [vmem:[#allocation18] sm:$0xff] %vm466, %v2678
        $region76: #{tpu_custom_call.1} parent=47 // pred_fallthru
          _
        %s2687 = sand.u32 %s188, 1
        %s2688 = scalar_lea.sflag [#allocation8], %s2687
        %s2689 = sand.u32 %s188, 1
        %s2690 = smul.addr %s2689, 64
        %s2691 = scalar_lea.vmem [#allocation15], %s2690
        // Predicated region
        $region77: #{tpu_custom_call.1} parent=47 // pred_check
          %p2692 = pneg %p198
        $region78: #{tpu_custom_call.1} parent=47 // pred_check_branch
          %2694 = sbr.rel (%p2692) target = $region80
        $region79: #{tpu_custom_call.1} parent=47 // pred_region
          %s2695 = smul.u32 8, %s33
          %s2697 = ssub.s32 1024, 1024
          %2698 = vsyncadd %s2688, %s2697
          %s2699 = smul.addr %s2695, 128
          %s2700 = scalar_lea.hbm %s8, %s2699
          %s2701 = sshll.u32 %s2691, 4
          %s2702 = int_to_ptr.vmem [resolvable:$true] %s2701
          %2707 = dma.vmem_to_hbm [thread:$0]  %s2702, 1024, %s2700, %s2688, 128, 128, 8
        $region80: #{tpu_custom_call.1} parent=47 // pred_fallthru
          _
        // Predicated region
        $region81: #{tpu_custom_call.1} parent=47 // pred_check
          %p2708 = pneg %p219
        $region82: #{tpu_custom_call.1} parent=47 // pred_check_branch
          %2710 = sbr.rel (%p2708) target = $region84
        $region83: #{tpu_custom_call.1} parent=47 // pred_region
          %s2712 = ssub.s32 128, 128
          %2713 = vsyncadd [#allocation17], %s2712
          %s2715 = sshll.u32 [#allocation16], 4
          %s2716 = int_to_ptr.vmem [resolvable:$true] %s2715
          %2718 = dma.vmem_to_hbm [thread:$0]  %s2716, 128, %s9, [#allocation17]
        $region84: #{tpu_custom_call.1} parent=47 // pred_fallthru
          _
        // Predicated region
        $region85: #{tpu_custom_call.1} parent=47 // pred_check
          %p2719 = pneg %p240
        $region86: #{tpu_custom_call.1} parent=47 // pred_check_branch
          %2721 = sbr.rel (%p2719) target = $region88
        $region87: #{tpu_custom_call.1} parent=47 // pred_region
          %s2723 = ssub.s32 128, 128
          %2724 = vsyncadd [#allocation17], %s2723
          %s2726 = sshll.u32 [#allocation18], 4
          %s2727 = int_to_ptr.vmem [resolvable:$true] %s2726
          %2729 = dma.vmem_to_hbm [thread:$0]  %s2727, 128, %s10, [#allocation17]
        $region88: #{tpu_custom_call.1} parent=47 // pred_fallthru
          _
        // Predicated region
        $region89: #{tpu_custom_call.1} parent=47 // pred_check
          %p2730 = pneg %p219
        $region90: #{tpu_custom_call.1} parent=47 // pred_check_branch
          %2732 = sbr.rel (%p2730) target = $region92
        $region91: #{tpu_custom_call.1} parent=47 // pred_region
          %2733 = dma.done [#allocation17], 128
        $region92: #{tpu_custom_call.1} parent=47 // pred_fallthru
          _
        // Predicated region
        $region93: #{tpu_custom_call.1} parent=47 // pred_check
          %p2734 = pneg %p240
        $region94: #{tpu_custom_call.1} parent=47 // pred_check_branch
          %2736 = sbr.rel (%p2734) target = $region96
        $region95: #{tpu_custom_call.1} parent=47 // pred_region
          %2737 = dma.done [#allocation17], 128
        $region96: #{tpu_custom_call.1} parent=47 // pred_fallthru
          _
      $region48: #{tpu_custom_call.1} parent=5 // pred_fallthru
        _
      %p2738 = scmp.le.s32.totalorder 2, %s28
      // Predicated region
      $region97: #{tpu_custom_call.1} parent=5 // pred_check
        %p2739 = pneg %p2738
      $region98: #{tpu_custom_call.1} parent=5 // pred_check_branch
        %2741 = sbr.rel (%p2739) target = $region100
      $region99: #{tpu_custom_call.1} parent=5 // pred_region
        %s2742 = ssub.s32 %s28, 2
        // Predicated region
        $region101: #{tpu_custom_call.1} parent=99 // pred_check
          %p2743 = pneg %p204
        $region102: #{tpu_custom_call.1} parent=99 // pred_check_branch
          %2745 = sbr.rel (%p2743) target = $region104
        $region103: #{tpu_custom_call.1} parent=99 // pred_region
          %s2746 = sand.u32 %s189, 1
          %s2747 = scalar_lea.sflag [#allocation8], %s2746
          %s2748 = sand.u32 %s189, 1
          %s2749 = smul.addr %s2748, 64
          %s2750 = scalar_lea.vmem [#allocation15], %s2749
          %2751 = dma.done %s2747, 1024
        $region104: #{tpu_custom_call.1} parent=99 // pred_fallthru
          _
      $region100: #{tpu_custom_call.1} parent=5 // pred_fallthru
        _
    $region6: #{tpu_custom_call.1} parent=1 // loop_footer
      %s32 = sadd.s32 1, %s28
    $region7: #{tpu_custom_call.1} parent=1 // loop_footer_branch
      %27 = sbr.rel target = $region3
    $region8: #{tpu_custom_call.1} parent=1 // loop_exit
      _
    %2752 = vsyncpa [#allocation7], 1
    %s2753 = scalar_lea.sflag [#allocation7], 1
    %2754 = vsyncpa %s2753, 1
    %2755 = vsyncpa [#allocation10], 1
    %2756 = vsyncpa [#allocation13], 1
    %2757 = vsyncpa [#allocation8], 1
    %s2758 = scalar_lea.sflag [#allocation8], 1
    %2759 = vsyncpa %s2758, 1
    %2760 = vsyncpa [#allocation17], 1

</llo_original>
